<compile_context>
chip_gen: v7x
topology: tpu7x:2x2x1
jax: 0.10.0
libtpu: 0.0.40
codegen_flags: <defaults>
</compile_context>

<pallas_src>
import functools

import numpy as np
import jax
import jax.numpy as jnp
from jax.experimental import pallas as pl
from jax.experimental.pallas import tpu as pltpu


def _cheb_conv_kernel(x_ref, cheb_ref, theta_bd_ref, beta_bd_ref, out_ref, *,
                      K, compute_dtype):
    """One (batch, time-block) grid step; everything kept N-in-lane.

    x_ref:        (1, 1, Tt*Fin,  N)   X_t^T stacked over the time block
    cheb_ref:     (K, N, N)            Chebyshev polynomials T_k (untransposed)
    theta_bd_ref: (K, Tt*H,   Tt*Fin)  block-diag(Theta_k^T) over the time block
    beta_bd_ref:  (K, Tt*Fout, Tt*H)   block-diag(Beta_k^T)  over the time block
    out_ref:      (1, 1, Tt*Fout, N)   transposed-layout output block
    """
    xb = x_ref[0, 0]                                            # (Tt*Fin, N)
    acc = None
    for k in range(K):                                          # K is small: unroll
        # GEMM-1: (T_k^T @ X_t)^T for all t of the block at once, lane = N.
        r_k = jnp.dot(xb, cheb_ref[k],
                      preferred_element_type=jnp.float32)       # (Tt*Fin, N)
        # GEMM-2: Theta_k^T applied per timestep via the block-diagonal weight.
        p_k = jnp.dot(theta_bd_ref[k], r_k.astype(compute_dtype),
                      preferred_element_type=jnp.float32)       # (Tt*H, N)
        ir_k = jnp.maximum(p_k, 0.0)                            # ReLU in f32 (VPU)
        # GEMM-3: Beta_k^T per timestep, accumulated over k in f32.
        o_k = jnp.dot(beta_bd_ref[k], ir_k.astype(compute_dtype),
                      preferred_element_type=jnp.float32)       # (Tt*Fout, N)
        acc = o_k if acc is None else acc + o_k
    out_ref[0, 0] = acc.astype(out_ref.dtype)


def _round_up(v, m):
    return ((v + m - 1) // m) * m


def _vmem_limit_bytes():
    """Per-generation VMEM limit (v5e/v6e: 128 MiB, v7x: 64 MiB physical)."""
    try:
        cap = int(pltpu.get_tpu_info().vmem_capacity_bytes)
    except Exception:
        cap = 64 * 1024 * 1024          # conservative (v7x per-TC VMEM)
    return int(min(cap * 3 // 4, 100 * 1024 * 1024))


def _block_vmem_bytes(Tt, N, Fin, Fout, H, K, cdt_bytes):
    """Conservative per-grid-step VMEM model, padded to (8,128) tiles."""
    lane = lambda n: _round_up(max(int(n), 1), 128)
    sub = lambda n: _round_up(max(int(n), 1), 8)
    Np = lane(N)
    x_blk = 2 * sub(Tt * Fin) * Np * cdt_bytes              # double-buffered stream
    out_blk = 2 * sub(Tt * Fout) * Np * 4
    cheb = K * sub(N) * Np * cdt_bytes                      # grid-invariant operands
    theta_bd = K * sub(Tt * H) * lane(Tt * Fin) * cdt_bytes
    beta_bd = K * sub(Tt * Fout) * lane(Tt * H) * cdt_bytes
    consts = 2 * (cheb + theta_bd + beta_bd)                # worst case: 2 buffers
    r_tmp = K * sub(Tt * Fin) * Np * (4 + cdt_bytes)        # f32 result + cast copy
    ir_tmp = K * sub(Tt * H) * Np * (4 + cdt_bytes)
    acc = sub(Tt * Fout) * Np * 4
    return x_blk + out_blk + consts + r_tmp + ir_tmp + acc


def _choose_time_block(B, T, N, Fin, Fout, H, K, cdt_bytes, vmem_budget):
    """Largest divisor of T whose per-step footprint fits the budget while the
    grid keeps >= 2 total steps (so both v7x TensorCores get work)."""
    best = 1
    for tt in range(1, T + 1):
        if T % tt:
            continue
        if _block_vmem_bytes(tt, N, Fin, Fout, H, K, cdt_bytes) > vmem_budget:
            continue
        if B * T >= 2 and B * (T // tt) < 2:
            continue
        best = tt
    return best


def _run_pallas(x_blk, cheb_c, theta_bd, beta_bd, *, Tt, n_tblocks, N, Fin, Fout,
                H, K, B, out_dtype, compute_dtype, vmem_limit,
                single_buffer_consts):
    def const_spec(shape):
        kwargs = {}
        if single_buffer_consts:
            # Grid-invariant operands: disable double-buffering (halves VMEM).
            kwargs["pipeline_mode"] = pl.Buffered(1)
        return pl.BlockSpec(shape, lambda *_: (0,) * len(shape), **kwargs)

    kernel = functools.partial(_cheb_conv_kernel, K=K, compute_dtype=compute_dtype)
    return pl.pallas_call(
        kernel,
        out_shape=jax.ShapeDtypeStruct((B, n_tblocks, Tt * Fout, N), out_dtype),
        grid=(B, n_tblocks),
        in_specs=[
            pl.BlockSpec((1, 1, Tt * Fin, N), lambda b, tb: (b, tb, 0, 0)),
            const_spec((K, N, N)),
            const_spec((K, Tt * H, Tt * Fin)),
            const_spec((K, Tt * Fout, Tt * H)),
        ],
        out_specs=pl.BlockSpec((1, 1, Tt * Fout, N), lambda b, tb: (b, tb, 0, 0)),
        compiler_params=pltpu.CompilerParams(
            dimension_semantics=("parallel", "parallel"),
            vmem_limit_bytes=int(vmem_limit),
        ),
    )(x_blk, cheb_c, theta_bd, beta_bd)


def cheb_conv_forward(x, cheb_polynomials, theta, beta, *,
                      compute_dtype=jnp.bfloat16, time_block=None):
    """x: (B, N, Fin, T); cheb_polynomials: (K, N, N); theta: (K, Fin, H);
    beta: (K, H, Fout).  Returns (B, N, Fout, T), matching the PyTorch module."""
    B, N, Fin, T = x.shape
    K = cheb_polynomials.shape[0]
    H = theta.shape[-1]
    Fout = beta.shape[-1]

    cdt_bytes = np.dtype(compute_dtype).itemsize
    vmem_limit = _vmem_limit_bytes()
    Tt = time_block or _choose_time_block(B, T, N, Fin, Fout, H, K, cdt_bytes,
                                          vmem_budget=vmem_limit // 2)
    assert T % Tt == 0, "time_block must divide T"
    n_tblocks = T // Tt

    # --- Batch/time-invariant operand prep, hoisted out of the kernel ---------
    # MXU operands are cast to `compute_dtype` (bf16 by default) once, here.
    cheb_c = cheb_polynomials.astype(compute_dtype)              # (K, N, N)
    eye_t = jnp.eye(Tt, dtype=theta.dtype)
    # Block-diagonal per-timestep weights: fold the whole time block into single
    # big GEMMs while keeping N in the lane dimension throughout.
    theta_bd = (jnp.einsum("ts,kfh->kthsf", eye_t, theta)
                .reshape(K, Tt * H, Tt * Fin).astype(compute_dtype))
    beta_bd = (jnp.einsum("ts,khc->ktcsh", eye_t, beta)
               .reshape(K, Tt * Fout, Tt * H).astype(compute_dtype))

    # Single input layout pass: (B, N, Fin, T) -> (B, T//Tt, Tt*Fin, N) so every
    # kernel operand / intermediate / store is lane-dense along N.
    x_blk = (jnp.transpose(x, (0, 3, 2, 1))
             .reshape(B, n_tblocks, Tt * Fin, N).astype(compute_dtype))

    run = functools.partial(
        _run_pallas, x_blk, cheb_c, theta_bd, beta_bd, Tt=Tt,
        n_tblocks=n_tblocks, N=N, Fin=Fin, Fout=Fout, H=H, K=K, B=B,
        out_dtype=x.dtype, compute_dtype=compute_dtype, vmem_limit=vmem_limit)
    try:
        out_blk = run(single_buffer_consts=True)
    except Exception:
        # Older Pallas versions may reject pipeline_mode=Buffered(1); fall back.
        out_blk = run(single_buffer_consts=False)

    # (B, T//Tt, Tt*Fout, N) -> (B, T, Fout, N) -> (B, N, Fout, T).
    return jnp.transpose(out_blk.reshape(B, T, Fout, N), (0, 3, 2, 1))


def _reference(x, cheb, theta, beta):
    """Pure-JAX replica of the PyTorch forward (for verification)."""
    B, N, Fin, T = x.shape
    K = cheb.shape[0]
    outs = []
    for t in range(T):
        gs = x[:, :, :, t]                                   # (B, N, Fin)
        out = jnp.zeros((B, N, beta.shape[-1]), x.dtype)
        for k in range(K):
            rhs = jnp.einsum("nm,bnf->bmf", cheb[k], gs)     # T_k^T @ x_t
            ir = jax.nn.relu(rhs @ theta[k])                 # (B, N, H)
            out = out + ir @ beta[k]                         # (B, N, Fout)
        outs.append(out[..., None])
    return jnp.concatenate(outs, axis=-1)


if __name__ == "__main__":
    # Small deterministic configuration.
    B, N, Fin, T = 2, 16, 4, 8
    K, H = 3, 64
    Fout = Fin  # module's zero-init output buffer implies Fout == Fin

    key = jax.random.PRNGKey(0)
    kx, kadj = jax.random.split(key)

    x = jax.random.normal(kx, (B, N, Fin, T), dtype=jnp.float32)

    # Deterministic Chebyshev polynomials from a synthetic scaled Laplacian.
    a = jax.random.uniform(kadj, (N, N), dtype=jnp.float32)
    a = 0.5 * (a + a.T)
    d = jnp.diag(jnp.sum(a, axis=-1))
    lap = d - a
    l_tilde = 2.0 * lap / jnp.max(jnp.abs(jnp.linalg.eigvalsh(lap))) - jnp.eye(N)
    cheb_list = [jnp.eye(N, dtype=jnp.float32), l_tilde.astype(jnp.float32)]
    for _ in range(2, K):
        cheb_list.append(2.0 * l_tilde @ cheb_list[-1] - cheb_list[-2])
    cheb_polynomials = jnp.stack(cheb_list, axis=0)          # (K, N, N)

    # Parameters initialized exactly as the module does (torch.ones).
    theta = jnp.ones((K, Fin, H), dtype=jnp.float32)
    beta = jnp.ones((K, H, Fout), dtype=jnp.float32)

    ref = _reference(x, cheb_polynomials, theta, beta)

    # 1) f32 MXU-operand path: tight check against the f32 reference.
    out_f32 = jax.block_until_ready(
        cheb_conv_forward(x, cheb_polynomials, theta, beta,
                          compute_dtype=jnp.float32))
    assert out_f32.shape == (B, N, Fout, T)
    assert jnp.allclose(out_f32, ref, atol=1e-2, rtol=2e-3), "f32 mismatch"

    # 2) Default fast path (bf16 MXU operands, f32 accumulation): scaled check.
    out_bf16 = jax.block_until_ready(
        cheb_conv_forward(x, cheb_polynomials, theta, beta))
    assert out_bf16.shape == (B, N, Fout, T)
    scale = max(float(jnp.max(jnp.abs(ref))), 1.0)
    max_err = float(jnp.max(jnp.abs(out_bf16.astype(jnp.float32) - ref)))
    assert max_err <= 3e-2 * scale, f"bf16 mismatch: {max_err} vs scale {scale}"

    print("KERNEL_OK")
</pallas_src>

<mosaic_0001>
module attributes {stable_mosaic.version = 11 : i64} {
  func.func @_cheb_conv_kernel(%arg0: i32, %arg1: i32, %arg2: memref<1x1x32x16xf32, #tpu.memory_space<vmem>>, %arg3: memref<3x16x16xf32, #tpu.memory_space<vmem>>, %arg4: memref<3x512x32xf32, #tpu.memory_space<vmem>>, %arg5: memref<3x32x512xf32, #tpu.memory_space<vmem>>, %arg6: memref<1x1x32x16xf32, #tpu.memory_space<vmem>>) attributes {dimension_semantics = [#tpu.dimension_semantics<parallel>, #tpu.dimension_semantics<parallel>], iteration_bounds = array<i64: 2, 1>, scalar_prefetch = 0 : i64, scratch_operands = 0 : i64, tpu.core_type = #tpu.core_type<tc>, window_params = [{transform_indices = @transform_0, window_bounds = array<i64: 1, 1, 32, 16>}, {pipeline_mode = #tpu.pipeline_mode<synchronous>, transform_indices = @transform_1, window_bounds = array<i64: 3, 16, 16>}, {pipeline_mode = #tpu.pipeline_mode<synchronous>, transform_indices = @transform_2, window_bounds = array<i64: 3, 512, 32>}, {pipeline_mode = #tpu.pipeline_mode<synchronous>, transform_indices = @transform_3, window_bounds = array<i64: 3, 32, 512>}, {transform_indices = @transform_4, window_bounds = array<i64: 1, 1, 32, 16>}]} {
    %c0 = arith.constant 0 : index
    %c0_0 = arith.constant 0 : index
    %c0_1 = arith.constant 0 : index
    %c0_2 = arith.constant 0 : index
    %0 = vector.load %arg2[%c0, %c0_0, %c0_1, %c0_2] : memref<1x1x32x16xf32, #tpu.memory_space<vmem>>, vector<1x1x32x16xf32>
    %1 = vector.shape_cast %0 : vector<1x1x32x16xf32> to vector<32x16xf32>
    %c0_3 = arith.constant 0 : index
    %c0_4 = arith.constant 0 : index
    %c0_5 = arith.constant 0 : index
    %2 = vector.load %arg3[%c0_3, %c0_4, %c0_5] : memref<3x16x16xf32, #tpu.memory_space<vmem>>, vector<1x16x16xf32>
    %3 = vector.shape_cast %2 : vector<1x16x16xf32> to vector<16x16xf32>
    %cst = arith.constant dense<0.000000e+00> : vector<32x16xf32>
    %4 = tpu.matmul %1, %3, %cst {dimension_numbers = #tpu.dot_dimension_numbers<[1], [0], [0], [1], [0, 0, 1, 1], [], []>} : vector<32x16xf32>, vector<16x16xf32>, vector<32x16xf32> -> vector<32x16xf32>
    %c0_6 = arith.constant 0 : index
    %c0_7 = arith.constant 0 : index
    %c0_8 = arith.constant 0 : index
    %5 = vector.load %arg4[%c0_6, %c0_7, %c0_8] : memref<3x512x32xf32, #tpu.memory_space<vmem>>, vector<1x512x32xf32>
    %6 = vector.shape_cast %5 : vector<1x512x32xf32> to vector<512x32xf32>
    %cst_9 = arith.constant dense<0.000000e+00> : vector<512x16xf32>
    %7 = tpu.matmul %6, %4, %cst_9 {dimension_numbers = #tpu.dot_dimension_numbers<[1], [0], [0], [1], [0, 0, 1, 1], [], []>} : vector<512x32xf32>, vector<32x16xf32>, vector<512x16xf32> -> vector<512x16xf32>
    %cst_10 = arith.constant 0.000000e+00 : f32
    %8 = vector.broadcast %cst_10 : f32 to vector<512x16xf32>
    %9 = arith.maximumf %7, %8 : vector<512x16xf32>
    %c0_11 = arith.constant 0 : index
    %c0_12 = arith.constant 0 : index
    %c0_13 = arith.constant 0 : index
    %10 = vector.load %arg5[%c0_11, %c0_12, %c0_13] : memref<3x32x512xf32, #tpu.memory_space<vmem>>, vector<1x32x512xf32>
    %11 = vector.shape_cast %10 : vector<1x32x512xf32> to vector<32x512xf32>
    %cst_14 = arith.constant dense<0.000000e+00> : vector<32x16xf32>
    %12 = tpu.matmul %11, %9, %cst_14 {dimension_numbers = #tpu.dot_dimension_numbers<[1], [0], [0], [1], [0, 0, 1, 1], [], []>} : vector<32x512xf32>, vector<512x16xf32>, vector<32x16xf32> -> vector<32x16xf32>
    %c1 = arith.constant 1 : index
    %c0_15 = arith.constant 0 : index
    %c0_16 = arith.constant 0 : index
    %13 = vector.load %arg3[%c1, %c0_15, %c0_16] : memref<3x16x16xf32, #tpu.memory_space<vmem>>, vector<1x16x16xf32>
    %14 = vector.shape_cast %13 : vector<1x16x16xf32> to vector<16x16xf32>
    %cst_17 = arith.constant dense<0.000000e+00> : vector<32x16xf32>
    %15 = tpu.matmul %1, %14, %cst_17 {dimension_numbers = #tpu.dot_dimension_numbers<[1], [0], [0], [1], [0, 0, 1, 1], [], []>} : vector<32x16xf32>, vector<16x16xf32>, vector<32x16xf32> -> vector<32x16xf32>
    %c1_18 = arith.constant 1 : index
    %c0_19 = arith.constant 0 : index
    %c0_20 = arith.constant 0 : index
    %16 = vector.load %arg4[%c1_18, %c0_19, %c0_20] : memref<3x512x32xf32, #tpu.memory_space<vmem>>, vector<1x512x32xf32>
    %17 = vector.shape_cast %16 : vector<1x512x32xf32> to vector<512x32xf32>
    %cst_21 = arith.constant dense<0.000000e+00> : vector<512x16xf32>
    %18 = tpu.matmul %17, %15, %cst_21 {dimension_numbers = #tpu.dot_dimension_numbers<[1], [0], [0], [1], [0, 0, 1, 1], [], []>} : vector<512x32xf32>, vector<32x16xf32>, vector<512x16xf32> -> vector<512x16xf32>
    %cst_22 = arith.constant 0.000000e+00 : f32
    %19 = vector.broadcast %cst_22 : f32 to vector<512x16xf32>
    %20 = arith.maximumf %18, %19 : vector<512x16xf32>
    %c1_23 = arith.constant 1 : index
    %c0_24 = arith.constant 0 : index
    %c0_25 = arith.constant 0 : index
    %21 = vector.load %arg5[%c1_23, %c0_24, %c0_25] : memref<3x32x512xf32, #tpu.memory_space<vmem>>, vector<1x32x512xf32>
    %22 = vector.shape_cast %21 : vector<1x32x512xf32> to vector<32x512xf32>
    %cst_26 = arith.constant dense<0.000000e+00> : vector<32x16xf32>
    %23 = tpu.matmul %22, %20, %cst_26 {dimension_numbers = #tpu.dot_dimension_numbers<[1], [0], [0], [1], [0, 0, 1, 1], [], []>} : vector<32x512xf32>, vector<512x16xf32>, vector<32x16xf32> -> vector<32x16xf32>
    %24 = arith.addf %12, %23 : vector<32x16xf32>
    %c2 = arith.constant 2 : index
    %c0_27 = arith.constant 0 : index
    %c0_28 = arith.constant 0 : index
    %25 = vector.load %arg3[%c2, %c0_27, %c0_28] : memref<3x16x16xf32, #tpu.memory_space<vmem>>, vector<1x16x16xf32>
    %26 = vector.shape_cast %25 : vector<1x16x16xf32> to vector<16x16xf32>
    %cst_29 = arith.constant dense<0.000000e+00> : vector<32x16xf32>
    %27 = tpu.matmul %1, %26, %cst_29 {dimension_numbers = #tpu.dot_dimension_numbers<[1], [0], [0], [1], [0, 0, 1, 1], [], []>} : vector<32x16xf32>, vector<16x16xf32>, vector<32x16xf32> -> vector<32x16xf32>
    %c2_30 = arith.constant 2 : index
    %c0_31 = arith.constant 0 : index
    %c0_32 = arith.constant 0 : index
    %28 = vector.load %arg4[%c2_30, %c0_31, %c0_32] : memref<3x512x32xf32, #tpu.memory_space<vmem>>, vector<1x512x32xf32>
    %29 = vector.shape_cast %28 : vector<1x512x32xf32> to vector<512x32xf32>
    %cst_33 = arith.constant dense<0.000000e+00> : vector<512x16xf32>
    %30 = tpu.matmul %29, %27, %cst_33 {dimension_numbers = #tpu.dot_dimension_numbers<[1], [0], [0], [1], [0, 0, 1, 1], [], []>} : vector<512x32xf32>, vector<32x16xf32>, vector<512x16xf32> -> vector<512x16xf32>
    %cst_34 = arith.constant 0.000000e+00 : f32
    %31 = vector.broadcast %cst_34 : f32 to vector<512x16xf32>
    %32 = arith.maximumf %30, %31 : vector<512x16xf32>
    %c2_35 = arith.constant 2 : index
    %c0_36 = arith.constant 0 : index
    %c0_37 = arith.constant 0 : index
    %33 = vector.load %arg5[%c2_35, %c0_36, %c0_37] : memref<3x32x512xf32, #tpu.memory_space<vmem>>, vector<1x32x512xf32>
    %34 = vector.shape_cast %33 : vector<1x32x512xf32> to vector<32x512xf32>
    %cst_38 = arith.constant dense<0.000000e+00> : vector<32x16xf32>
    %35 = tpu.matmul %34, %32, %cst_38 {dimension_numbers = #tpu.dot_dimension_numbers<[1], [0], [0], [1], [0, 0, 1, 1], [], []>} : vector<32x512xf32>, vector<512x16xf32>, vector<32x16xf32> -> vector<32x16xf32>
    %36 = arith.addf %24, %35 : vector<32x16xf32>
    %c0_39 = arith.constant 0 : index
    %c0_40 = arith.constant 0 : index
    %c0_41 = arith.constant 0 : index
    %c0_42 = arith.constant 0 : index
    %37 = vector.load %arg6[%c0_39, %c0_40, %c0_41, %c0_42] : memref<1x1x32x16xf32, #tpu.memory_space<vmem>>, vector<1x1x32x16xf32>
    %38 = vector.shape_cast %37 : vector<1x1x32x16xf32> to vector<32x16xf32>
    %39 = vector.shape_cast %36 : vector<32x16xf32> to vector<1x1x32x16xf32>
    tpu.vector_store %arg6[%c0_39, %c0_40, %c0_41, %c0_42], %39 {strides = array<i32>} : memref<1x1x32x16xf32, #tpu.memory_space<vmem>>, vector<1x1x32x16xf32>,
    return
  }
  func.func @transform_0(%arg0: i32, %arg1: i32) -> (i32, i32, i32, i32) {
    %c0_i32 = arith.constant 0 : i32
    %c0_i32_0 = arith.constant 0 : i32
    %c0_i32_1 = arith.constant 0 : i32
    return %arg0, %arg1, %c0_i32, %c0_i32_0 : i32, i32, i32, i32
  }
  func.func @transform_1(%arg0: i32, %arg1: i32) -> (i32, i32, i32) {
    %c0_i32 = arith.constant 0 : i32
    %c0_i32_0 = arith.constant 0 : i32
    %c0_i32_1 = arith.constant 0 : i32
    %c0_i32_2 = arith.constant 0 : i32
    return %c0_i32, %c0_i32_0, %c0_i32_1 : i32, i32, i32
  }
  func.func @transform_2(%arg0: i32, %arg1: i32) -> (i32, i32, i32) {
    %c0_i32 = arith.constant 0 : i32
    %c0_i32_0 = arith.constant 0 : i32
    %c0_i32_1 = arith.constant 0 : i32
    %c0_i32_2 = arith.constant 0 : i32
    return %c0_i32, %c0_i32_0, %c0_i32_1 : i32, i32, i32
  }
  func.func @transform_3(%arg0: i32, %arg1: i32) -> (i32, i32, i32) {
    %c0_i32 = arith.constant 0 : i32
    %c0_i32_0 = arith.constant 0 : i32
    %c0_i32_1 = arith.constant 0 : i32
    %c0_i32_2 = arith.constant 0 : i32
    return %c0_i32, %c0_i32_0, %c0_i32_1 : i32, i32, i32
  }
  func.func @transform_4(%arg0: i32, %arg1: i32) -> (i32, i32, i32, i32) {
    %c0_i32 = arith.constant 0 : i32
    %c0_i32_0 = arith.constant 0 : i32
    %c0_i32_1 = arith.constant 0 : i32
    return %arg0, %arg1, %c0_i32, %c0_i32_0 : i32, i32, i32, i32
  }
}

module attributes {stable_mosaic.version = 11 : i64} {
  func.func @_cheb_conv_kernel(%arg0: i32, %arg1: i32, %arg2: memref<1x1x32x16xf32, #tpu.memory_space<vmem>>, %arg3: memref<3x16x16xf32, #tpu.memory_space<vmem>>, %arg4: memref<3x512x32xf32, #tpu.memory_space<vmem>>, %arg5: memref<3x32x512xf32, #tpu.memory_space<vmem>>, %arg6: memref<1x1x32x16xf32, #tpu.memory_space<vmem>>) attributes {dimension_semantics = [#tpu.dimension_semantics<parallel>, #tpu.dimension_semantics<parallel>], iteration_bounds = array<i64: 2, 1>, scalar_prefetch = 0 : i64, scratch_operands = 0 : i64, tpu.core_type = #tpu.core_type<tc>, window_params = [{transform_indices = @transform_0, window_bounds = array<i64: 1, 1, 32, 16>}, {pipeline_mode = #tpu.pipeline_mode<synchronous>, transform_indices = @transform_1, window_bounds = array<i64: 3, 16, 16>}, {pipeline_mode = #tpu.pipeline_mode<synchronous>, transform_indices = @transform_2, window_bounds = array<i64: 3, 512, 32>}, {pipeline_mode = #tpu.pipeline_mode<synchronous>, transform_indices = @transform_3, window_bounds = array<i64: 3, 32, 512>}, {transform_indices = @transform_4, window_bounds = array<i64: 1, 1, 32, 16>}]} {
    %c0 = arith.constant 0 : index
    %c0_0 = arith.constant 0 : index
    %c0_1 = arith.constant 0 : index
    %c0_2 = arith.constant 0 : index
    %0 = vector.load %arg2[%c0, %c0_0, %c0_1, %c0_2] : memref<1x1x32x16xf32, #tpu.memory_space<vmem>>, vector<1x1x32x16xf32>
    %1 = vector.shape_cast %0 : vector<1x1x32x16xf32> to vector<32x16xf32>
    %c0_3 = arith.constant 0 : index
    %c0_4 = arith.constant 0 : index
    %c0_5 = arith.constant 0 : index
    %2 = vector.load %arg3[%c0_3, %c0_4, %c0_5] : memref<3x16x16xf32, #tpu.memory_space<vmem>>, vector<1x16x16xf32>
    %3 = vector.shape_cast %2 : vector<1x16x16xf32> to vector<16x16xf32>
    %cst = arith.constant dense<0.000000e+00> : vector<32x16xf32>
    %4 = tpu.matmul %1, %3, %cst {dimension_numbers = #tpu.dot_dimension_numbers<[1], [0], [0], [1], [0, 0, 1, 1], [], []>} : vector<32x16xf32>, vector<16x16xf32>, vector<32x16xf32> -> vector<32x16xf32>
    %c0_6 = arith.constant 0 : index
    %c0_7 = arith.constant 0 : index
    %c0_8 = arith.constant 0 : index
    %5 = vector.load %arg4[%c0_6, %c0_7, %c0_8] : memref<3x512x32xf32, #tpu.memory_space<vmem>>, vector<1x512x32xf32>
    %6 = vector.shape_cast %5 : vector<1x512x32xf32> to vector<512x32xf32>
    %cst_9 = arith.constant dense<0.000000e+00> : vector<512x16xf32>
    %7 = tpu.matmul %6, %4, %cst_9 {dimension_numbers = #tpu.dot_dimension_numbers<[1], [0], [0], [1], [0, 0, 1, 1], [], []>} : vector<512x32xf32>, vector<32x16xf32>, vector<512x16xf32> -> vector<512x16xf32>
    %cst_10 = arith.constant 0.000000e+00 : f32
    %8 = vector.broadcast %cst_10 : f32 to vector<512x16xf32>
    %9 = arith.maximumf %7, %8 : vector<512x16xf32>
    %c0_11 = arith.constant 0 : index
    %c0_12 = arith.constant 0 : index
    %c0_13 = arith.constant 0 : index
    %10 = vector.load %arg5[%c0_11, %c0_12, %c0_13] : memref<3x32x512xf32, #tpu.memory_space<vmem>>, vector<1x32x512xf32>
    %11 = vector.shape_cast %10 : vector<1x32x512xf32> to vector<32x512xf32>
    %cst_14 = arith.constant dense<0.000000e+00> : vector<32x16xf32>
    %12 = tpu.matmul %11, %9, %cst_14 {dimension_numbers = #tpu.dot_dimension_numbers<[1], [0], [0], [1], [0, 0, 1, 1], [], []>} : vector<32x512xf32>, vector<512x16xf32>, vector<32x16xf32> -> vector<32x16xf32>
    %c1 = arith.constant 1 : index
    %c0_15 = arith.constant 0 : index
    %c0_16 = arith.constant 0 : index
    %13 = vector.load %arg3[%c1, %c0_15, %c0_16] : memref<3x16x16xf32, #tpu.memory_space<vmem>>, vector<1x16x16xf32>
    %14 = vector.shape_cast %13 : vector<1x16x16xf32> to vector<16x16xf32>
    %cst_17 = arith.constant dense<0.000000e+00> : vector<32x16xf32>
    %15 = tpu.matmul %1, %14, %cst_17 {dimension_numbers = #tpu.dot_dimension_numbers<[1], [0], [0], [1], [0, 0, 1, 1], [], []>} : vector<32x16xf32>, vector<16x16xf32>, vector<32x16xf32> -> vector<32x16xf32>
    %c1_18 = arith.constant 1 : index
    %c0_19 = arith.constant 0 : index
    %c0_20 = arith.constant 0 : index
    %16 = vector.load %arg4[%c1_18, %c0_19, %c0_20] : memref<3x512x32xf32, #tpu.memory_space<vmem>>, vector<1x512x32xf32>
    %17 = vector.shape_cast %16 : vector<1x512x32xf32> to vector<512x32xf32>
    %cst_21 = arith.constant dense<0.000000e+00> : vector<512x16xf32>
    %18 = tpu.matmul %17, %15, %cst_21 {dimension_numbers = #tpu.dot_dimension_numbers<[1], [0], [0], [1], [0, 0, 1, 1], [], []>} : vector<512x32xf32>, vector<32x16xf32>, vector<512x16xf32> -> vector<512x16xf32>
    %cst_22 = arith.constant 0.000000e+00 : f32
    %19 = vector.broadcast %cst_22 : f32 to vector<512x16xf32>
    %20 = arith.maximumf %18, %19 : vector<512x16xf32>
    %c1_23 = arith.constant 1 : index
    %c0_24 = arith.constant 0 : index
    %c0_25 = arith.constant 0 : index
    %21 = vector.load %arg5[%c1_23, %c0_24, %c0_25] : memref<3x32x512xf32, #tpu.memory_space<vmem>>, vector<1x32x512xf32>
    %22 = vector.shape_cast %21 : vector<1x32x512xf32> to vector<32x512xf32>
    %cst_26 = arith.constant dense<0.000000e+00> : vector<32x16xf32>
    %23 = tpu.matmul %22, %20, %cst_26 {dimension_numbers = #tpu.dot_dimension_numbers<[1], [0], [0], [1], [0, 0, 1, 1], [], []>} : vector<32x512xf32>, vector<512x16xf32>, vector<32x16xf32> -> vector<32x16xf32>
    %24 = arith.addf %12, %23 : vector<32x16xf32>
    %c2 = arith.constant 2 : index
    %c0_27 = arith.constant 0 : index
    %c0_28 = arith.constant 0 : index
    %25 = vector.load %arg3[%c2, %c0_27, %c0_28] : memref<3x16x16xf32, #tpu.memory_space<vmem>>, vector<1x16x16xf32>
    %26 = vector.shape_cast %25 : vector<1x16x16xf32> to vector<16x16xf32>
    %cst_29 = arith.constant dense<0.000000e+00> : vector<32x16xf32>
    %27 = tpu.matmul %1, %26, %cst_29 {dimension_numbers = #tpu.dot_dimension_numbers<[1], [0], [0], [1], [0, 0, 1, 1], [], []>} : vector<32x16xf32>, vector<16x16xf32>, vector<32x16xf32> -> vector<32x16xf32>
    %c2_30 = arith.constant 2 : index
    %c0_31 = arith.constant 0 : index
    %c0_32 = arith.constant 0 : index
    %28 = vector.load %arg4[%c2_30, %c0_31, %c0_32] : memref<3x512x32xf32, #tpu.memory_space<vmem>>, vector<1x512x32xf32>
    %29 = vector.shape_cast %28 : vector<1x512x32xf32> to vector<512x32xf32>
    %cst_33 = arith.constant dense<0.000000e+00> : vector<512x16xf32>
    %30 = tpu.matmul %29, %27, %cst_33 {dimension_numbers = #tpu.dot_dimension_numbers<[1], [0], [0], [1], [0, 0, 1, 1], [], []>} : vector<512x32xf32>, vector<32x16xf32>, vector<512x16xf32> -> vector<512x16xf32>
    %cst_34 = arith.constant 0.000000e+00 : f32
    %31 = vector.broadcast %cst_34 : f32 to vector<512x16xf32>
    %32 = arith.maximumf %30, %31 : vector<512x16xf32>
    %c2_35 = arith.constant 2 : index
    %c0_36 = arith.constant 0 : index
    %c0_37 = arith.constant 0 : index
    %33 = vector.load %arg5[%c2_35, %c0_36, %c0_37] : memref<3x32x512xf32, #tpu.memory_space<vmem>>, vector<1x32x512xf32>
    %34 = vector.shape_cast %33 : vector<1x32x512xf32> to vector<32x512xf32>
    %cst_38 = arith.constant dense<0.000000e+00> : vector<32x16xf32>
    %35 = tpu.matmul %34, %32, %cst_38 {dimension_numbers = #tpu.dot_dimension_numbers<[1], [0], [0], [1], [0, 0, 1, 1], [], []>} : vector<32x512xf32>, vector<512x16xf32>, vector<32x16xf32> -> vector<32x16xf32>
    %36 = arith.addf %24, %35 : vector<32x16xf32>
    %c0_39 = arith.constant 0 : index
    %c0_40 = arith.constant 0 : index
    %c0_41 = arith.constant 0 : index
    %c0_42 = arith.constant 0 : index
    %37 = vector.load %arg6[%c0_39, %c0_40, %c0_41, %c0_42] : memref<1x1x32x16xf32, #tpu.memory_space<vmem>>, vector<1x1x32x16xf32>
    %38 = vector.shape_cast %37 : vector<1x1x32x16xf32> to vector<32x16xf32>
    %39 = vector.shape_cast %36 : vector<32x16xf32> to vector<1x1x32x16xf32>
    tpu.vector_store %arg6[%c0_39, %c0_40, %c0_41, %c0_42], %39 {strides = array<i32>} : memref<1x1x32x16xf32, #tpu.memory_space<vmem>>, vector<1x1x32x16xf32>,
    return
  }
  func.func @transform_0(%arg0: i32, %arg1: i32) -> (i32, i32, i32, i32) {
    %c0_i32 = arith.constant 0 : i32
    %c0_i32_0 = arith.constant 0 : i32
    %c0_i32_1 = arith.constant 0 : i32
    return %arg0, %arg1, %c0_i32, %c0_i32_0 : i32, i32, i32, i32
  }
  func.func @transform_1(%arg0: i32, %arg1: i32) -> (i32, i32, i32) {
    %c0_i32 = arith.constant 0 : i32
    %c0_i32_0 = arith.constant 0 : i32
    %c0_i32_1 = arith.constant 0 : i32
    %c0_i32_2 = arith.constant 0 : i32
    return %c0_i32, %c0_i32_0, %c0_i32_1 : i32, i32, i32
  }
  func.func @transform_2(%arg0: i32, %arg1: i32) -> (i32, i32, i32) {
    %c0_i32 = arith.constant 0 : i32
    %c0_i32_0 = arith.constant 0 : i32
    %c0_i32_1 = arith.constant 0 : i32
    %c0_i32_2 = arith.constant 0 : i32
    return %c0_i32, %c0_i32_0, %c0_i32_1 : i32, i32, i32
  }
  func.func @transform_3(%arg0: i32, %arg1: i32) -> (i32, i32, i32) {
    %c0_i32 = arith.constant 0 : i32
    %c0_i32_0 = arith.constant 0 : i32
    %c0_i32_1 = arith.constant 0 : i32
    %c0_i32_2 = arith.constant 0 : i32
    return %c0_i32, %c0_i32_0, %c0_i32_1 : i32, i32, i32
  }
  func.func @transform_4(%arg0: i32, %arg1: i32) -> (i32, i32, i32, i32) {
    %c0_i32 = arith.constant 0 : i32
    %c0_i32_0 = arith.constant 0 : i32
    %c0_i32_1 = arith.constant 0 : i32
    return %arg0, %arg1, %c0_i32, %c0_i32_0 : i32, i32, i32, i32
  }
}

</mosaic_0001>

<llo_original>
// kernel: tpu_custom_call.1
$region0: #{tpu_custom_call.1}
  #allocation0 [shape = 'u32[]', space=smem, size = 0x4, offset = 0x4, fixed_abs, tag = 'smem constant byte address 0x4 - core index']
  #allocation1 [shape = 'u32[144,128]{1,0:T(1,128)}', space=vmem, size = 0x12000, scoped, tag = 'internal scratch']
  %s0 = inlined_call_operand.vmem [shape: f32[2,1,32,16], index: 0, kind: input, shape index: {}]
  %s1 = inlined_call_operand.vmem [shape: f32[3,16,16], index: 1, kind: input, shape index: {}]
  %s2 = inlined_call_operand.vmem [shape: f32[3,512,32], index: 2, kind: input, shape index: {}]
  %s3 = inlined_call_operand.vmem [shape: f32[3,32,512], index: 3, kind: input, shape index: {}]
  %s4 = inlined_call_operand.vmem [shape: f32[2,1,32,16], index: 4, kind: output, shape index: {}]
  %s5 = sld [smem:[#allocation0]]
  $region49: #{tpu_custom_call.1} parent=0
    _
  %s7 = ssub.s32 1, %s5
  %s8 = scalar_select 0, %s7, %s5
  loop: start=0, step=1, limit=4
  $region2: #{tpu_custom_call.1} parent=0 // loop_pre_header
    _
  $region3: #{tpu_custom_call.1} parent=0 // loop_header
    %s10 = sphi 0, %s14
    %p11 = scmp.ge.s32.totalorder %s10, 4
    %s17 = sphi 0, %s29
    %s18 = sphi 0, %s25
    %s19 = sphi 0, %s17
    %s20 = sphi 0, %s18
    %s21 = sphi 0, %s19
    %s22 = sphi 0, %s20
    %s34 = sphi 0, %s36
    %s37 = sphi 0, %s34
    %s38 = sphi 0, %s37
    %s54 = sphi 0, %s38
    %s58 = sphi 0, %s58
    %s60 = sphi 0, %s58
    %s61 = sphi 0, %s60
    %s75 = sphi 0, %s61
    %s79 = sphi 0, %s79
    %s81 = sphi 0, %s79
    %s82 = sphi 0, %s81
    %s96 = sphi 0, %s82
    %s100 = sphi 0, %s100
    %s102 = sphi 0, %s100
    %s103 = sphi 0, %s102
    %s117 = sphi 0, %s103
    %s125 = sphi 0, %s127
    %s128 = sphi 0, %s125
    %s129 = sphi 0, %s128
    %s145 = sphi 0, %s129
  $region4: #{tpu_custom_call.1} parent=0 // loop_header_branch
    %13 = sbr.rel (%p11) target = $region8
  $region5: #{tpu_custom_call.1} parent=0 // loop_body
    %s15 = ssub.s32 %s10, 1
    %s16 = ssub.s32 %s10, 2
    %s23 = sadd.s32 1, %s18
    %p24 = scmp.ge.s32.totalorder %s23, 1
    %s25 = scalar_select %p24, 0, %s23
    %s26 = sadd.s32 1, %s17
    %s27 = scalar_select %p24, %s26, %s17
    %p28 = scmp.ge.s32.totalorder %s27, 2
    %s29 = scalar_select %p28, 0, %s27
    %s30 = ssub.s32 %s17, %s29
    %s31 = ssub.s32 %s18, %s25
    %s32 = sor.u32 %s30, %s31
    %p33 = scmp.eq.s32.totalorder %s32, 0
    %s35 = sadd.s32 %s34, 1
    %s36 = scalar_select %p33, %s34, %s35
    %p39 = pneg %p33
    %p40 = scmp.eq.s32.totalorder %s10, 1
    %p41 = por %p39, %p40
    %p42 = scmp.ne.s32.totalorder %s34, %s37
    %p43 = scmp.eq.s32.totalorder %s10, 0
    %p44 = por %p42, %p43
    %p45 = scmp.ne.s32.totalorder %s34, %s37
    %p46 = scmp.eq.s32.totalorder %s15, 1
    %p47 = por %p45, %p46
    %p48 = scmp.ne.s32.totalorder %s37, %s38
    %p49 = scmp.eq.s32.totalorder %s15, 0
    %p50 = por %p48, %p49
    %p51 = scmp.ne.s32.totalorder %s37, %s38
    %p52 = scmp.eq.s32.totalorder %s16, 1
    %p53 = por %p51, %p52
    %p55 = scmp.ne.s32.totalorder %s38, %s54
    %p56 = scmp.eq.s32.totalorder %s16, 0
    %p57 = por %p55, %p56
    %s59 = sadd.s32 %s58, 1
    %p62 = scmp.eq.s32.totalorder %s10, 1
    %p63 = scmp.ne.s32.totalorder %s58, %s60
    %p64 = scmp.eq.s32.totalorder %s10, 0
    %p65 = por %p63, %p64
    %p66 = scmp.ne.s32.totalorder %s58, %s60
    %p67 = scmp.eq.s32.totalorder %s15, 1
    %p68 = por %p66, %p67
    %p69 = scmp.ne.s32.totalorder %s60, %s61
    %p70 = scmp.eq.s32.totalorder %s15, 0
    %p71 = por %p69, %p70
    %p72 = scmp.ne.s32.totalorder %s60, %s61
    %p73 = scmp.eq.s32.totalorder %s16, 1
    %p74 = por %p72, %p73
    %p76 = scmp.ne.s32.totalorder %s61, %s75
    %p77 = scmp.eq.s32.totalorder %s16, 0
    %p78 = por %p76, %p77
    %s80 = sadd.s32 %s79, 1
    %p83 = scmp.eq.s32.totalorder %s10, 1
    %p84 = scmp.ne.s32.totalorder %s79, %s81
    %p85 = scmp.eq.s32.totalorder %s10, 0
    %p86 = por %p84, %p85
    %p87 = scmp.ne.s32.totalorder %s79, %s81
    %p88 = scmp.eq.s32.totalorder %s15, 1
    %p89 = por %p87, %p88
    %p90 = scmp.ne.s32.totalorder %s81, %s82
    %p91 = scmp.eq.s32.totalorder %s15, 0
    %p92 = por %p90, %p91
    %p93 = scmp.ne.s32.totalorder %s81, %s82
    %p94 = scmp.eq.s32.totalorder %s16, 1
    %p95 = por %p93, %p94
    %p97 = scmp.ne.s32.totalorder %s82, %s96
    %p98 = scmp.eq.s32.totalorder %s16, 0
    %p99 = por %p97, %p98
    %s101 = sadd.s32 %s100, 1
    %p104 = scmp.eq.s32.totalorder %s10, 1
    %p105 = scmp.ne.s32.totalorder %s100, %s102
    %p106 = scmp.eq.s32.totalorder %s10, 0
    %p107 = por %p105, %p106
    %p108 = scmp.ne.s32.totalorder %s100, %s102
    %p109 = scmp.eq.s32.totalorder %s15, 1
    %p110 = por %p108, %p109
    %p111 = scmp.ne.s32.totalorder %s102, %s103
    %p112 = scmp.eq.s32.totalorder %s15, 0
    %p113 = por %p111, %p112
    %p114 = scmp.ne.s32.totalorder %s102, %s103
    %p115 = scmp.eq.s32.totalorder %s16, 1
    %p116 = por %p114, %p115
    %p118 = scmp.ne.s32.totalorder %s103, %s117
    %p119 = scmp.eq.s32.totalorder %s16, 0
    %p120 = por %p118, %p119
    %s121 = ssub.s32 %s17, %s29
    %s122 = ssub.s32 %s18, %s25
    %s123 = sor.u32 %s121, %s122
    %p124 = scmp.eq.s32.totalorder %s123, 0
    %s126 = sadd.s32 %s125, 1
    %s127 = scalar_select %p124, %s125, %s126
    %p130 = pneg %p124
    %p131 = scmp.eq.s32.totalorder %s10, 1
    %p132 = por %p130, %p131
    %p133 = scmp.ne.s32.totalorder %s125, %s128
    %p134 = scmp.eq.s32.totalorder %s10, 0
    %p135 = por %p133, %p134
    %p136 = scmp.ne.s32.totalorder %s125, %s128
    %p137 = scmp.eq.s32.totalorder %s15, 1
    %p138 = por %p136, %p137
    %p139 = scmp.ne.s32.totalorder %s128, %s129
    %p140 = scmp.eq.s32.totalorder %s15, 0
    %p141 = por %p139, %p140
    %p142 = scmp.ne.s32.totalorder %s128, %s129
    %p143 = scmp.eq.s32.totalorder %s16, 1
    %p144 = por %p142, %p143
    %p146 = scmp.ne.s32.totalorder %s129, %s145
    %p147 = scmp.eq.s32.totalorder %s16, 0
    %p148 = por %p146, %p147
    %p149 = scmp.le.s32.totalorder 1, %s10
    %p150 = scmp.lt.s32.totalorder %s10, 3
    %p151 = pnand %p149, %p150
    %p152 = pneg %p151
    // Predicated region
    $region9: #{tpu_custom_call.1} parent=5 // pred_check
      _
    $region10: #{tpu_custom_call.1} parent=5 // pred_check_branch
      %154 = sbr.rel (%p151) target = $region12
    $region11: #{tpu_custom_call.1} parent=5 // pred_region
      %s155 = ssub.s32 %s10, 1
      // Predicated region
      $region13: #{tpu_custom_call.1} parent=11 // pred_check
        %p156 = pneg %p71
      $region14: #{tpu_custom_call.1} parent=11 // pred_check_branch
        %158 = sbr.rel (%p156) target = $region16
      $region15: #{tpu_custom_call.1} parent=11 // pred_region
        _
      $region16: #{tpu_custom_call.1} parent=11 // pred_fallthru
        _
      // Predicated region
      $region17: #{tpu_custom_call.1} parent=11 // pred_check
        %p159 = pneg %p92
      $region18: #{tpu_custom_call.1} parent=11 // pred_check_branch
        %161 = sbr.rel (%p159) target = $region20
      $region19: #{tpu_custom_call.1} parent=11 // pred_region
        _
      $region20: #{tpu_custom_call.1} parent=11 // pred_fallthru
        _
      // Predicated region
      $region21: #{tpu_custom_call.1} parent=11 // pred_check
        %p162 = pneg %p113
      $region22: #{tpu_custom_call.1} parent=11 // pred_check_branch
        %164 = sbr.rel (%p162) target = $region24
      $region23: #{tpu_custom_call.1} parent=11 // pred_region
        _
      $region24: #{tpu_custom_call.1} parent=11 // pred_fallthru
        _
    $region12: #{tpu_custom_call.1} parent=5 // pred_fallthru
      _
    %p165 = scmp.lt.s32.totalorder %s10, 2
    // Predicated region
    $region25: #{tpu_custom_call.1} parent=5 // pred_check
      %p166 = pneg %p165
    $region26: #{tpu_custom_call.1} parent=5 // pred_check_branch
      %168 = sbr.rel (%p166) target = $region28
    $region27: #{tpu_custom_call.1} parent=5 // pred_region
      // Predicated region
      $region29: #{tpu_custom_call.1} parent=27 // pred_check
        %p169 = pneg %p44
      $region30: #{tpu_custom_call.1} parent=27 // pred_check_branch
        %171 = sbr.rel (%p169) target = $region32
      $region31: #{tpu_custom_call.1} parent=27 // pred_region
        %p172 = scmp.lt.s32.totalorder %s17, 1
        %s173 = scalar_select %p172, %s17, 1
        %p174 = scmp.lt.s32.totalorder %s18, 0
        %s175 = scalar_select %p174, %s18, 0
        %s176 = smul.addr %s175, 4
        %s177 = smul.addr %s173, 4
        %s178 = sadd.s32 %s176, %s177
        %s179 = smul.addr %s178, 8
        %s180 = scalar_lea.vmem %s0, %s179
      $region32: #{tpu_custom_call.1} parent=27 // pred_fallthru
        _
    $region28: #{tpu_custom_call.1} parent=5 // pred_fallthru
      _
    %p181 = scmp.le.s32.totalorder 1, %s10
    %p182 = scmp.lt.s32.totalorder %s10, 3
    %p183 = pnand %p181, %p182
    %p184 = pneg %p183
    // Predicated region
    $region33: #{tpu_custom_call.1} parent=5 // pred_check
      _
    $region34: #{tpu_custom_call.1} parent=5 // pred_check_branch
      %186 = sbr.rel (%p183) target = $region36
    $region35: #{tpu_custom_call.1} parent=5 // pred_region
      %s187 = ssub.s32 %s10, 1
      %p188 = scmp.lt.s32.totalorder %s19, 1
      %s189 = scalar_select %p188, %s19, 1
      %p190 = scmp.lt.s32.totalorder %s20, 0
      %s191 = scalar_select %p190, %s20, 0
      %s192 = smul.addr %s191, 4
      %s193 = smul.addr %s189, 4
      %s194 = sadd.s32 %s192, %s193
      %s195 = smul.addr %s194, 8
      %s196 = scalar_lea.vmem %s0, %s195
      %p197 = pneg %p50
      %p198 = pneg %p47
      %p199 = pneg %p71
      %p200 = pneg %p68
      %p201 = pneg %p92
      %p202 = pneg %p89
      %p203 = pneg %p113
      %p204 = pneg %p110
      %p205 = pneg %p141
      %p206 = pneg %p138
      %p207 = scmp.lt.s32.totalorder %s19, 1
      %s208 = scalar_select %p207, %s19, 1
      %p209 = scmp.lt.s32.totalorder %s20, 0
      %s210 = scalar_select %p209, %s20, 0
      %s211 = smul.addr %s210, 4
      %s212 = smul.addr %s208, 4
      %s213 = sadd.s32 %s211, %s212
      %s214 = smul.addr %s213, 8
      %s215 = scalar_lea.vmem %s4, %s214
      %p216 = scmp.lt.s32.totalorder %s19, 1
      %s217 = scalar_select %p216, %s19, 1
      %p218 = scmp.lt.s32.totalorder %s20, 0
      %s219 = scalar_select %p218, %s20, 0
      %s220 = smul.addr %s219, 4
      %s221 = smul.addr %s217, 4
      %s222 = sadd.s32 %s220, %s221
      %s223 = smul.addr %s222, 8
      %s224 = scalar_lea.vmem %s0, %s223
      %p225 = scmp.lt.s32.totalorder %s19, 1
      %s226 = scalar_select %p225, %s19, 1
      %p227 = scmp.lt.s32.totalorder %s20, 0
      %s228 = scalar_select %p227, %s20, 0
      %s229 = smul.addr %s228, 4
      %s230 = smul.addr %s226, 4
      %s231 = sadd.s32 %s229, %s230
      %s232 = smul.addr %s231, 8
      %s233 = scalar_lea.vmem %s4, %s232
      %v234 = vld [vmem:[%s224] sm:$0xff]
      %v235 = vld [vmem:[%s224 + $0x8] sm:$0xff]
      %v236 = vld [vmem:[%s224 + $0x10] sm:$0xff]
      %v237 = vld [vmem:[%s224 + $0x18] sm:$0xff]
      %v238 = vld [vmem:[%s1] sm:$0xff]
      %v239 = vld [vmem:[%s1 + $0x8] sm:$0xff]
      %vm240 = vcmask 130048
      %v242 = vsel %vm240, %v234, 0
      %v245 = vsel %vm240, %v235, 0
      %v248 = vsel %vm240, %v236, 0
      %v251 = vsel %vm240, %v237, 0
      %253 = vmatprep.subr.mxu0 0.0
      %254 = vmatpush1.msra.mxu0 %v238
      %255 = vmatprep.subr.mxu0 0.0
      %256 = vmatpush1.msra.mxu0 %v239
      %257 = vmatprep.subr.mxu0 0.0
      %258 = vmatpush1.msra.mxu0 0.0
      %259 = vmatprep.subr.mxu0 0.0
      %260 = vmatpush1.msra.mxu0 0.0
      %261 = vmatprep.subr.mxu0 0.0
      %262 = vmatpush1.msra.mxu0 0.0
      %263 = vmatprep.subr.mxu0 0.0
      %264 = vmatpush1.msra.mxu0 0.0
      %265 = vmatprep.subr.mxu0 0.0
      %266 = vmatpush1.msra.mxu0 0.0
      %267 = vmatprep.subr.mxu0 0.0
      %268 = vmatpush1.msra.mxu0 0.0
      %269 = vmatprep.subr.mxu0 0.0
      %270 = vmatpush1.msra.mxu0 0.0
      %271 = vmatprep.subr.mxu0 0.0
      %272 = vmatpush1.msra.mxu0 0.0
      %273 = vmatprep.subr.mxu0 0.0
      %274 = vmatpush1.msra.mxu0 0.0
      %275 = vmatprep.subr.mxu0 0.0
      %276 = vmatpush1.msra.mxu0 0.0
      %277 = vmatprep.subr.mxu0 0.0
      %278 = vmatpush1.msra.mxu0 0.0
      %279 = vmatprep.subr.mxu0 0.0
      %280 = vmatpush1.msra.mxu0 0.0
      %281 = vmatprep.subr.mxu0 0.0
      %282 = vmatpush1.msra.mxu0 0.0
      %283 = vmatprep.subr.mxu0 0.0
      %284 = vmatpush1.msra.mxu0 0.0
      %285 = vmatprep.subr.mxu0 0.0
      %286 = vmatpush1.msra.mxu0 0.0
      %287 = vmatprep.subr.mxu0 0.0
      %288 = vmatpush1.msra.mxu0 0.0
      %289 = vmatprep.subr.mxu0 0.0
      %290 = vmatpush1.msra.mxu0 0.0
      %291 = vmatprep.subr.mxu0 0.0
      %292 = vmatpush1.msra.mxu0 0.0
      %293 = vmatprep.subr.mxu0 0.0
      %294 = vmatpush1.msra.mxu0 0.0
      %295 = vmatprep.subr.mxu0 0.0
      %296 = vmatpush1.msra.mxu0 0.0
      %297 = vmatprep.subr.mxu0 0.0
      %298 = vmatpush1.msra.mxu0 0.0
      %299 = vmatprep.subr.mxu0 0.0
      %300 = vmatpush1.msra.mxu0 0.0
      %301 = vmatprep.subr.mxu0 0.0
      %302 = vmatpush1.msra.mxu0 0.0
      %303 = vmatprep.subr.mxu0 0.0
      %304 = vmatpush1.msra.mxu0 0.0
      %305 = vmatprep.subr.mxu0 0.0
      %306 = vmatpush1.msra.mxu0 0.0
      %307 = vmatprep.subr.mxu0 0.0
      %308 = vmatpush1.msra.mxu0 0.0
      %309 = vmatprep.subr.mxu0 0.0
      %310 = vmatpush1.msra.mxu0 0.0
      %311 = vmatprep.subr.mxu0 0.0
      %312 = vmatpush1.msra.mxu0 0.0
      %313 = vmatprep.subr.mxu0 0.0
      %314 = vmatpush1.msra.mxu0 0.0
      %315 = vmatprep.subr.mxu0 0.0
      %316 = vmatpush1.msra.mxu0 0.0
      %317 = vmatprep.mubr.f32.mxu0 0.0
      %318 = vmatmul.mubr.f32.gmra.mrb[0].mxu0 %v242
      %v319 = vpop.f32.mrb[0].mxu0
      %v320 = vadd.f32 0.0, %v319
      %v321 = vpop.f32.mrb[0].mxu0
      %322 = vmatprep.mubr.f32.mxu0 0.0
      %323 = vmatmul.mubr.f32.gmra.mrb[0].mxu0 %v245
      %v324 = vpop.f32.mrb[0].mxu0
      %v325 = vadd.f32 0.0, %v324
      %v326 = vpop.f32.mrb[0].mxu0
      %327 = vmatprep.mubr.f32.mxu0 0.0
      %328 = vmatmul.mubr.f32.gmra.mrb[0].mxu0 %v248
      %v329 = vpop.f32.mrb[0].mxu0
      %v330 = vadd.f32 0.0, %v329
      %v331 = vpop.f32.mrb[0].mxu0
      %332 = vmatprep.mubr.f32.mxu0 0.0
      %333 = vmatmul.mubr.f32.gmra.mrb[0].mxu0 %v251
      %v334 = vpop.f32.mrb[0].mxu0
      %v335 = vadd.f32 0.0, %v334
      %v336 = vpop.f32.mrb[0].mxu0
      %337 = vdwg.mxu0
      %v338 = vld [vmem:[%s2] sm:$0xff]
      %v339 = vld [vmem:[%s2 + $0x8] sm:$0xff]
      %v340 = vld [vmem:[%s2 + $0x10] sm:$0xff]
      %v341 = vld [vmem:[%s2 + $0x18] sm:$0xff]
      %v342 = vld [vmem:[%s2 + $0x20] sm:$0xff]
      %v343 = vld [vmem:[%s2 + $0x28] sm:$0xff]
      %v344 = vld [vmem:[%s2 + $0x30] sm:$0xff]
      %v345 = vld [vmem:[%s2 + $0x38] sm:$0xff]
      %v346 = vld [vmem:[%s2 + $0x40] sm:$0xff]
      %v347 = vld [vmem:[%s2 + $0x48] sm:$0xff]
      %v348 = vld [vmem:[%s2 + $0x50] sm:$0xff]
      %v349 = vld [vmem:[%s2 + $0x58] sm:$0xff]
      %v350 = vld [vmem:[%s2 + $0x60] sm:$0xff]
      %v351 = vld [vmem:[%s2 + $0x68] sm:$0xff]
      %v352 = vld [vmem:[%s2 + $0x70] sm:$0xff]
      %v353 = vld [vmem:[%s2 + $0x78] sm:$0xff]
      %v354 = vld [vmem:[%s2 + $0x80] sm:$0xff]
      %v355 = vld [vmem:[%s2 + $0x88] sm:$0xff]
      %v356 = vld [vmem:[%s2 + $0x90] sm:$0xff]
      %v357 = vld [vmem:[%s2 + $0x98] sm:$0xff]
      %v358 = vld [vmem:[%s2 + $0xa0] sm:$0xff]
      %v359 = vld [vmem:[%s2 + $0xa8] sm:$0xff]
      %v360 = vld [vmem:[%s2 + $0xb0] sm:$0xff]
      %v361 = vld [vmem:[%s2 + $0xb8] sm:$0xff]
      %v362 = vld [vmem:[%s2 + $0xc0] sm:$0xff]
      %v363 = vld [vmem:[%s2 + $0xc8] sm:$0xff]
      %v364 = vld [vmem:[%s2 + $0xd0] sm:$0xff]
      %v365 = vld [vmem:[%s2 + $0xd8] sm:$0xff]
      %v366 = vld [vmem:[%s2 + $0xe0] sm:$0xff]
      %v367 = vld [vmem:[%s2 + $0xe8] sm:$0xff]
      %v368 = vld [vmem:[%s2 + $0xf0] sm:$0xff]
      %v369 = vld [vmem:[%s2 + $0xf8] sm:$0xff]
      %v370 = vld [vmem:[%s2 + $0x100] sm:$0xff]
      %v371 = vld [vmem:[%s2 + $0x108] sm:$0xff]
      %v372 = vld [vmem:[%s2 + $0x110] sm:$0xff]
      %v373 = vld [vmem:[%s2 + $0x118] sm:$0xff]
      %v374 = vld [vmem:[%s2 + $0x120] sm:$0xff]
      %v375 = vld [vmem:[%s2 + $0x128] sm:$0xff]
      %v376 = vld [vmem:[%s2 + $0x130] sm:$0xff]
      %v377 = vld [vmem:[%s2 + $0x138] sm:$0xff]
      %v378 = vld [vmem:[%s2 + $0x140] sm:$0xff]
      %v379 = vld [vmem:[%s2 + $0x148] sm:$0xff]
      %v380 = vld [vmem:[%s2 + $0x150] sm:$0xff]
      %v381 = vld [vmem:[%s2 + $0x158] sm:$0xff]
      %v382 = vld [vmem:[%s2 + $0x160] sm:$0xff]
      %v383 = vld [vmem:[%s2 + $0x168] sm:$0xff]
      %v384 = vld [vmem:[%s2 + $0x170] sm:$0xff]
      %v385 = vld [vmem:[%s2 + $0x178] sm:$0xff]
      %v386 = vld [vmem:[%s2 + $0x180] sm:$0xff]
      %v387 = vld [vmem:[%s2 + $0x188] sm:$0xff]
      %v388 = vld [vmem:[%s2 + $0x190] sm:$0xff]
      %v389 = vld [vmem:[%s2 + $0x198] sm:$0xff]
      %v390 = vld [vmem:[%s2 + $0x1a0] sm:$0xff]
      %v391 = vld [vmem:[%s2 + $0x1a8] sm:$0xff]
      %v392 = vld [vmem:[%s2 + $0x1b0] sm:$0xff]
      %v393 = vld [vmem:[%s2 + $0x1b8] sm:$0xff]
      %v394 = vld [vmem:[%s2 + $0x1c0] sm:$0xff]
      %v395 = vld [vmem:[%s2 + $0x1c8] sm:$0xff]
      %v396 = vld [vmem:[%s2 + $0x1d0] sm:$0xff]
      %v397 = vld [vmem:[%s2 + $0x1d8] sm:$0xff]
      %v398 = vld [vmem:[%s2 + $0x1e0] sm:$0xff]
      %v399 = vld [vmem:[%s2 + $0x1e8] sm:$0xff]
      %v400 = vld [vmem:[%s2 + $0x1f0] sm:$0xff]
      %v401 = vld [vmem:[%s2 + $0x1f8] sm:$0xff]
      %vm402 = vcmask 261120
      %v404 = vsel %vm402, %v338, 0
      %v407 = vsel %vm402, %v339, 0
      %v410 = vsel %vm402, %v340, 0
      %v413 = vsel %vm402, %v341, 0
      %v416 = vsel %vm402, %v342, 0
      %v419 = vsel %vm402, %v343, 0
      %v422 = vsel %vm402, %v344, 0
      %v425 = vsel %vm402, %v345, 0
      %v428 = vsel %vm402, %v346, 0
      %v431 = vsel %vm402, %v347, 0
      %v434 = vsel %vm402, %v348, 0
      %v437 = vsel %vm402, %v349, 0
      %v440 = vsel %vm402, %v350, 0
      %v443 = vsel %vm402, %v351, 0
      %v446 = vsel %vm402, %v352, 0
      %v449 = vsel %vm402, %v353, 0
      %v452 = vsel %vm402, %v354, 0
      %v455 = vsel %vm402, %v355, 0
      %v458 = vsel %vm402, %v356, 0
      %v461 = vsel %vm402, %v357, 0
      %v464 = vsel %vm402, %v358, 0
      %v467 = vsel %vm402, %v359, 0
      %v470 = vsel %vm402, %v360, 0
      %v473 = vsel %vm402, %v361, 0
      %v476 = vsel %vm402, %v362, 0
      %v479 = vsel %vm402, %v363, 0
      %v482 = vsel %vm402, %v364, 0
      %v485 = vsel %vm402, %v365, 0
      %v488 = vsel %vm402, %v366, 0
      %v491 = vsel %vm402, %v367, 0
      %v494 = vsel %vm402, %v368, 0
      %v497 = vsel %vm402, %v369, 0
      %v500 = vsel %vm402, %v370, 0
      %v503 = vsel %vm402, %v371, 0
      %v506 = vsel %vm402, %v372, 0
      %v509 = vsel %vm402, %v373, 0
      %v512 = vsel %vm402, %v374, 0
      %v515 = vsel %vm402, %v375, 0
      %v518 = vsel %vm402, %v376, 0
      %v521 = vsel %vm402, %v377, 0
      %v524 = vsel %vm402, %v378, 0
      %v527 = vsel %vm402, %v379, 0
      %v530 = vsel %vm402, %v380, 0
      %v533 = vsel %vm402, %v381, 0
      %v536 = vsel %vm402, %v382, 0
      %v539 = vsel %vm402, %v383, 0
      %v542 = vsel %vm402, %v384, 0
      %v545 = vsel %vm402, %v385, 0
      %v548 = vsel %vm402, %v386, 0
      %v551 = vsel %vm402, %v387, 0
      %v554 = vsel %vm402, %v388, 0
      %v557 = vsel %vm402, %v389, 0
      %v560 = vsel %vm402, %v390, 0
      %v563 = vsel %vm402, %v391, 0
      %v566 = vsel %vm402, %v392, 0
      %v569 = vsel %vm402, %v393, 0
      %v572 = vsel %vm402, %v394, 0
      %v575 = vsel %vm402, %v395, 0
      %v578 = vsel %vm402, %v396, 0
      %v581 = vsel %vm402, %v397, 0
      %v584 = vsel %vm402, %v398, 0
      %v587 = vsel %vm402, %v399, 0
      %v590 = vsel %vm402, %v400, 0
      %v593 = vsel %vm402, %v401, 0
      %595 = vmatprep.subr.mxu0 0.0
      %596 = vmatpush1.msra.mxu0 %v320
      %597 = vmatprep.subr.mxu0 0.0
      %598 = vmatpush1.msra.mxu0 %v325
      %599 = vmatprep.subr.mxu0 0.0
      %600 = vmatpush1.msra.mxu0 %v330
      %601 = vmatprep.subr.mxu0 0.0
      %602 = vmatpush1.msra.mxu0 %v335
      %603 = vmatprep.subr.mxu0 0.0
      %604 = vmatpush1.msra.mxu0 0.0
      %605 = vmatprep.subr.mxu0 0.0
      %606 = vmatpush1.msra.mxu0 0.0
      %607 = vmatprep.subr.mxu0 0.0
      %608 = vmatpush1.msra.mxu0 0.0
      %609 = vmatprep.subr.mxu0 0.0
      %610 = vmatpush1.msra.mxu0 0.0
      %611 = vmatprep.subr.mxu0 0.0
      %612 = vmatpush1.msra.mxu0 0.0
      %613 = vmatprep.subr.mxu0 0.0
      %614 = vmatpush1.msra.mxu0 0.0
      %615 = vmatprep.subr.mxu0 0.0
      %616 = vmatpush1.msra.mxu0 0.0
      %617 = vmatprep.subr.mxu0 0.0
      %618 = vmatpush1.msra.mxu0 0.0
      %619 = vmatprep.subr.mxu0 0.0
      %620 = vmatpush1.msra.mxu0 0.0
      %621 = vmatprep.subr.mxu0 0.0
      %622 = vmatpush1.msra.mxu0 0.0
      %623 = vmatprep.subr.mxu0 0.0
      %624 = vmatpush1.msra.mxu0 0.0
      %625 = vmatprep.subr.mxu0 0.0
      %626 = vmatpush1.msra.mxu0 0.0
      %627 = vmatprep.subr.mxu0 0.0
      %628 = vmatpush1.msra.mxu0 0.0
      %629 = vmatprep.subr.mxu0 0.0
      %630 = vmatpush1.msra.mxu0 0.0
      %631 = vmatprep.subr.mxu0 0.0
      %632 = vmatpush1.msra.mxu0 0.0
      %633 = vmatprep.subr.mxu0 0.0
      %634 = vmatpush1.msra.mxu0 0.0
      %635 = vmatprep.subr.mxu0 0.0
      %636 = vmatpush1.msra.mxu0 0.0
      %637 = vmatprep.subr.mxu0 0.0
      %638 = vmatpush1.msra.mxu0 0.0
      %639 = vmatprep.subr.mxu0 0.0
      %640 = vmatpush1.msra.mxu0 0.0
      %641 = vmatprep.subr.mxu0 0.0
      %642 = vmatpush1.msra.mxu0 0.0
      %643 = vmatprep.subr.mxu0 0.0
      %644 = vmatpush1.msra.mxu0 0.0
      %645 = vmatprep.subr.mxu0 0.0
      %646 = vmatpush1.msra.mxu0 0.0
      %647 = vmatprep.subr.mxu0 0.0
      %648 = vmatpush1.msra.mxu0 0.0
      %649 = vmatprep.subr.mxu0 0.0
      %650 = vmatpush1.msra.mxu0 0.0
      %651 = vmatprep.subr.mxu0 0.0
      %652 = vmatpush1.msra.mxu0 0.0
      %653 = vmatprep.subr.mxu0 0.0
      %654 = vmatpush1.msra.mxu0 0.0
      %655 = vmatprep.subr.mxu0 0.0
      %656 = vmatpush1.msra.mxu0 0.0
      %657 = vmatprep.subr.mxu0 0.0
      %658 = vmatpush1.msra.mxu0 0.0
      %659 = vmatprep.mubr.f32.mxu0 0.0
      %660 = vmatmul.mubr.f32.gmra.mrb[0].mxu0 %v404
      %v661 = vpop.f32.mrb[0].mxu0
      %v662 = vadd.f32 0.0, %v661
      %v663 = vpop.f32.mrb[0].mxu0
      %664 = vmatprep.mubr.f32.mxu0 0.0
      %665 = vmatmul.mubr.f32.gmra.mrb[0].mxu0 %v407
      %v666 = vpop.f32.mrb[0].mxu0
      %v667 = vadd.f32 0.0, %v666
      %v668 = vpop.f32.mrb[0].mxu0
      %669 = vmatprep.mubr.f32.mxu0 0.0
      %670 = vmatmul.mubr.f32.gmra.mrb[0].mxu0 %v410
      %v671 = vpop.f32.mrb[0].mxu0
      %v672 = vadd.f32 0.0, %v671
      %v673 = vpop.f32.mrb[0].mxu0
      %674 = vmatprep.mubr.f32.mxu0 0.0
      %675 = vmatmul.mubr.f32.gmra.mrb[0].mxu0 %v413
      %v676 = vpop.f32.mrb[0].mxu0
      %v677 = vadd.f32 0.0, %v676
      %v678 = vpop.f32.mrb[0].mxu0
      %679 = vmatprep.mubr.f32.mxu0 0.0
      %680 = vmatmul.mubr.f32.gmra.mrb[0].mxu0 %v416
      %v681 = vpop.f32.mrb[0].mxu0
      %v682 = vadd.f32 0.0, %v681
      %v683 = vpop.f32.mrb[0].mxu0
      %684 = vmatprep.mubr.f32.mxu0 0.0
      %685 = vmatmul.mubr.f32.gmra.mrb[0].mxu0 %v419
      %v686 = vpop.f32.mrb[0].mxu0
      %v687 = vadd.f32 0.0, %v686
      %v688 = vpop.f32.mrb[0].mxu0
      %689 = vmatprep.mubr.f32.mxu0 0.0
      %690 = vmatmul.mubr.f32.gmra.mrb[0].mxu0 %v422
      %v691 = vpop.f32.mrb[0].mxu0
      %v692 = vadd.f32 0.0, %v691
      %v693 = vpop.f32.mrb[0].mxu0
      %694 = vmatprep.mubr.f32.mxu0 0.0
      %695 = vmatmul.mubr.f32.gmra.mrb[0].mxu0 %v425
      %v696 = vpop.f32.mrb[0].mxu0
      %v697 = vadd.f32 0.0, %v696
      %v698 = vpop.f32.mrb[0].mxu0
      %699 = vmatprep.mubr.f32.mxu0 0.0
      %700 = vmatmul.mubr.f32.gmra.mrb[0].mxu0 %v428
      %v701 = vpop.f32.mrb[0].mxu0
      %v702 = vadd.f32 0.0, %v701
      %v703 = vpop.f32.mrb[0].mxu0
      %704 = vmatprep.mubr.f32.mxu0 0.0
      %705 = vmatmul.mubr.f32.gmra.mrb[0].mxu0 %v431
      %v706 = vpop.f32.mrb[0].mxu0
      %v707 = vadd.f32 0.0, %v706
      %v708 = vpop.f32.mrb[0].mxu0
      %709 = vmatprep.mubr.f32.mxu0 0.0
      %710 = vmatmul.mubr.f32.gmra.mrb[0].mxu0 %v434
      %v711 = vpop.f32.mrb[0].mxu0
      %v712 = vadd.f32 0.0, %v711
      %v713 = vpop.f32.mrb[0].mxu0
      %714 = vmatprep.mubr.f32.mxu0 0.0
      %715 = vmatmul.mubr.f32.gmra.mrb[0].mxu0 %v437
      %v716 = vpop.f32.mrb[0].mxu0
      %v717 = vadd.f32 0.0, %v716
      %v718 = vpop.f32.mrb[0].mxu0
      %719 = vmatprep.mubr.f32.mxu0 0.0
      %720 = vmatmul.mubr.f32.gmra.mrb[0].mxu0 %v440
      %v721 = vpop.f32.mrb[0].mxu0
      %v722 = vadd.f32 0.0, %v721
      %v723 = vpop.f32.mrb[0].mxu0
      %724 = vmatprep.mubr.f32.mxu0 0.0
      %725 = vmatmul.mubr.f32.gmra.mrb[0].mxu0 %v443
      %v726 = vpop.f32.mrb[0].mxu0
      %v727 = vadd.f32 0.0, %v726
      %v728 = vpop.f32.mrb[0].mxu0
      %729 = vmatprep.mubr.f32.mxu0 0.0
      %730 = vmatmul.mubr.f32.gmra.mrb[0].mxu0 %v446
      %v731 = vpop.f32.mrb[0].mxu0
      %v732 = vadd.f32 0.0, %v731
      %v733 = vpop.f32.mrb[0].mxu0
      %734 = vmatprep.mubr.f32.mxu0 0.0
      %735 = vmatmul.mubr.f32.gmra.mrb[0].mxu0 %v449
      %v736 = vpop.f32.mrb[0].mxu0
      %v737 = vadd.f32 0.0, %v736
      %v738 = vpop.f32.mrb[0].mxu0
      %739 = vmatprep.mubr.f32.mxu0 0.0
      %740 = vmatmul.mubr.f32.gmra.mrb[0].mxu0 %v452
      %v741 = vpop.f32.mrb[0].mxu0
      %v742 = vadd.f32 0.0, %v741
      %v743 = vpop.f32.mrb[0].mxu0
      %744 = vmatprep.mubr.f32.mxu0 0.0
      %745 = vmatmul.mubr.f32.gmra.mrb[0].mxu0 %v455
      %v746 = vpop.f32.mrb[0].mxu0
      %v747 = vadd.f32 0.0, %v746
      %v748 = vpop.f32.mrb[0].mxu0
      %749 = vmatprep.mubr.f32.mxu0 0.0
      %750 = vmatmul.mubr.f32.gmra.mrb[0].mxu0 %v458
      %v751 = vpop.f32.mrb[0].mxu0
      %v752 = vadd.f32 0.0, %v751
      %v753 = vpop.f32.mrb[0].mxu0
      %754 = vmatprep.mubr.f32.mxu0 0.0
      %755 = vmatmul.mubr.f32.gmra.mrb[0].mxu0 %v461
      %v756 = vpop.f32.mrb[0].mxu0
      %v757 = vadd.f32 0.0, %v756
      %v758 = vpop.f32.mrb[0].mxu0
      %759 = vmatprep.mubr.f32.mxu0 0.0
      %760 = vmatmul.mubr.f32.gmra.mrb[0].mxu0 %v464
      %v761 = vpop.f32.mrb[0].mxu0
      %v762 = vadd.f32 0.0, %v761
      %v763 = vpop.f32.mrb[0].mxu0
      %764 = vmatprep.mubr.f32.mxu0 0.0
      %765 = vmatmul.mubr.f32.gmra.mrb[0].mxu0 %v467
      %v766 = vpop.f32.mrb[0].mxu0
      %v767 = vadd.f32 0.0, %v766
      %v768 = vpop.f32.mrb[0].mxu0
      %769 = vmatprep.mubr.f32.mxu0 0.0
      %770 = vmatmul.mubr.f32.gmra.mrb[0].mxu0 %v470
      %v771 = vpop.f32.mrb[0].mxu0
      %v772 = vadd.f32 0.0, %v771
      %v773 = vpop.f32.mrb[0].mxu0
      %774 = vmatprep.mubr.f32.mxu0 0.0
      %775 = vmatmul.mubr.f32.gmra.mrb[0].mxu0 %v473
      %v776 = vpop.f32.mrb[0].mxu0
      %v777 = vadd.f32 0.0, %v776
      %v778 = vpop.f32.mrb[0].mxu0
      %779 = vmatprep.mubr.f32.mxu0 0.0
      %780 = vmatmul.mubr.f32.gmra.mrb[0].mxu0 %v476
      %v781 = vpop.f32.mrb[0].mxu0
      %v782 = vadd.f32 0.0, %v781
      %v783 = vpop.f32.mrb[0].mxu0
      %784 = vmatprep.mubr.f32.mxu0 0.0
      %785 = vmatmul.mubr.f32.gmra.mrb[0].mxu0 %v479
      %v786 = vpop.f32.mrb[0].mxu0
      %v787 = vadd.f32 0.0, %v786
      %v788 = vpop.f32.mrb[0].mxu0
      %789 = vmatprep.mubr.f32.mxu0 0.0
      %790 = vmatmul.mubr.f32.gmra.mrb[0].mxu0 %v482
      %v791 = vpop.f32.mrb[0].mxu0
      %v792 = vadd.f32 0.0, %v791
      %v793 = vpop.f32.mrb[0].mxu0
      %794 = vmatprep.mubr.f32.mxu0 0.0
      %795 = vmatmul.mubr.f32.gmra.mrb[0].mxu0 %v485
      %v796 = vpop.f32.mrb[0].mxu0
      %v797 = vadd.f32 0.0, %v796
      %v798 = vpop.f32.mrb[0].mxu0
      %799 = vmatprep.mubr.f32.mxu0 0.0
      %800 = vmatmul.mubr.f32.gmra.mrb[0].mxu0 %v488
      %v801 = vpop.f32.mrb[0].mxu0
      %v802 = vadd.f32 0.0, %v801
      %v803 = vpop.f32.mrb[0].mxu0
      %804 = vmatprep.mubr.f32.mxu0 0.0
      %805 = vmatmul.mubr.f32.gmra.mrb[0].mxu0 %v491
      %v806 = vpop.f32.mrb[0].mxu0
      %v807 = vadd.f32 0.0, %v806
      %v808 = vpop.f32.mrb[0].mxu0
      %809 = vmatprep.mubr.f32.mxu0 0.0
      %810 = vmatmul.mubr.f32.gmra.mrb[0].mxu0 %v494
      %v811 = vpop.f32.mrb[0].mxu0
      %v812 = vadd.f32 0.0, %v811
      %v813 = vpop.f32.mrb[0].mxu0
      %814 = vmatprep.mubr.f32.mxu0 0.0
      %815 = vmatmul.mubr.f32.gmra.mrb[0].mxu0 %v497
      %v816 = vpop.f32.mrb[0].mxu0
      %v817 = vadd.f32 0.0, %v816
      %v818 = vpop.f32.mrb[0].mxu0
      %819 = vmatprep.mubr.f32.mxu0 0.0
      %820 = vmatmul.mubr.f32.gmra.mrb[0].mxu0 %v500
      %v821 = vpop.f32.mrb[0].mxu0
      %v822 = vadd.f32 0.0, %v821
      %v823 = vpop.f32.mrb[0].mxu0
      %824 = vmatprep.mubr.f32.mxu0 0.0
      %825 = vmatmul.mubr.f32.gmra.mrb[0].mxu0 %v503
      %v826 = vpop.f32.mrb[0].mxu0
      %v827 = vadd.f32 0.0, %v826
      %v828 = vpop.f32.mrb[0].mxu0
      %829 = vmatprep.mubr.f32.mxu0 0.0
      %830 = vmatmul.mubr.f32.gmra.mrb[0].mxu0 %v506
      %v831 = vpop.f32.mrb[0].mxu0
      %v832 = vadd.f32 0.0, %v831
      %v833 = vpop.f32.mrb[0].mxu0
      %834 = vmatprep.mubr.f32.mxu0 0.0
      %835 = vmatmul.mubr.f32.gmra.mrb[0].mxu0 %v509
      %v836 = vpop.f32.mrb[0].mxu0
      %v837 = vadd.f32 0.0, %v836
      %v838 = vpop.f32.mrb[0].mxu0
      %839 = vmatprep.mubr.f32.mxu0 0.0
      %840 = vmatmul.mubr.f32.gmra.mrb[0].mxu0 %v512
      %v841 = vpop.f32.mrb[0].mxu0
      %v842 = vadd.f32 0.0, %v841
      %v843 = vpop.f32.mrb[0].mxu0
      %844 = vmatprep.mubr.f32.mxu0 0.0
      %845 = vmatmul.mubr.f32.gmra.mrb[0].mxu0 %v515
      %v846 = vpop.f32.mrb[0].mxu0
      %v847 = vadd.f32 0.0, %v846
      %v848 = vpop.f32.mrb[0].mxu0
      %849 = vmatprep.mubr.f32.mxu0 0.0
      %850 = vmatmul.mubr.f32.gmra.mrb[0].mxu0 %v518
      %v851 = vpop.f32.mrb[0].mxu0
      %v852 = vadd.f32 0.0, %v851
      %v853 = vpop.f32.mrb[0].mxu0
      %854 = vmatprep.mubr.f32.mxu0 0.0
      %855 = vmatmul.mubr.f32.gmra.mrb[0].mxu0 %v521
      %v856 = vpop.f32.mrb[0].mxu0
      %v857 = vadd.f32 0.0, %v856
      %v858 = vpop.f32.mrb[0].mxu0
      %859 = vmatprep.mubr.f32.mxu0 0.0
      %860 = vmatmul.mubr.f32.gmra.mrb[0].mxu0 %v524
      %v861 = vpop.f32.mrb[0].mxu0
      %v862 = vadd.f32 0.0, %v861
      %v863 = vpop.f32.mrb[0].mxu0
      %864 = vmatprep.mubr.f32.mxu0 0.0
      %865 = vmatmul.mubr.f32.gmra.mrb[0].mxu0 %v527
      %v866 = vpop.f32.mrb[0].mxu0
      %v867 = vadd.f32 0.0, %v866
      %v868 = vpop.f32.mrb[0].mxu0
      %869 = vmatprep.mubr.f32.mxu0 0.0
      %870 = vmatmul.mubr.f32.gmra.mrb[0].mxu0 %v530
      %v871 = vpop.f32.mrb[0].mxu0
      %v872 = vadd.f32 0.0, %v871
      %v873 = vpop.f32.mrb[0].mxu0
      %874 = vmatprep.mubr.f32.mxu0 0.0
      %875 = vmatmul.mubr.f32.gmra.mrb[0].mxu0 %v533
      %v876 = vpop.f32.mrb[0].mxu0
      %v877 = vadd.f32 0.0, %v876
      %v878 = vpop.f32.mrb[0].mxu0
      %879 = vmatprep.mubr.f32.mxu0 0.0
      %880 = vmatmul.mubr.f32.gmra.mrb[0].mxu0 %v536
      %v881 = vpop.f32.mrb[0].mxu0
      %v882 = vadd.f32 0.0, %v881
      %v883 = vpop.f32.mrb[0].mxu0
      %884 = vmatprep.mubr.f32.mxu0 0.0
      %885 = vmatmul.mubr.f32.gmra.mrb[0].mxu0 %v539
      %v886 = vpop.f32.mrb[0].mxu0
      %v887 = vadd.f32 0.0, %v886
      %v888 = vpop.f32.mrb[0].mxu0
      %889 = vmatprep.mubr.f32.mxu0 0.0
      %890 = vmatmul.mubr.f32.gmra.mrb[0].mxu0 %v542
      %v891 = vpop.f32.mrb[0].mxu0
      %v892 = vadd.f32 0.0, %v891
      %v893 = vpop.f32.mrb[0].mxu0
      %894 = vmatprep.mubr.f32.mxu0 0.0
      %895 = vmatmul.mubr.f32.gmra.mrb[0].mxu0 %v545
      %v896 = vpop.f32.mrb[0].mxu0
      %v897 = vadd.f32 0.0, %v896
      %v898 = vpop.f32.mrb[0].mxu0
      %899 = vmatprep.mubr.f32.mxu0 0.0
      %900 = vmatmul.mubr.f32.gmra.mrb[0].mxu0 %v548
      %v901 = vpop.f32.mrb[0].mxu0
      %v902 = vadd.f32 0.0, %v901
      %v903 = vpop.f32.mrb[0].mxu0
      %904 = vmatprep.mubr.f32.mxu0 0.0
      %905 = vmatmul.mubr.f32.gmra.mrb[0].mxu0 %v551
      %v906 = vpop.f32.mrb[0].mxu0
      %v907 = vadd.f32 0.0, %v906
      %v908 = vpop.f32.mrb[0].mxu0
      %909 = vmatprep.mubr.f32.mxu0 0.0
      %910 = vmatmul.mubr.f32.gmra.mrb[0].mxu0 %v554
      %v911 = vpop.f32.mrb[0].mxu0
      %v912 = vadd.f32 0.0, %v911
      %v913 = vpop.f32.mrb[0].mxu0
      %914 = vmatprep.mubr.f32.mxu0 0.0
      %915 = vmatmul.mubr.f32.gmra.mrb[0].mxu0 %v557
      %v916 = vpop.f32.mrb[0].mxu0
      %v917 = vadd.f32 0.0, %v916
      %v918 = vpop.f32.mrb[0].mxu0
      %919 = vmatprep.mubr.f32.mxu0 0.0
      %920 = vmatmul.mubr.f32.gmra.mrb[0].mxu0 %v560
      %v921 = vpop.f32.mrb[0].mxu0
      %v922 = vadd.f32 0.0, %v921
      %v923 = vpop.f32.mrb[0].mxu0
      %924 = vmatprep.mubr.f32.mxu0 0.0
      %925 = vmatmul.mubr.f32.gmra.mrb[0].mxu0 %v563
      %v926 = vpop.f32.mrb[0].mxu0
      %v927 = vadd.f32 0.0, %v926
      %v928 = vpop.f32.mrb[0].mxu0
      %929 = vmatprep.mubr.f32.mxu0 0.0
      %930 = vmatmul.mubr.f32.gmra.mrb[0].mxu0 %v566
      %v931 = vpop.f32.mrb[0].mxu0
      %v932 = vadd.f32 0.0, %v931
      %v933 = vpop.f32.mrb[0].mxu0
      %934 = vmatprep.mubr.f32.mxu0 0.0
      %935 = vmatmul.mubr.f32.gmra.mrb[0].mxu0 %v569
      %v936 = vpop.f32.mrb[0].mxu0
      %v937 = vadd.f32 0.0, %v936
      %v938 = vpop.f32.mrb[0].mxu0
      %939 = vmatprep.mubr.f32.mxu0 0.0
      %940 = vmatmul.mubr.f32.gmra.mrb[0].mxu0 %v572
      %v941 = vpop.f32.mrb[0].mxu0
      %v942 = vadd.f32 0.0, %v941
      %v943 = vpop.f32.mrb[0].mxu0
      %944 = vmatprep.mubr.f32.mxu0 0.0
      %945 = vmatmul.mubr.f32.gmra.mrb[0].mxu0 %v575
      %v946 = vpop.f32.mrb[0].mxu0
      %v947 = vadd.f32 0.0, %v946
      %v948 = vpop.f32.mrb[0].mxu0
      %949 = vmatprep.mubr.f32.mxu0 0.0
      %950 = vmatmul.mubr.f32.gmra.mrb[0].mxu0 %v578
      %v951 = vpop.f32.mrb[0].mxu0
      %v952 = vadd.f32 0.0, %v951
      %v953 = vpop.f32.mrb[0].mxu0
      %954 = vmatprep.mubr.f32.mxu0 0.0
      %955 = vmatmul.mubr.f32.gmra.mrb[0].mxu0 %v581
      %v956 = vpop.f32.mrb[0].mxu0
      %v957 = vadd.f32 0.0, %v956
      %v958 = vpop.f32.mrb[0].mxu0
      %959 = vmatprep.mubr.f32.mxu0 0.0
      %960 = vmatmul.mubr.f32.gmra.mrb[0].mxu0 %v584
      %v961 = vpop.f32.mrb[0].mxu0
      %v962 = vadd.f32 0.0, %v961
      %v963 = vpop.f32.mrb[0].mxu0
      %964 = vmatprep.mubr.f32.mxu0 0.0
      %965 = vmatmul.mubr.f32.gmra.mrb[0].mxu0 %v587
      %v966 = vpop.f32.mrb[0].mxu0
      %v967 = vadd.f32 0.0, %v966
      %v968 = vpop.f32.mrb[0].mxu0
      %969 = vmatprep.mubr.f32.mxu0 0.0
      %970 = vmatmul.mubr.f32.gmra.mrb[0].mxu0 %v590
      %v971 = vpop.f32.mrb[0].mxu0
      %v972 = vadd.f32 0.0, %v971
      %v973 = vpop.f32.mrb[0].mxu0
      %974 = vmatprep.mubr.f32.mxu0 0.0
      %975 = vmatmul.mubr.f32.gmra.mrb[0].mxu0 %v593
      %v976 = vpop.f32.mrb[0].mxu0
      %v977 = vadd.f32 0.0, %v976
      %v978 = vpop.f32.mrb[0].mxu0
      %979 = vdwg.mxu0
      %v980 = vmax.f32 %v662, 0.0
      %v981 = vmax.f32 %v667, 0.0
      %v982 = vmax.f32 %v672, 0.0
      %v983 = vmax.f32 %v677, 0.0
      %v984 = vmax.f32 %v682, 0.0
      %v985 = vmax.f32 %v687, 0.0
      %v986 = vmax.f32 %v692, 0.0
      %v987 = vmax.f32 %v697, 0.0
      %v988 = vmax.f32 %v702, 0.0
      %v989 = vmax.f32 %v707, 0.0
      %v990 = vmax.f32 %v712, 0.0
      %v991 = vmax.f32 %v717, 0.0
      %v992 = vmax.f32 %v722, 0.0
      %v993 = vmax.f32 %v727, 0.0
      %v994 = vmax.f32 %v732, 0.0
      %v995 = vmax.f32 %v737, 0.0
      %v996 = vmax.f32 %v742, 0.0
      %v997 = vmax.f32 %v747, 0.0
      %v998 = vmax.f32 %v752, 0.0
      %v999 = vmax.f32 %v757, 0.0
      %v1000 = vmax.f32 %v762, 0.0
      %v1001 = vmax.f32 %v767, 0.0
      %v1002 = vmax.f32 %v772, 0.0
      %v1003 = vmax.f32 %v777, 0.0
      %v1004 = vmax.f32 %v782, 0.0
      %v1005 = vmax.f32 %v787, 0.0
      %v1006 = vmax.f32 %v792, 0.0
      %v1007 = vmax.f32 %v797, 0.0
      %v1008 = vmax.f32 %v802, 0.0
      %v1009 = vmax.f32 %v807, 0.0
      %v1010 = vmax.f32 %v812, 0.0
      %v1011 = vmax.f32 %v817, 0.0
      %v1012 = vmax.f32 %v822, 0.0
      %v1013 = vmax.f32 %v827, 0.0
      %v1014 = vmax.f32 %v832, 0.0
      %v1015 = vmax.f32 %v837, 0.0
      %v1016 = vmax.f32 %v842, 0.0
      %v1017 = vmax.f32 %v847, 0.0
      %v1018 = vmax.f32 %v852, 0.0
      %v1019 = vmax.f32 %v857, 0.0
      %v1020 = vmax.f32 %v862, 0.0
      %v1021 = vmax.f32 %v867, 0.0
      %v1022 = vmax.f32 %v872, 0.0
      %v1023 = vmax.f32 %v877, 0.0
      %v1024 = vmax.f32 %v882, 0.0
      %v1025 = vmax.f32 %v887, 0.0
      %v1026 = vmax.f32 %v892, 0.0
      %v1027 = vmax.f32 %v897, 0.0
      %v1028 = vmax.f32 %v902, 0.0
      %v1029 = vmax.f32 %v907, 0.0
      %v1030 = vmax.f32 %v912, 0.0
      %v1031 = vmax.f32 %v917, 0.0
      %v1032 = vmax.f32 %v922, 0.0
      %v1033 = vmax.f32 %v927, 0.0
      %v1034 = vmax.f32 %v932, 0.0
      %v1035 = vmax.f32 %v937, 0.0
      %v1036 = vmax.f32 %v942, 0.0
      %v1037 = vmax.f32 %v947, 0.0
      %v1038 = vmax.f32 %v952, 0.0
      %v1039 = vmax.f32 %v957, 0.0
      %v1040 = vmax.f32 %v962, 0.0
      %v1041 = vmax.f32 %v967, 0.0
      %v1042 = vmax.f32 %v972, 0.0
      %v1043 = vmax.f32 %v977, 0.0
      %v1044 = vld [vmem:[%s3] sm:$0xff]
      %v1045 = vld [vmem:[%s3 + $0x8] sm:$0xff]
      %v1046 = vld [vmem:[%s3 + $0x10] sm:$0xff]
      %v1047 = vld [vmem:[%s3 + $0x18] sm:$0xff]
      %v1048 = vld [vmem:[%s3 + $0x20] sm:$0xff]
      %v1049 = vld [vmem:[%s3 + $0x28] sm:$0xff]
      %v1050 = vld [vmem:[%s3 + $0x30] sm:$0xff]
      %v1051 = vld [vmem:[%s3 + $0x38] sm:$0xff]
      %v1052 = vld [vmem:[%s3 + $0x40] sm:$0xff]
      %v1053 = vld [vmem:[%s3 + $0x48] sm:$0xff]
      %v1054 = vld [vmem:[%s3 + $0x50] sm:$0xff]
      %v1055 = vld [vmem:[%s3 + $0x58] sm:$0xff]
      %v1056 = vld [vmem:[%s3 + $0x60] sm:$0xff]
      %v1057 = vld [vmem:[%s3 + $0x68] sm:$0xff]
      %v1058 = vld [vmem:[%s3 + $0x70] sm:$0xff]
      %v1059 = vld [vmem:[%s3 + $0x78] sm:$0xff]
      %s1060 = scalar_lea.vmem %s1, 16
      %v1061 = vld [vmem:[%s1060] sm:$0xff]
      %v1062 = vld [vmem:[%s1060 + $0x8] sm:$0xff]
      %1063 = vmatprep.subr.mxu0 0.0
      %1064 = vmatpush1.msra.mxu0 %v1061
      %1065 = vmatprep.subr.mxu0 0.0
      %1066 = vmatpush1.msra.mxu0 %v1062
      %1067 = vmatprep.subr.mxu0 0.0
      %1068 = vmatpush1.msra.mxu0 0.0
      %1069 = vmatprep.subr.mxu0 0.0
      %1070 = vmatpush1.msra.mxu0 0.0
      %1071 = vmatprep.subr.mxu0 0.0
      %1072 = vmatpush1.msra.mxu0 0.0
      %1073 = vmatprep.subr.mxu0 0.0
      %1074 = vmatpush1.msra.mxu0 0.0
      %1075 = vmatprep.subr.mxu0 0.0
      %1076 = vmatpush1.msra.mxu0 0.0
      %1077 = vmatprep.subr.mxu0 0.0
      %1078 = vmatpush1.msra.mxu0 0.0
      %1079 = vmatprep.subr.mxu0 0.0
      %1080 = vmatpush1.msra.mxu0 0.0
      %1081 = vmatprep.subr.mxu0 0.0
      %1082 = vmatpush1.msra.mxu0 0.0
      %1083 = vmatprep.subr.mxu0 0.0
      %1084 = vmatpush1.msra.mxu0 0.0
      %1085 = vmatprep.subr.mxu0 0.0
      %1086 = vmatpush1.msra.mxu0 0.0
      %1087 = vmatprep.subr.mxu0 0.0
      %1088 = vmatpush1.msra.mxu0 0.0
      %1089 = vmatprep.subr.mxu0 0.0
      %1090 = vmatpush1.msra.mxu0 0.0
      %1091 = vmatprep.subr.mxu0 0.0
      %1092 = vmatpush1.msra.mxu0 0.0
      %1093 = vmatprep.subr.mxu0 0.0
      %1094 = vmatpush1.msra.mxu0 0.0
      %1095 = vmatprep.subr.mxu0 0.0
      %1096 = vmatpush1.msra.mxu0 0.0
      %1097 = vmatprep.subr.mxu0 0.0
      %1098 = vmatpush1.msra.mxu0 0.0
      %1099 = vmatprep.subr.mxu0 0.0
      %1100 = vmatpush1.msra.mxu0 0.0
      %1101 = vmatprep.subr.mxu0 0.0
      %1102 = vmatpush1.msra.mxu0 0.0
      %1103 = vmatprep.subr.mxu0 0.0
      %1104 = vmatpush1.msra.mxu0 0.0
      %1105 = vmatprep.subr.mxu0 0.0
      %1106 = vmatpush1.msra.mxu0 0.0
      %1107 = vmatprep.subr.mxu0 0.0
      %1108 = vmatpush1.msra.mxu0 0.0
      %1109 = vmatprep.subr.mxu0 0.0
      %1110 = vmatpush1.msra.mxu0 0.0
      %1111 = vmatprep.subr.mxu0 0.0
      %1112 = vmatpush1.msra.mxu0 0.0
      %1113 = vmatprep.subr.mxu0 0.0
      %1114 = vmatpush1.msra.mxu0 0.0
      %1115 = vmatprep.subr.mxu0 0.0
      %1116 = vmatpush1.msra.mxu0 0.0
      %1117 = vmatprep.subr.mxu0 0.0
      %1118 = vmatpush1.msra.mxu0 0.0
      %1119 = vmatprep.subr.mxu0 0.0
      %1120 = vmatpush1.msra.mxu0 0.0
      %1121 = vmatprep.subr.mxu0 0.0
      %1122 = vmatpush1.msra.mxu0 0.0
      %1123 = vmatprep.subr.mxu0 0.0
      %1124 = vmatpush1.msra.mxu0 0.0
      %1125 = vmatprep.subr.mxu0 0.0
      %1126 = vmatpush1.msra.mxu0 0.0
      %1127 = vmatprep.mubr.f32.mxu0 0.0
      %1128 = vmatmul.mubr.f32.gmra.mrb[0].mxu0 %v242
      %v1129 = vpop.f32.mrb[0].mxu0
      %v1130 = vadd.f32 0.0, %v1129
      %v1131 = vpop.f32.mrb[0].mxu0
      %1132 = vmatprep.mubr.f32.mxu0 0.0
      %1133 = vmatmul.mubr.f32.gmra.mrb[0].mxu0 %v245
      %v1134 = vpop.f32.mrb[0].mxu0
      %v1135 = vadd.f32 0.0, %v1134
      %v1136 = vpop.f32.mrb[0].mxu0
      %1137 = vmatprep.mubr.f32.mxu0 0.0
      %1138 = vmatmul.mubr.f32.gmra.mrb[0].mxu0 %v248
      %v1139 = vpop.f32.mrb[0].mxu0
      %v1140 = vadd.f32 0.0, %v1139
      %v1141 = vpop.f32.mrb[0].mxu0
      %1142 = vmatprep.mubr.f32.mxu0 0.0
      %1143 = vmatmul.mubr.f32.gmra.mrb[0].mxu0 %v251
      %v1144 = vpop.f32.mrb[0].mxu0
      %v1145 = vadd.f32 0.0, %v1144
      %v1146 = vpop.f32.mrb[0].mxu0
      %1147 = vdwg.mxu0
      %s1148 = scalar_lea.vmem %s2, 512
      %v1149 = vld [vmem:[%s1148] sm:$0xff]
      %v1150 = vld [vmem:[%s1148 + $0x8] sm:$0xff]
      %v1151 = vld [vmem:[%s1148 + $0x10] sm:$0xff]
      %v1152 = vld [vmem:[%s1148 + $0x18] sm:$0xff]
      %v1153 = vld [vmem:[%s1148 + $0x20] sm:$0xff]
      %v1154 = vld [vmem:[%s1148 + $0x28] sm:$0xff]
      %v1155 = vld [vmem:[%s1148 + $0x30] sm:$0xff]
      %v1156 = vld [vmem:[%s1148 + $0x38] sm:$0xff]
      %v1157 = vld [vmem:[%s1148 + $0x40] sm:$0xff]
      %v1158 = vld [vmem:[%s1148 + $0x48] sm:$0xff]
      %v1159 = vld [vmem:[%s1148 + $0x50] sm:$0xff]
      %v1160 = vld [vmem:[%s1148 + $0x58] sm:$0xff]
      %v1161 = vld [vmem:[%s1148 + $0x60] sm:$0xff]
      %v1162 = vld [vmem:[%s1148 + $0x68] sm:$0xff]
      %v1163 = vld [vmem:[%s1148 + $0x70] sm:$0xff]
      %v1164 = vld [vmem:[%s1148 + $0x78] sm:$0xff]
      %v1165 = vld [vmem:[%s1148 + $0x80] sm:$0xff]
      %v1166 = vld [vmem:[%s1148 + $0x88] sm:$0xff]
      %v1167 = vld [vmem:[%s1148 + $0x90] sm:$0xff]
      %v1168 = vld [vmem:[%s1148 + $0x98] sm:$0xff]
      %v1169 = vld [vmem:[%s1148 + $0xa0] sm:$0xff]
      %v1170 = vld [vmem:[%s1148 + $0xa8] sm:$0xff]
      %v1171 = vld [vmem:[%s1148 + $0xb0] sm:$0xff]
      %v1172 = vld [vmem:[%s1148 + $0xb8] sm:$0xff]
      %v1173 = vld [vmem:[%s1148 + $0xc0] sm:$0xff]
      %v1174 = vld [vmem:[%s1148 + $0xc8] sm:$0xff]
      %v1175 = vld [vmem:[%s1148 + $0xd0] sm:$0xff]
      %v1176 = vld [vmem:[%s1148 + $0xd8] sm:$0xff]
      %v1177 = vld [vmem:[%s1148 + $0xe0] sm:$0xff]
      %v1178 = vld [vmem:[%s1148 + $0xe8] sm:$0xff]
      %v1179 = vld [vmem:[%s1148 + $0xf0] sm:$0xff]
      %v1180 = vld [vmem:[%s1148 + $0xf8] sm:$0xff]
      %v1181 = vld [vmem:[%s1148 + $0x100] sm:$0xff]
      %v1182 = vld [vmem:[%s1148 + $0x108] sm:$0xff]
      %v1183 = vld [vmem:[%s1148 + $0x110] sm:$0xff]
      %v1184 = vld [vmem:[%s1148 + $0x118] sm:$0xff]
      %v1185 = vld [vmem:[%s1148 + $0x120] sm:$0xff]
      %v1186 = vld [vmem:[%s1148 + $0x128] sm:$0xff]
      %v1187 = vld [vmem:[%s1148 + $0x130] sm:$0xff]
      %v1188 = vld [vmem:[%s1148 + $0x138] sm:$0xff]
      %v1189 = vld [vmem:[%s1148 + $0x140] sm:$0xff]
      %v1190 = vld [vmem:[%s1148 + $0x148] sm:$0xff]
      %v1191 = vld [vmem:[%s1148 + $0x150] sm:$0xff]
      %v1192 = vld [vmem:[%s1148 + $0x158] sm:$0xff]
      %v1193 = vld [vmem:[%s1148 + $0x160] sm:$0xff]
      %v1194 = vld [vmem:[%s1148 + $0x168] sm:$0xff]
      %v1195 = vld [vmem:[%s1148 + $0x170] sm:$0xff]
      %v1196 = vld [vmem:[%s1148 + $0x178] sm:$0xff]
      %v1197 = vld [vmem:[%s1148 + $0x180] sm:$0xff]
      %v1198 = vld [vmem:[%s1148 + $0x188] sm:$0xff]
      %v1199 = vld [vmem:[%s1148 + $0x190] sm:$0xff]
      %v1200 = vld [vmem:[%s1148 + $0x198] sm:$0xff]
      %v1201 = vld [vmem:[%s1148 + $0x1a0] sm:$0xff]
      %v1202 = vld [vmem:[%s1148 + $0x1a8] sm:$0xff]
      %v1203 = vld [vmem:[%s1148 + $0x1b0] sm:$0xff]
      %v1204 = vld [vmem:[%s1148 + $0x1b8] sm:$0xff]
      %v1205 = vld [vmem:[%s1148 + $0x1c0] sm:$0xff]
      %v1206 = vld [vmem:[%s1148 + $0x1c8] sm:$0xff]
      %v1207 = vld [vmem:[%s1148 + $0x1d0] sm:$0xff]
      %v1208 = vld [vmem:[%s1148 + $0x1d8] sm:$0xff]
      %v1209 = vld [vmem:[%s1148 + $0x1e0] sm:$0xff]
      %v1210 = vld [vmem:[%s1148 + $0x1e8] sm:$0xff]
      %v1211 = vld [vmem:[%s1148 + $0x1f0] sm:$0xff]
      %v1212 = vld [vmem:[%s1148 + $0x1f8] sm:$0xff]
      %v1214 = vsel %vm402, %v1149, 0
      %v1217 = vsel %vm402, %v1150, 0
      %v1220 = vsel %vm402, %v1151, 0
      %v1223 = vsel %vm402, %v1152, 0
      %v1226 = vsel %vm402, %v1153, 0
      %v1229 = vsel %vm402, %v1154, 0
      %v1232 = vsel %vm402, %v1155, 0
      %v1235 = vsel %vm402, %v1156, 0
      %v1238 = vsel %vm402, %v1157, 0
      %v1241 = vsel %vm402, %v1158, 0
      %v1244 = vsel %vm402, %v1159, 0
      %v1247 = vsel %vm402, %v1160, 0
      %v1250 = vsel %vm402, %v1161, 0
      %v1253 = vsel %vm402, %v1162, 0
      %v1256 = vsel %vm402, %v1163, 0
      %v1259 = vsel %vm402, %v1164, 0
      %v1262 = vsel %vm402, %v1165, 0
      %v1265 = vsel %vm402, %v1166, 0
      %v1268 = vsel %vm402, %v1167, 0
      %v1271 = vsel %vm402, %v1168, 0
      %v1274 = vsel %vm402, %v1169, 0
      %v1277 = vsel %vm402, %v1170, 0
      %v1280 = vsel %vm402, %v1171, 0
      %v1283 = vsel %vm402, %v1172, 0
      %v1286 = vsel %vm402, %v1173, 0
      %v1289 = vsel %vm402, %v1174, 0
      %v1292 = vsel %vm402, %v1175, 0
      %v1295 = vsel %vm402, %v1176, 0
      %v1298 = vsel %vm402, %v1177, 0
      %v1301 = vsel %vm402, %v1178, 0
      %v1304 = vsel %vm402, %v1179, 0
      %v1307 = vsel %vm402, %v1180, 0
      %v1310 = vsel %vm402, %v1181, 0
      %v1313 = vsel %vm402, %v1182, 0
      %v1316 = vsel %vm402, %v1183, 0
      %v1319 = vsel %vm402, %v1184, 0
      %v1322 = vsel %vm402, %v1185, 0
      %v1325 = vsel %vm402, %v1186, 0
      %v1328 = vsel %vm402, %v1187, 0
      %v1331 = vsel %vm402, %v1188, 0
      %v1334 = vsel %vm402, %v1189, 0
      %v1337 = vsel %vm402, %v1190, 0
      %v1340 = vsel %vm402, %v1191, 0
      %v1343 = vsel %vm402, %v1192, 0
      %v1346 = vsel %vm402, %v1193, 0
      %v1349 = vsel %vm402, %v1194, 0
      %v1352 = vsel %vm402, %v1195, 0
      %v1355 = vsel %vm402, %v1196, 0
      %v1358 = vsel %vm402, %v1197, 0
      %v1361 = vsel %vm402, %v1198, 0
      %v1364 = vsel %vm402, %v1199, 0
      %v1367 = vsel %vm402, %v1200, 0
      %v1370 = vsel %vm402, %v1201, 0
      %v1373 = vsel %vm402, %v1202, 0
      %v1376 = vsel %vm402, %v1203, 0
      %v1379 = vsel %vm402, %v1204, 0
      %v1382 = vsel %vm402, %v1205, 0
      %v1385 = vsel %vm402, %v1206, 0
      %v1388 = vsel %vm402, %v1207, 0
      %v1391 = vsel %vm402, %v1208, 0
      %v1394 = vsel %vm402, %v1209, 0
      %v1397 = vsel %vm402, %v1210, 0
      %v1400 = vsel %vm402, %v1211, 0
      %v1403 = vsel %vm402, %v1212, 0
      %1405 = vmatprep.subr.mxu0 0.0
      %1406 = vmatpush1.msra.mxu0 %v1130
      %1407 = vmatprep.subr.mxu0 0.0
      %1408 = vmatpush1.msra.mxu0 %v1135
      %1409 = vmatprep.subr.mxu0 0.0
      %1410 = vmatpush1.msra.mxu0 %v1140
      %1411 = vmatprep.subr.mxu0 0.0
      %1412 = vmatpush1.msra.mxu0 %v1145
      %1413 = vmatprep.subr.mxu0 0.0
      %1414 = vmatpush1.msra.mxu0 0.0
      %1415 = vmatprep.subr.mxu0 0.0
      %1416 = vmatpush1.msra.mxu0 0.0
      %1417 = vmatprep.subr.mxu0 0.0
      %1418 = vmatpush1.msra.mxu0 0.0
      %1419 = vmatprep.subr.mxu0 0.0
      %1420 = vmatpush1.msra.mxu0 0.0
      %1421 = vmatprep.subr.mxu0 0.0
      %1422 = vmatpush1.msra.mxu0 0.0
      %1423 = vmatprep.subr.mxu0 0.0
      %1424 = vmatpush1.msra.mxu0 0.0
      %1425 = vmatprep.subr.mxu0 0.0
      %1426 = vmatpush1.msra.mxu0 0.0
      %1427 = vmatprep.subr.mxu0 0.0
      %1428 = vmatpush1.msra.mxu0 0.0
      %1429 = vmatprep.subr.mxu0 0.0
      %1430 = vmatpush1.msra.mxu0 0.0
      %1431 = vmatprep.subr.mxu0 0.0
      %1432 = vmatpush1.msra.mxu0 0.0
      %1433 = vmatprep.subr.mxu0 0.0
      %1434 = vmatpush1.msra.mxu0 0.0
      %1435 = vmatprep.subr.mxu0 0.0
      %1436 = vmatpush1.msra.mxu0 0.0
      %1437 = vmatprep.subr.mxu0 0.0
      %1438 = vmatpush1.msra.mxu0 0.0
      %1439 = vmatprep.subr.mxu0 0.0
      %1440 = vmatpush1.msra.mxu0 0.0
      %1441 = vmatprep.subr.mxu0 0.0
      %1442 = vmatpush1.msra.mxu0 0.0
      %1443 = vmatprep.subr.mxu0 0.0
      %1444 = vmatpush1.msra.mxu0 0.0
      %1445 = vmatprep.subr.mxu0 0.0
      %1446 = vmatpush1.msra.mxu0 0.0
      %1447 = vmatprep.subr.mxu0 0.0
      %1448 = vmatpush1.msra.mxu0 0.0
      %1449 = vmatprep.subr.mxu0 0.0
      %1450 = vmatpush1.msra.mxu0 0.0
      %1451 = vmatprep.subr.mxu0 0.0
      %1452 = vmatpush1.msra.mxu0 0.0
      %1453 = vmatprep.subr.mxu0 0.0
      %1454 = vmatpush1.msra.mxu0 0.0
      %1455 = vmatprep.subr.mxu0 0.0
      %1456 = vmatpush1.msra.mxu0 0.0
      %1457 = vmatprep.subr.mxu0 0.0
      %1458 = vmatpush1.msra.mxu0 0.0
      %1459 = vmatprep.subr.mxu0 0.0
      %1460 = vmatpush1.msra.mxu0 0.0
      %1461 = vmatprep.subr.mxu0 0.0
      %1462 = vmatpush1.msra.mxu0 0.0
      %1463 = vmatprep.subr.mxu0 0.0
      %1464 = vmatpush1.msra.mxu0 0.0
      %1465 = vmatprep.subr.mxu0 0.0
      %1466 = vmatpush1.msra.mxu0 0.0
      %1467 = vmatprep.subr.mxu0 0.0
      %1468 = vmatpush1.msra.mxu0 0.0
      %1469 = vmatprep.mubr.f32.mxu0 0.0
      %1470 = vmatmul.mubr.f32.gmra.mrb[0].mxu0 %v1214
      %v1471 = vpop.f32.mrb[0].mxu0
      %v1472 = vadd.f32 0.0, %v1471
      %v1473 = vpop.f32.mrb[0].mxu0
      %1474 = vmatprep.mubr.f32.mxu0 0.0
      %1475 = vmatmul.mubr.f32.gmra.mrb[0].mxu0 %v1217
      %v1476 = vpop.f32.mrb[0].mxu0
      %v1477 = vadd.f32 0.0, %v1476
      %v1478 = vpop.f32.mrb[0].mxu0
      %1479 = vmatprep.mubr.f32.mxu0 0.0
      %1480 = vmatmul.mubr.f32.gmra.mrb[0].mxu0 %v1220
      %v1481 = vpop.f32.mrb[0].mxu0
      %v1482 = vadd.f32 0.0, %v1481
      %v1483 = vpop.f32.mrb[0].mxu0
      %1484 = vmatprep.mubr.f32.mxu0 0.0
      %1485 = vmatmul.mubr.f32.gmra.mrb[0].mxu0 %v1223
      %v1486 = vpop.f32.mrb[0].mxu0
      %v1487 = vadd.f32 0.0, %v1486
      %v1488 = vpop.f32.mrb[0].mxu0
      %1489 = vmatprep.mubr.f32.mxu0 0.0
      %1490 = vmatmul.mubr.f32.gmra.mrb[0].mxu0 %v1226
      %v1491 = vpop.f32.mrb[0].mxu0
      %v1492 = vadd.f32 0.0, %v1491
      %v1493 = vpop.f32.mrb[0].mxu0
      %1494 = vmatprep.mubr.f32.mxu0 0.0
      %1495 = vmatmul.mubr.f32.gmra.mrb[0].mxu0 %v1229
      %v1496 = vpop.f32.mrb[0].mxu0
      %v1497 = vadd.f32 0.0, %v1496
      %v1498 = vpop.f32.mrb[0].mxu0
      %1499 = vmatprep.mubr.f32.mxu0 0.0
      %1500 = vmatmul.mubr.f32.gmra.mrb[0].mxu0 %v1232
      %v1501 = vpop.f32.mrb[0].mxu0
      %v1502 = vadd.f32 0.0, %v1501
      %v1503 = vpop.f32.mrb[0].mxu0
      %1504 = vmatprep.mubr.f32.mxu0 0.0
      %1505 = vmatmul.mubr.f32.gmra.mrb[0].mxu0 %v1235
      %v1506 = vpop.f32.mrb[0].mxu0
      %v1507 = vadd.f32 0.0, %v1506
      %v1508 = vpop.f32.mrb[0].mxu0
      %1509 = vmatprep.mubr.f32.mxu0 0.0
      %1510 = vmatmul.mubr.f32.gmra.mrb[0].mxu0 %v1238
      %v1511 = vpop.f32.mrb[0].mxu0
      %v1512 = vadd.f32 0.0, %v1511
      %v1513 = vpop.f32.mrb[0].mxu0
      %1514 = vmatprep.mubr.f32.mxu0 0.0
      %1515 = vmatmul.mubr.f32.gmra.mrb[0].mxu0 %v1241
      %v1516 = vpop.f32.mrb[0].mxu0
      %v1517 = vadd.f32 0.0, %v1516
      %v1518 = vpop.f32.mrb[0].mxu0
      %1519 = vmatprep.mubr.f32.mxu0 0.0
      %1520 = vmatmul.mubr.f32.gmra.mrb[0].mxu0 %v1244
      %v1521 = vpop.f32.mrb[0].mxu0
      %v1522 = vadd.f32 0.0, %v1521
      %v1523 = vpop.f32.mrb[0].mxu0
      %1524 = vmatprep.mubr.f32.mxu0 0.0
      %1525 = vmatmul.mubr.f32.gmra.mrb[0].mxu0 %v1247
      %v1526 = vpop.f32.mrb[0].mxu0
      %v1527 = vadd.f32 0.0, %v1526
      %v1528 = vpop.f32.mrb[0].mxu0
      %1529 = vmatprep.mubr.f32.mxu0 0.0
      %1530 = vmatmul.mubr.f32.gmra.mrb[0].mxu0 %v1250
      %v1531 = vpop.f32.mrb[0].mxu0
      %v1532 = vadd.f32 0.0, %v1531
      %v1533 = vpop.f32.mrb[0].mxu0
      %1534 = vmatprep.mubr.f32.mxu0 0.0
      %1535 = vmatmul.mubr.f32.gmra.mrb[0].mxu0 %v1253
      %v1536 = vpop.f32.mrb[0].mxu0
      %v1537 = vadd.f32 0.0, %v1536
      %v1538 = vpop.f32.mrb[0].mxu0
      %1539 = vmatprep.mubr.f32.mxu0 0.0
      %1540 = vmatmul.mubr.f32.gmra.mrb[0].mxu0 %v1256
      %v1541 = vpop.f32.mrb[0].mxu0
      %v1542 = vadd.f32 0.0, %v1541
      %v1543 = vpop.f32.mrb[0].mxu0
      %1544 = vmatprep.mubr.f32.mxu0 0.0
      %1545 = vmatmul.mubr.f32.gmra.mrb[0].mxu0 %v1259
      %v1546 = vpop.f32.mrb[0].mxu0
      %v1547 = vadd.f32 0.0, %v1546
      %v1548 = vpop.f32.mrb[0].mxu0
      %1549 = vmatprep.mubr.f32.mxu0 0.0
      %1550 = vmatmul.mubr.f32.gmra.mrb[0].mxu0 %v1262
      %v1551 = vpop.f32.mrb[0].mxu0
      %v1552 = vadd.f32 0.0, %v1551
      %v1553 = vpop.f32.mrb[0].mxu0
      %1554 = vmatprep.mubr.f32.mxu0 0.0
      %1555 = vmatmul.mubr.f32.gmra.mrb[0].mxu0 %v1265
      %v1556 = vpop.f32.mrb[0].mxu0
      %v1557 = vadd.f32 0.0, %v1556
      %v1558 = vpop.f32.mrb[0].mxu0
      %1559 = vmatprep.mubr.f32.mxu0 0.0
      %1560 = vmatmul.mubr.f32.gmra.mrb[0].mxu0 %v1268
      %v1561 = vpop.f32.mrb[0].mxu0
      %v1562 = vadd.f32 0.0, %v1561
      %v1563 = vpop.f32.mrb[0].mxu0
      %1564 = vmatprep.mubr.f32.mxu0 0.0
      %1565 = vmatmul.mubr.f32.gmra.mrb[0].mxu0 %v1271
      %v1566 = vpop.f32.mrb[0].mxu0
      %v1567 = vadd.f32 0.0, %v1566
      %v1568 = vpop.f32.mrb[0].mxu0
      %1569 = vmatprep.mubr.f32.mxu0 0.0
      %1570 = vmatmul.mubr.f32.gmra.mrb[0].mxu0 %v1274
      %v1571 = vpop.f32.mrb[0].mxu0
      %v1572 = vadd.f32 0.0, %v1571
      %v1573 = vpop.f32.mrb[0].mxu0
      %1574 = vmatprep.mubr.f32.mxu0 0.0
      %1575 = vmatmul.mubr.f32.gmra.mrb[0].mxu0 %v1277
      %v1576 = vpop.f32.mrb[0].mxu0
      %v1577 = vadd.f32 0.0, %v1576
      %v1578 = vpop.f32.mrb[0].mxu0
      %1579 = vmatprep.mubr.f32.mxu0 0.0
      %1580 = vmatmul.mubr.f32.gmra.mrb[0].mxu0 %v1280
      %v1581 = vpop.f32.mrb[0].mxu0
      %v1582 = vadd.f32 0.0, %v1581
      %v1583 = vpop.f32.mrb[0].mxu0
      %1584 = vmatprep.mubr.f32.mxu0 0.0
      %1585 = vmatmul.mubr.f32.gmra.mrb[0].mxu0 %v1283
      %v1586 = vpop.f32.mrb[0].mxu0
      %v1587 = vadd.f32 0.0, %v1586
      %v1588 = vpop.f32.mrb[0].mxu0
      %1589 = vmatprep.mubr.f32.mxu0 0.0
      %1590 = vmatmul.mubr.f32.gmra.mrb[0].mxu0 %v1286
      %v1591 = vpop.f32.mrb[0].mxu0
      %v1592 = vadd.f32 0.0, %v1591
      %v1593 = vpop.f32.mrb[0].mxu0
      %1594 = vmatprep.mubr.f32.mxu0 0.0
      %1595 = vmatmul.mubr.f32.gmra.mrb[0].mxu0 %v1289
      %v1596 = vpop.f32.mrb[0].mxu0
      %v1597 = vadd.f32 0.0, %v1596
      %v1598 = vpop.f32.mrb[0].mxu0
      %1599 = vmatprep.mubr.f32.mxu0 0.0
      %1600 = vmatmul.mubr.f32.gmra.mrb[0].mxu0 %v1292
      %v1601 = vpop.f32.mrb[0].mxu0
      %v1602 = vadd.f32 0.0, %v1601
      %v1603 = vpop.f32.mrb[0].mxu0
      %1604 = vmatprep.mubr.f32.mxu0 0.0
      %1605 = vmatmul.mubr.f32.gmra.mrb[0].mxu0 %v1295
      %v1606 = vpop.f32.mrb[0].mxu0
      %v1607 = vadd.f32 0.0, %v1606
      %v1608 = vpop.f32.mrb[0].mxu0
      %1609 = vmatprep.mubr.f32.mxu0 0.0
      %1610 = vmatmul.mubr.f32.gmra.mrb[0].mxu0 %v1298
      %v1611 = vpop.f32.mrb[0].mxu0
      %v1612 = vadd.f32 0.0, %v1611
      %v1613 = vpop.f32.mrb[0].mxu0
      %1614 = vmatprep.mubr.f32.mxu0 0.0
      %1615 = vmatmul.mubr.f32.gmra.mrb[0].mxu0 %v1301
      %v1616 = vpop.f32.mrb[0].mxu0
      %v1617 = vadd.f32 0.0, %v1616
      %v1618 = vpop.f32.mrb[0].mxu0
      %1619 = vmatprep.mubr.f32.mxu0 0.0
      %1620 = vmatmul.mubr.f32.gmra.mrb[0].mxu0 %v1304
      %v1621 = vpop.f32.mrb[0].mxu0
      %v1622 = vadd.f32 0.0, %v1621
      %v1623 = vpop.f32.mrb[0].mxu0
      %1624 = vmatprep.mubr.f32.mxu0 0.0
      %1625 = vmatmul.mubr.f32.gmra.mrb[0].mxu0 %v1307
      %v1626 = vpop.f32.mrb[0].mxu0
      %v1627 = vadd.f32 0.0, %v1626
      %v1628 = vpop.f32.mrb[0].mxu0
      %1629 = vmatprep.mubr.f32.mxu0 0.0
      %1630 = vmatmul.mubr.f32.gmra.mrb[0].mxu0 %v1310
      %v1631 = vpop.f32.mrb[0].mxu0
      %v1632 = vadd.f32 0.0, %v1631
      %v1633 = vpop.f32.mrb[0].mxu0
      %1634 = vmatprep.mubr.f32.mxu0 0.0
      %1635 = vmatmul.mubr.f32.gmra.mrb[0].mxu0 %v1313
      %v1636 = vpop.f32.mrb[0].mxu0
      %v1637 = vadd.f32 0.0, %v1636
      %v1638 = vpop.f32.mrb[0].mxu0
      %1639 = vmatprep.mubr.f32.mxu0 0.0
      %1640 = vmatmul.mubr.f32.gmra.mrb[0].mxu0 %v1316
      %v1641 = vpop.f32.mrb[0].mxu0
      %v1642 = vadd.f32 0.0, %v1641
      %v1643 = vpop.f32.mrb[0].mxu0
      %1644 = vmatprep.mubr.f32.mxu0 0.0
      %1645 = vmatmul.mubr.f32.gmra.mrb[0].mxu0 %v1319
      %v1646 = vpop.f32.mrb[0].mxu0
      %v1647 = vadd.f32 0.0, %v1646
      %v1648 = vpop.f32.mrb[0].mxu0
      %1649 = vmatprep.mubr.f32.mxu0 0.0
      %1650 = vmatmul.mubr.f32.gmra.mrb[0].mxu0 %v1322
      %v1651 = vpop.f32.mrb[0].mxu0
      %v1652 = vadd.f32 0.0, %v1651
      %v1653 = vpop.f32.mrb[0].mxu0
      %1654 = vmatprep.mubr.f32.mxu0 0.0
      %1655 = vmatmul.mubr.f32.gmra.mrb[0].mxu0 %v1325
      %v1656 = vpop.f32.mrb[0].mxu0
      %v1657 = vadd.f32 0.0, %v1656
      %v1658 = vpop.f32.mrb[0].mxu0
      %1659 = vmatprep.mubr.f32.mxu0 0.0
      %1660 = vmatmul.mubr.f32.gmra.mrb[0].mxu0 %v1328
      %v1661 = vpop.f32.mrb[0].mxu0
      %v1662 = vadd.f32 0.0, %v1661
      %v1663 = vpop.f32.mrb[0].mxu0
      %1664 = vmatprep.mubr.f32.mxu0 0.0
      %1665 = vmatmul.mubr.f32.gmra.mrb[0].mxu0 %v1331
      %v1666 = vpop.f32.mrb[0].mxu0
      %v1667 = vadd.f32 0.0, %v1666
      %v1668 = vpop.f32.mrb[0].mxu0
      %1669 = vmatprep.mubr.f32.mxu0 0.0
      %1670 = vmatmul.mubr.f32.gmra.mrb[0].mxu0 %v1334
      %v1671 = vpop.f32.mrb[0].mxu0
      %v1672 = vadd.f32 0.0, %v1671
      %v1673 = vpop.f32.mrb[0].mxu0
      %1674 = vmatprep.mubr.f32.mxu0 0.0
      %1675 = vmatmul.mubr.f32.gmra.mrb[0].mxu0 %v1337
      %v1676 = vpop.f32.mrb[0].mxu0
      %v1677 = vadd.f32 0.0, %v1676
      %v1678 = vpop.f32.mrb[0].mxu0
      %1679 = vmatprep.mubr.f32.mxu0 0.0
      %1680 = vmatmul.mubr.f32.gmra.mrb[0].mxu0 %v1340
      %v1681 = vpop.f32.mrb[0].mxu0
      %v1682 = vadd.f32 0.0, %v1681
      %v1683 = vpop.f32.mrb[0].mxu0
      %1684 = vmatprep.mubr.f32.mxu0 0.0
      %1685 = vmatmul.mubr.f32.gmra.mrb[0].mxu0 %v1343
      %v1686 = vpop.f32.mrb[0].mxu0
      %v1687 = vadd.f32 0.0, %v1686
      %v1688 = vpop.f32.mrb[0].mxu0
      %1689 = vmatprep.mubr.f32.mxu0 0.0
      %1690 = vmatmul.mubr.f32.gmra.mrb[0].mxu0 %v1346
      %v1691 = vpop.f32.mrb[0].mxu0
      %v1692 = vadd.f32 0.0, %v1691
      %v1693 = vpop.f32.mrb[0].mxu0
      %1694 = vmatprep.mubr.f32.mxu0 0.0
      %1695 = vmatmul.mubr.f32.gmra.mrb[0].mxu0 %v1349
      %v1696 = vpop.f32.mrb[0].mxu0
      %v1697 = vadd.f32 0.0, %v1696
      %v1698 = vpop.f32.mrb[0].mxu0
      %1699 = vmatprep.mubr.f32.mxu0 0.0
      %1700 = vmatmul.mubr.f32.gmra.mrb[0].mxu0 %v1352
      %v1701 = vpop.f32.mrb[0].mxu0
      %v1702 = vadd.f32 0.0, %v1701
      %v1703 = vpop.f32.mrb[0].mxu0
      %1704 = vmatprep.mubr.f32.mxu0 0.0
      %1705 = vmatmul.mubr.f32.gmra.mrb[0].mxu0 %v1355
      %v1706 = vpop.f32.mrb[0].mxu0
      %v1707 = vadd.f32 0.0, %v1706
      %v1708 = vpop.f32.mrb[0].mxu0
      %1709 = vmatprep.mubr.f32.mxu0 0.0
      %1710 = vmatmul.mubr.f32.gmra.mrb[0].mxu0 %v1358
      %v1711 = vpop.f32.mrb[0].mxu0
      %v1712 = vadd.f32 0.0, %v1711
      %v1713 = vpop.f32.mrb[0].mxu0
      %1714 = vmatprep.mubr.f32.mxu0 0.0
      %1715 = vmatmul.mubr.f32.gmra.mrb[0].mxu0 %v1361
      %v1716 = vpop.f32.mrb[0].mxu0
      %v1717 = vadd.f32 0.0, %v1716
      %v1718 = vpop.f32.mrb[0].mxu0
      %1719 = vmatprep.mubr.f32.mxu0 0.0
      %1720 = vmatmul.mubr.f32.gmra.mrb[0].mxu0 %v1364
      %v1721 = vpop.f32.mrb[0].mxu0
      %v1722 = vadd.f32 0.0, %v1721
      %v1723 = vpop.f32.mrb[0].mxu0
      %1724 = vmatprep.mubr.f32.mxu0 0.0
      %1725 = vmatmul.mubr.f32.gmra.mrb[0].mxu0 %v1367
      %v1726 = vpop.f32.mrb[0].mxu0
      %v1727 = vadd.f32 0.0, %v1726
      %v1728 = vpop.f32.mrb[0].mxu0
      %1729 = vmatprep.mubr.f32.mxu0 0.0
      %1730 = vmatmul.mubr.f32.gmra.mrb[0].mxu0 %v1370
      %v1731 = vpop.f32.mrb[0].mxu0
      %v1732 = vadd.f32 0.0, %v1731
      %v1733 = vpop.f32.mrb[0].mxu0
      %1734 = vmatprep.mubr.f32.mxu0 0.0
      %1735 = vmatmul.mubr.f32.gmra.mrb[0].mxu0 %v1373
      %v1736 = vpop.f32.mrb[0].mxu0
      %v1737 = vadd.f32 0.0, %v1736
      %v1738 = vpop.f32.mrb[0].mxu0
      %1739 = vmatprep.mubr.f32.mxu0 0.0
      %1740 = vmatmul.mubr.f32.gmra.mrb[0].mxu0 %v1376
      %v1741 = vpop.f32.mrb[0].mxu0
      %v1742 = vadd.f32 0.0, %v1741
      %v1743 = vpop.f32.mrb[0].mxu0
      %1744 = vmatprep.mubr.f32.mxu0 0.0
      %1745 = vmatmul.mubr.f32.gmra.mrb[0].mxu0 %v1379
      %v1746 = vpop.f32.mrb[0].mxu0
      %v1747 = vadd.f32 0.0, %v1746
      %v1748 = vpop.f32.mrb[0].mxu0
      %1749 = vmatprep.mubr.f32.mxu0 0.0
      %1750 = vmatmul.mubr.f32.gmra.mrb[0].mxu0 %v1382
      %v1751 = vpop.f32.mrb[0].mxu0
      %v1752 = vadd.f32 0.0, %v1751
      %v1753 = vpop.f32.mrb[0].mxu0
      %1754 = vmatprep.mubr.f32.mxu0 0.0
      %1755 = vmatmul.mubr.f32.gmra.mrb[0].mxu0 %v1385
      %v1756 = vpop.f32.mrb[0].mxu0
      %v1757 = vadd.f32 0.0, %v1756
      %v1758 = vpop.f32.mrb[0].mxu0
      %1759 = vmatprep.mubr.f32.mxu0 0.0
      %1760 = vmatmul.mubr.f32.gmra.mrb[0].mxu0 %v1388
      %v1761 = vpop.f32.mrb[0].mxu0
      %v1762 = vadd.f32 0.0, %v1761
      %v1763 = vpop.f32.mrb[0].mxu0
      %1764 = vmatprep.mubr.f32.mxu0 0.0
      %1765 = vmatmul.mubr.f32.gmra.mrb[0].mxu0 %v1391
      %v1766 = vpop.f32.mrb[0].mxu0
      %v1767 = vadd.f32 0.0, %v1766
      %v1768 = vpop.f32.mrb[0].mxu0
      %1769 = vmatprep.mubr.f32.mxu0 0.0
      %1770 = vmatmul.mubr.f32.gmra.mrb[0].mxu0 %v1394
      %v1771 = vpop.f32.mrb[0].mxu0
      %v1772 = vadd.f32 0.0, %v1771
      %v1773 = vpop.f32.mrb[0].mxu0
      %1774 = vmatprep.mubr.f32.mxu0 0.0
      %1775 = vmatmul.mubr.f32.gmra.mrb[0].mxu0 %v1397
      %v1776 = vpop.f32.mrb[0].mxu0
      %v1777 = vadd.f32 0.0, %v1776
      %v1778 = vpop.f32.mrb[0].mxu0
      %1779 = vmatprep.mubr.f32.mxu0 0.0
      %1780 = vmatmul.mubr.f32.gmra.mrb[0].mxu0 %v1400
      %v1781 = vpop.f32.mrb[0].mxu0
      %v1782 = vadd.f32 0.0, %v1781
      %v1783 = vpop.f32.mrb[0].mxu0
      %1784 = vmatprep.mubr.f32.mxu0 0.0
      %1785 = vmatmul.mubr.f32.gmra.mrb[0].mxu0 %v1403
      %v1786 = vpop.f32.mrb[0].mxu0
      %v1787 = vadd.f32 0.0, %v1786
      %v1788 = vpop.f32.mrb[0].mxu0
      %1789 = vdwg.mxu0
      %v1790 = vmax.f32 %v1472, 0.0
      %v1791 = vmax.f32 %v1477, 0.0
      %v1792 = vmax.f32 %v1482, 0.0
      %v1793 = vmax.f32 %v1487, 0.0
      %v1794 = vmax.f32 %v1492, 0.0
      %v1795 = vmax.f32 %v1497, 0.0
      %v1796 = vmax.f32 %v1502, 0.0
      %v1797 = vmax.f32 %v1507, 0.0
      %v1798 = vmax.f32 %v1512, 0.0
      %v1799 = vmax.f32 %v1517, 0.0
      %v1800 = vmax.f32 %v1522, 0.0
      %v1801 = vmax.f32 %v1527, 0.0
      %v1802 = vmax.f32 %v1532, 0.0
      %v1803 = vmax.f32 %v1537, 0.0
      %v1804 = vmax.f32 %v1542, 0.0
      %v1805 = vmax.f32 %v1547, 0.0
      %v1806 = vmax.f32 %v1552, 0.0
      %v1807 = vmax.f32 %v1557, 0.0
      %v1808 = vmax.f32 %v1562, 0.0
      %v1809 = vmax.f32 %v1567, 0.0
      %v1810 = vmax.f32 %v1572, 0.0
      %v1811 = vmax.f32 %v1577, 0.0
      %v1812 = vmax.f32 %v1582, 0.0
      %v1813 = vmax.f32 %v1587, 0.0
      %v1814 = vmax.f32 %v1592, 0.0
      %v1815 = vmax.f32 %v1597, 0.0
      %v1816 = vmax.f32 %v1602, 0.0
      %v1817 = vmax.f32 %v1607, 0.0
      %v1818 = vmax.f32 %v1612, 0.0
      %v1819 = vmax.f32 %v1617, 0.0
      %v1820 = vmax.f32 %v1622, 0.0
      %v1821 = vmax.f32 %v1627, 0.0
      %v1822 = vmax.f32 %v1632, 0.0
      %v1823 = vmax.f32 %v1637, 0.0
      %v1824 = vmax.f32 %v1642, 0.0
      %v1825 = vmax.f32 %v1647, 0.0
      %v1826 = vmax.f32 %v1652, 0.0
      %v1827 = vmax.f32 %v1657, 0.0
      %v1828 = vmax.f32 %v1662, 0.0
      %v1829 = vmax.f32 %v1667, 0.0
      %v1830 = vmax.f32 %v1672, 0.0
      %v1831 = vmax.f32 %v1677, 0.0
      %v1832 = vmax.f32 %v1682, 0.0
      %v1833 = vmax.f32 %v1687, 0.0
      %v1834 = vmax.f32 %v1692, 0.0
      %v1835 = vmax.f32 %v1697, 0.0
      %v1836 = vmax.f32 %v1702, 0.0
      %v1837 = vmax.f32 %v1707, 0.0
      %v1838 = vmax.f32 %v1712, 0.0
      %v1839 = vmax.f32 %v1717, 0.0
      %v1840 = vmax.f32 %v1722, 0.0
      %v1841 = vmax.f32 %v1727, 0.0
      %v1842 = vmax.f32 %v1732, 0.0
      %v1843 = vmax.f32 %v1737, 0.0
      %v1844 = vmax.f32 %v1742, 0.0
      %v1845 = vmax.f32 %v1747, 0.0
      %v1846 = vmax.f32 %v1752, 0.0
      %v1847 = vmax.f32 %v1757, 0.0
      %v1848 = vmax.f32 %v1762, 0.0
      %v1849 = vmax.f32 %v1767, 0.0
      %v1850 = vmax.f32 %v1772, 0.0
      %v1851 = vmax.f32 %v1777, 0.0
      %v1852 = vmax.f32 %v1782, 0.0
      %v1853 = vmax.f32 %v1787, 0.0
      %s1854 = scalar_lea.vmem %s3, 128
      %v1855 = vld [vmem:[%s1854] sm:$0xff]
      %v1856 = vld [vmem:[%s1854 + $0x8] sm:$0xff]
      %v1857 = vld [vmem:[%s1854 + $0x10] sm:$0xff]
      %v1858 = vld [vmem:[%s1854 + $0x18] sm:$0xff]
      %v1859 = vld [vmem:[%s1854 + $0x20] sm:$0xff]
      %v1860 = vld [vmem:[%s1854 + $0x28] sm:$0xff]
      %v1861 = vld [vmem:[%s1854 + $0x30] sm:$0xff]
      %v1862 = vld [vmem:[%s1854 + $0x38] sm:$0xff]
      %v1863 = vld [vmem:[%s1854 + $0x40] sm:$0xff]
      %v1864 = vld [vmem:[%s1854 + $0x48] sm:$0xff]
      %v1865 = vld [vmem:[%s1854 + $0x50] sm:$0xff]
      %v1866 = vld [vmem:[%s1854 + $0x58] sm:$0xff]
      %v1867 = vld [vmem:[%s1854 + $0x60] sm:$0xff]
      %v1868 = vld [vmem:[%s1854 + $0x68] sm:$0xff]
      %v1869 = vld [vmem:[%s1854 + $0x70] sm:$0xff]
      %v1870 = vld [vmem:[%s1854 + $0x78] sm:$0xff]
      %1871 = vmatprep.subr.mxu0 0.0
      %1872 = vmatpush1.msra.mxu0 %v1790
      %1873 = vmatprep.subr.mxu0 0.0
      %1874 = vmatpush1.msra.mxu0 %v1791
      %1875 = vmatprep.subr.mxu0 0.0
      %1876 = vmatpush1.msra.mxu0 %v1792
      %1877 = vmatprep.subr.mxu0 0.0
      %1878 = vmatpush1.msra.mxu0 %v1793
      %1879 = vmatprep.subr.mxu0 0.0
      %1880 = vmatpush1.msra.mxu0 %v1794
      %1881 = vmatprep.subr.mxu0 0.0
      %1882 = vmatpush1.msra.mxu0 %v1795
      %1883 = vmatprep.subr.mxu0 0.0
      %1884 = vmatpush1.msra.mxu0 %v1796
      %1885 = vmatprep.subr.mxu0 0.0
      %1886 = vmatpush1.msra.mxu0 %v1797
      %1887 = vmatprep.subr.mxu0 0.0
      %1888 = vmatpush1.msra.mxu0 %v1798
      %1889 = vmatprep.subr.mxu0 0.0
      %1890 = vmatpush1.msra.mxu0 %v1799
      %1891 = vmatprep.subr.mxu0 0.0
      %1892 = vmatpush1.msra.mxu0 %v1800
      %1893 = vmatprep.subr.mxu0 0.0
      %1894 = vmatpush1.msra.mxu0 %v1801
      %1895 = vmatprep.subr.mxu0 0.0
      %1896 = vmatpush1.msra.mxu0 %v1802
      %1897 = vmatprep.subr.mxu0 0.0
      %1898 = vmatpush1.msra.mxu0 %v1803
      %1899 = vmatprep.subr.mxu0 0.0
      %1900 = vmatpush1.msra.mxu0 %v1804
      %1901 = vmatprep.subr.mxu0 0.0
      %1902 = vmatpush1.msra.mxu0 %v1805
      %1903 = vmatprep.subr.mxu0 0.0
      %1904 = vmatpush1.msra.mxu0 %v1806
      %1905 = vmatprep.subr.mxu0 0.0
      %1906 = vmatpush1.msra.mxu0 %v1807
      %1907 = vmatprep.subr.mxu0 0.0
      %1908 = vmatpush1.msra.mxu0 %v1808
      %1909 = vmatprep.subr.mxu0 0.0
      %1910 = vmatpush1.msra.mxu0 %v1809
      %1911 = vmatprep.subr.mxu0 0.0
      %1912 = vmatpush1.msra.mxu0 %v1810
      %1913 = vmatprep.subr.mxu0 0.0
      %1914 = vmatpush1.msra.mxu0 %v1811
      %1915 = vmatprep.subr.mxu0 0.0
      %1916 = vmatpush1.msra.mxu0 %v1812
      %1917 = vmatprep.subr.mxu0 0.0
      %1918 = vmatpush1.msra.mxu0 %v1813
      %1919 = vmatprep.subr.mxu0 0.0
      %1920 = vmatpush1.msra.mxu0 %v1814
      %1921 = vmatprep.subr.mxu0 0.0
      %1922 = vmatpush1.msra.mxu0 %v1815
      %1923 = vmatprep.subr.mxu0 0.0
      %1924 = vmatpush1.msra.mxu0 %v1816
      %1925 = vmatprep.subr.mxu0 0.0
      %1926 = vmatpush1.msra.mxu0 %v1817
      %1927 = vmatprep.subr.mxu0 0.0
      %1928 = vmatpush1.msra.mxu0 %v1818
      %1929 = vmatprep.subr.mxu0 0.0
      %1930 = vmatpush1.msra.mxu0 %v1819
      %1931 = vmatprep.subr.mxu0 0.0
      %1932 = vmatpush1.msra.mxu0 %v1820
      %1933 = vmatprep.subr.mxu0 0.0
      %1934 = vmatpush1.msra.mxu0 %v1821
      %1935 = vmatprep.mubr.f32.mxu0 %v1856
      %1936 = vmatmul.mubr.f32.gmra.mrb[0].mxu0 %v1855
      %v1937 = vpop.f32.mrb[0].mxu0
      %v1938 = vadd.f32 0.0, %v1937
      %v1939 = vpop.f32.mrb[0].mxu0
      %1940 = vmatprep.mubr.f32.mxu0 %v1860
      %1941 = vmatmul.mubr.f32.gmra.mrb[0].mxu0 %v1859
      %v1942 = vpop.f32.mrb[0].mxu0
      %v1943 = vadd.f32 0.0, %v1942
      %v1944 = vpop.f32.mrb[0].mxu0
      %1945 = vmatprep.mubr.f32.mxu0 %v1864
      %1946 = vmatmul.mubr.f32.gmra.mrb[0].mxu0 %v1863
      %v1947 = vpop.f32.mrb[0].mxu0
      %v1948 = vadd.f32 0.0, %v1947
      %v1949 = vpop.f32.mrb[0].mxu0
      %1950 = vmatprep.mubr.f32.mxu0 %v1868
      %1951 = vmatmul.mubr.f32.gmra.mrb[0].mxu0 %v1867
      %v1952 = vpop.f32.mrb[0].mxu0
      %v1953 = vadd.f32 0.0, %v1952
      %v1954 = vpop.f32.mrb[0].mxu0
      %1955 = vdwg.mxu0
      %1956 = vmatprep.subr.mxu0 0.0
      %1957 = vmatpush1.msra.mxu0 %v1822
      %1958 = vmatprep.subr.mxu0 0.0
      %1959 = vmatpush1.msra.mxu0 %v1823
      %1960 = vmatprep.subr.mxu0 0.0
      %1961 = vmatpush1.msra.mxu0 %v1824
      %1962 = vmatprep.subr.mxu0 0.0
      %1963 = vmatpush1.msra.mxu0 %v1825
      %1964 = vmatprep.subr.mxu0 0.0
      %1965 = vmatpush1.msra.mxu0 %v1826
      %1966 = vmatprep.subr.mxu0 0.0
      %1967 = vmatpush1.msra.mxu0 %v1827
      %1968 = vmatprep.subr.mxu0 0.0
      %1969 = vmatpush1.msra.mxu0 %v1828
      %1970 = vmatprep.subr.mxu0 0.0
      %1971 = vmatpush1.msra.mxu0 %v1829
      %1972 = vmatprep.subr.mxu0 0.0
      %1973 = vmatpush1.msra.mxu0 %v1830
      %1974 = vmatprep.subr.mxu0 0.0
      %1975 = vmatpush1.msra.mxu0 %v1831
      %1976 = vmatprep.subr.mxu0 0.0
      %1977 = vmatpush1.msra.mxu0 %v1832
      %1978 = vmatprep.subr.mxu0 0.0
      %1979 = vmatpush1.msra.mxu0 %v1833
      %1980 = vmatprep.subr.mxu0 0.0
      %1981 = vmatpush1.msra.mxu0 %v1834
      %1982 = vmatprep.subr.mxu0 0.0
      %1983 = vmatpush1.msra.mxu0 %v1835
      %1984 = vmatprep.subr.mxu0 0.0
      %1985 = vmatpush1.msra.mxu0 %v1836
      %1986 = vmatprep.subr.mxu0 0.0
      %1987 = vmatpush1.msra.mxu0 %v1837
      %1988 = vmatprep.subr.mxu0 0.0
      %1989 = vmatpush1.msra.mxu0 %v1838
      %1990 = vmatprep.subr.mxu0 0.0
      %1991 = vmatpush1.msra.mxu0 %v1839
      %1992 = vmatprep.subr.mxu0 0.0
      %1993 = vmatpush1.msra.mxu0 %v1840
      %1994 = vmatprep.subr.mxu0 0.0
      %1995 = vmatpush1.msra.mxu0 %v1841
      %1996 = vmatprep.subr.mxu0 0.0
      %1997 = vmatpush1.msra.mxu0 %v1842
      %1998 = vmatprep.subr.mxu0 0.0
      %1999 = vmatpush1.msra.mxu0 %v1843
      %2000 = vmatprep.subr.mxu0 0.0
      %2001 = vmatpush1.msra.mxu0 %v1844
      %2002 = vmatprep.subr.mxu0 0.0
      %2003 = vmatpush1.msra.mxu0 %v1845
      %2004 = vmatprep.subr.mxu0 0.0
      %2005 = vmatpush1.msra.mxu0 %v1846
      %2006 = vmatprep.subr.mxu0 0.0
      %2007 = vmatpush1.msra.mxu0 %v1847
      %2008 = vmatprep.subr.mxu0 0.0
      %2009 = vmatpush1.msra.mxu0 %v1848
      %2010 = vmatprep.subr.mxu0 0.0
      %2011 = vmatpush1.msra.mxu0 %v1849
      %2012 = vmatprep.subr.mxu0 0.0
      %2013 = vmatpush1.msra.mxu0 %v1850
      %2014 = vmatprep.subr.mxu0 0.0
      %2015 = vmatpush1.msra.mxu0 %v1851
      %2016 = vmatprep.subr.mxu0 0.0
      %2017 = vmatpush1.msra.mxu0 %v1852
      %2018 = vmatprep.subr.mxu0 0.0
      %2019 = vmatpush1.msra.mxu0 %v1853
      %2020 = vmatprep.mubr.f32.mxu0 %v1858
      %2021 = vmatmul.mubr.f32.gmra.mrb[0].mxu0 %v1857
      %v2022 = vpop.f32.mrb[0].mxu0
      %v2023 = vadd.f32 %v1938, %v2022
      %v2024 = vpop.f32.mrb[0].mxu0
      %2025 = vmatprep.mubr.f32.mxu0 %v1862
      %2026 = vmatmul.mubr.f32.gmra.mrb[0].mxu0 %v1861
      %v2027 = vpop.f32.mrb[0].mxu0
      %v2028 = vadd.f32 %v1943, %v2027
      %v2029 = vpop.f32.mrb[0].mxu0
      %2030 = vmatprep.mubr.f32.mxu0 %v1866
      %2031 = vmatmul.mubr.f32.gmra.mrb[0].mxu0 %v1865
      %v2032 = vpop.f32.mrb[0].mxu0
      %v2033 = vadd.f32 %v1948, %v2032
      %v2034 = vpop.f32.mrb[0].mxu0
      %2035 = vmatprep.mubr.f32.mxu0 %v1870
      %2036 = vmatmul.mubr.f32.gmra.mrb[0].mxu0 %v1869
      %v2037 = vpop.f32.mrb[0].mxu0
      %v2038 = vadd.f32 %v1953, %v2037
      %v2039 = vpop.f32.mrb[0].mxu0
      %2040 = vdwg.mxu0
      %2041 = vmatprep.subr.mxu0 0.0
      %2042 = vmatpush1.msra.mxu0 %v980
      %2043 = vmatprep.subr.mxu0 0.0
      %2044 = vmatpush1.msra.mxu0 %v981
      %2045 = vmatprep.subr.mxu0 0.0
      %2046 = vmatpush1.msra.mxu0 %v982
      %2047 = vmatprep.subr.mxu0 0.0
      %2048 = vmatpush1.msra.mxu0 %v983
      %2049 = vmatprep.subr.mxu0 0.0
      %2050 = vmatpush1.msra.mxu0 %v984
      %2051 = vmatprep.subr.mxu0 0.0
      %2052 = vmatpush1.msra.mxu0 %v985
      %2053 = vmatprep.subr.mxu0 0.0
      %2054 = vmatpush1.msra.mxu0 %v986
      %2055 = vmatprep.subr.mxu0 0.0
      %2056 = vmatpush1.msra.mxu0 %v987
      %2057 = vmatprep.subr.mxu0 0.0
      %2058 = vmatpush1.msra.mxu0 %v988
      %2059 = vmatprep.subr.mxu0 0.0
      %2060 = vmatpush1.msra.mxu0 %v989
      %2061 = vmatprep.subr.mxu0 0.0
      %2062 = vmatpush1.msra.mxu0 %v990
      %2063 = vmatprep.subr.mxu0 0.0
      %2064 = vmatpush1.msra.mxu0 %v991
      %2065 = vmatprep.subr.mxu0 0.0
      %2066 = vmatpush1.msra.mxu0 %v992
      %2067 = vmatprep.subr.mxu0 0.0
      %2068 = vmatpush1.msra.mxu0 %v993
      %2069 = vmatprep.subr.mxu0 0.0
      %2070 = vmatpush1.msra.mxu0 %v994
      %2071 = vmatprep.subr.mxu0 0.0
      %2072 = vmatpush1.msra.mxu0 %v995
      %2073 = vmatprep.subr.mxu0 0.0
      %2074 = vmatpush1.msra.mxu0 %v996
      %2075 = vmatprep.subr.mxu0 0.0
      %2076 = vmatpush1.msra.mxu0 %v997
      %2077 = vmatprep.subr.mxu0 0.0
      %2078 = vmatpush1.msra.mxu0 %v998
      %2079 = vmatprep.subr.mxu0 0.0
      %2080 = vmatpush1.msra.mxu0 %v999
      %2081 = vmatprep.subr.mxu0 0.0
      %2082 = vmatpush1.msra.mxu0 %v1000
      %2083 = vmatprep.subr.mxu0 0.0
      %2084 = vmatpush1.msra.mxu0 %v1001
      %2085 = vmatprep.subr.mxu0 0.0
      %2086 = vmatpush1.msra.mxu0 %v1002
      %2087 = vmatprep.subr.mxu0 0.0
      %2088 = vmatpush1.msra.mxu0 %v1003
      %2089 = vmatprep.subr.mxu0 0.0
      %2090 = vmatpush1.msra.mxu0 %v1004
      %2091 = vmatprep.subr.mxu0 0.0
      %2092 = vmatpush1.msra.mxu0 %v1005
      %2093 = vmatprep.subr.mxu0 0.0
      %2094 = vmatpush1.msra.mxu0 %v1006
      %2095 = vmatprep.subr.mxu0 0.0
      %2096 = vmatpush1.msra.mxu0 %v1007
      %2097 = vmatprep.subr.mxu0 0.0
      %2098 = vmatpush1.msra.mxu0 %v1008
      %2099 = vmatprep.subr.mxu0 0.0
      %2100 = vmatpush1.msra.mxu0 %v1009
      %2101 = vmatprep.subr.mxu0 0.0
      %2102 = vmatpush1.msra.mxu0 %v1010
      %2103 = vmatprep.subr.mxu0 0.0
      %2104 = vmatpush1.msra.mxu0 %v1011
      %2105 = vmatprep.mubr.f32.mxu0 %v1045
      %2106 = vmatmul.mubr.f32.gmra.mrb[0].mxu0 %v1044
      %v2107 = vpop.f32.mrb[0].mxu0
      %v2108 = vadd.f32 %v2023, %v2107
      %v2109 = vpop.f32.mrb[0].mxu0
      %2110 = vmatprep.mubr.f32.mxu0 %v1049
      %2111 = vmatmul.mubr.f32.gmra.mrb[0].mxu0 %v1048
      %v2112 = vpop.f32.mrb[0].mxu0
      %v2113 = vadd.f32 %v2028, %v2112
      %v2114 = vpop.f32.mrb[0].mxu0
      %2115 = vmatprep.mubr.f32.mxu0 %v1053
      %2116 = vmatmul.mubr.f32.gmra.mrb[0].mxu0 %v1052
      %v2117 = vpop.f32.mrb[0].mxu0
      %v2118 = vadd.f32 %v2033, %v2117
      %v2119 = vpop.f32.mrb[0].mxu0
      %2120 = vmatprep.mubr.f32.mxu0 %v1057
      %2121 = vmatmul.mubr.f32.gmra.mrb[0].mxu0 %v1056
      %v2122 = vpop.f32.mrb[0].mxu0
      %v2123 = vadd.f32 %v2038, %v2122
      %v2124 = vpop.f32.mrb[0].mxu0
      %2125 = vdwg.mxu0
      %2126 = vmatprep.subr.mxu0 0.0
      %2127 = vmatpush1.msra.mxu0 %v1012
      %2128 = vmatprep.subr.mxu0 0.0
      %2129 = vmatpush1.msra.mxu0 %v1013
      %2130 = vmatprep.subr.mxu0 0.0
      %2131 = vmatpush1.msra.mxu0 %v1014
      %2132 = vmatprep.subr.mxu0 0.0
      %2133 = vmatpush1.msra.mxu0 %v1015
      %2134 = vmatprep.subr.mxu0 0.0
      %2135 = vmatpush1.msra.mxu0 %v1016
      %2136 = vmatprep.subr.mxu0 0.0
      %2137 = vmatpush1.msra.mxu0 %v1017
      %2138 = vmatprep.subr.mxu0 0.0
      %2139 = vmatpush1.msra.mxu0 %v1018
      %2140 = vmatprep.subr.mxu0 0.0
      %2141 = vmatpush1.msra.mxu0 %v1019
      %2142 = vmatprep.subr.mxu0 0.0
      %2143 = vmatpush1.msra.mxu0 %v1020
      %2144 = vmatprep.subr.mxu0 0.0
      %2145 = vmatpush1.msra.mxu0 %v1021
      %2146 = vmatprep.subr.mxu0 0.0
      %2147 = vmatpush1.msra.mxu0 %v1022
      %2148 = vmatprep.subr.mxu0 0.0
      %2149 = vmatpush1.msra.mxu0 %v1023
      %2150 = vmatprep.subr.mxu0 0.0
      %2151 = vmatpush1.msra.mxu0 %v1024
      %2152 = vmatprep.subr.mxu0 0.0
      %2153 = vmatpush1.msra.mxu0 %v1025
      %2154 = vmatprep.subr.mxu0 0.0
      %2155 = vmatpush1.msra.mxu0 %v1026
      %2156 = vmatprep.subr.mxu0 0.0
      %2157 = vmatpush1.msra.mxu0 %v1027
      %2158 = vmatprep.subr.mxu0 0.0
      %2159 = vmatpush1.msra.mxu0 %v1028
      %2160 = vmatprep.subr.mxu0 0.0
      %2161 = vmatpush1.msra.mxu0 %v1029
      %2162 = vmatprep.subr.mxu0 0.0
      %2163 = vmatpush1.msra.mxu0 %v1030
      %2164 = vmatprep.subr.mxu0 0.0
      %2165 = vmatpush1.msra.mxu0 %v1031
      %2166 = vmatprep.subr.mxu0 0.0
      %2167 = vmatpush1.msra.mxu0 %v1032
      %2168 = vmatprep.subr.mxu0 0.0
      %2169 = vmatpush1.msra.mxu0 %v1033
      %2170 = vmatprep.subr.mxu0 0.0
      %2171 = vmatpush1.msra.mxu0 %v1034
      %2172 = vmatprep.subr.mxu0 0.0
      %2173 = vmatpush1.msra.mxu0 %v1035
      %2174 = vmatprep.subr.mxu0 0.0
      %2175 = vmatpush1.msra.mxu0 %v1036
      %2176 = vmatprep.subr.mxu0 0.0
      %2177 = vmatpush1.msra.mxu0 %v1037
      %2178 = vmatprep.subr.mxu0 0.0
      %2179 = vmatpush1.msra.mxu0 %v1038
      %2180 = vmatprep.subr.mxu0 0.0
      %2181 = vmatpush1.msra.mxu0 %v1039
      %2182 = vmatprep.subr.mxu0 0.0
      %2183 = vmatpush1.msra.mxu0 %v1040
      %2184 = vmatprep.subr.mxu0 0.0
      %2185 = vmatpush1.msra.mxu0 %v1041
      %2186 = vmatprep.subr.mxu0 0.0
      %2187 = vmatpush1.msra.mxu0 %v1042
      %2188 = vmatprep.subr.mxu0 0.0
      %2189 = vmatpush1.msra.mxu0 %v1043
      %2190 = vmatprep.mubr.f32.mxu0 %v1047
      %2191 = vmatmul.mubr.f32.gmra.mrb[0].mxu0 %v1046
      %v2192 = vpop.f32.mrb[0].mxu0
      %v2193 = vadd.f32 %v2108, %v2192
      %v2194 = vpop.f32.mrb[0].mxu0
      %2195 = vmatprep.mubr.f32.mxu0 %v1051
      %2196 = vmatmul.mubr.f32.gmra.mrb[0].mxu0 %v1050
      %v2197 = vpop.f32.mrb[0].mxu0
      %v2198 = vadd.f32 %v2113, %v2197
      %v2199 = vpop.f32.mrb[0].mxu0
      %2200 = vmatprep.mubr.f32.mxu0 %v1055
      %2201 = vmatmul.mubr.f32.gmra.mrb[0].mxu0 %v1054
      %v2202 = vpop.f32.mrb[0].mxu0
      %v2203 = vadd.f32 %v2118, %v2202
      %v2204 = vpop.f32.mrb[0].mxu0
      %2205 = vmatprep.mubr.f32.mxu0 %v1059
      %2206 = vmatmul.mubr.f32.gmra.mrb[0].mxu0 %v1058
      %v2207 = vpop.f32.mrb[0].mxu0
      %v2208 = vadd.f32 %v2123, %v2207
      %v2209 = vpop.f32.mrb[0].mxu0
      %2210 = vdwg.mxu0
      %s2211 = scalar_lea.vmem %s1, 32
      %v2212 = vld [vmem:[%s2211] sm:$0xff]
      %v2213 = vld [vmem:[%s2211 + $0x8] sm:$0xff]
      %2214 = vmatprep.subr.mxu0 0.0
      %2215 = vmatpush1.msra.mxu0 %v2212
      %2216 = vmatprep.subr.mxu0 0.0
      %2217 = vmatpush1.msra.mxu0 %v2213
      %2218 = vmatprep.subr.mxu0 0.0
      %2219 = vmatpush1.msra.mxu0 0.0
      %2220 = vmatprep.subr.mxu0 0.0
      %2221 = vmatpush1.msra.mxu0 0.0
      %2222 = vmatprep.subr.mxu0 0.0
      %2223 = vmatpush1.msra.mxu0 0.0
      %2224 = vmatprep.subr.mxu0 0.0
      %2225 = vmatpush1.msra.mxu0 0.0
      %2226 = vmatprep.subr.mxu0 0.0
      %2227 = vmatpush1.msra.mxu0 0.0
      %2228 = vmatprep.subr.mxu0 0.0
      %2229 = vmatpush1.msra.mxu0 0.0
      %2230 = vmatprep.subr.mxu0 0.0
      %2231 = vmatpush1.msra.mxu0 0.0
      %2232 = vmatprep.subr.mxu0 0.0
      %2233 = vmatpush1.msra.mxu0 0.0
      %2234 = vmatprep.subr.mxu0 0.0
      %2235 = vmatpush1.msra.mxu0 0.0
      %2236 = vmatprep.subr.mxu0 0.0
      %2237 = vmatpush1.msra.mxu0 0.0
      %2238 = vmatprep.subr.mxu0 0.0
      %2239 = vmatpush1.msra.mxu0 0.0
      %2240 = vmatprep.subr.mxu0 0.0
      %2241 = vmatpush1.msra.mxu0 0.0
      %2242 = vmatprep.subr.mxu0 0.0
      %2243 = vmatpush1.msra.mxu0 0.0
      %2244 = vmatprep.subr.mxu0 0.0
      %2245 = vmatpush1.msra.mxu0 0.0
      %2246 = vmatprep.subr.mxu0 0.0
      %2247 = vmatpush1.msra.mxu0 0.0
      %2248 = vmatprep.subr.mxu0 0.0
      %2249 = vmatpush1.msra.mxu0 0.0
      %2250 = vmatprep.subr.mxu0 0.0
      %2251 = vmatpush1.msra.mxu0 0.0
      %2252 = vmatprep.subr.mxu0 0.0
      %2253 = vmatpush1.msra.mxu0 0.0
      %2254 = vmatprep.subr.mxu0 0.0
      %2255 = vmatpush1.msra.mxu0 0.0
      %2256 = vmatprep.subr.mxu0 0.0
      %2257 = vmatpush1.msra.mxu0 0.0
      %2258 = vmatprep.subr.mxu0 0.0
      %2259 = vmatpush1.msra.mxu0 0.0
      %2260 = vmatprep.subr.mxu0 0.0
      %2261 = vmatpush1.msra.mxu0 0.0
      %2262 = vmatprep.subr.mxu0 0.0
      %2263 = vmatpush1.msra.mxu0 0.0
      %2264 = vmatprep.subr.mxu0 0.0
      %2265 = vmatpush1.msra.mxu0 0.0
      %2266 = vmatprep.subr.mxu0 0.0
      %2267 = vmatpush1.msra.mxu0 0.0
      %2268 = vmatprep.subr.mxu0 0.0
      %2269 = vmatpush1.msra.mxu0 0.0
      %2270 = vmatprep.subr.mxu0 0.0
      %2271 = vmatpush1.msra.mxu0 0.0
      %2272 = vmatprep.subr.mxu0 0.0
      %2273 = vmatpush1.msra.mxu0 0.0
      %2274 = vmatprep.subr.mxu0 0.0
      %2275 = vmatpush1.msra.mxu0 0.0
      %2276 = vmatprep.subr.mxu0 0.0
      %2277 = vmatpush1.msra.mxu0 0.0
      %2278 = vmatprep.mubr.f32.mxu0 0.0
      %2279 = vmatmul.mubr.f32.gmra.mrb[0].mxu0 %v242
      %v2280 = vpop.f32.mrb[0].mxu0
      %v2281 = vadd.f32 0.0, %v2280
      %v2282 = vpop.f32.mrb[0].mxu0
      %2283 = vmatprep.mubr.f32.mxu0 0.0
      %2284 = vmatmul.mubr.f32.gmra.mrb[0].mxu0 %v245
      %v2285 = vpop.f32.mrb[0].mxu0
      %v2286 = vadd.f32 0.0, %v2285
      %v2287 = vpop.f32.mrb[0].mxu0
      %2288 = vmatprep.mubr.f32.mxu0 0.0
      %2289 = vmatmul.mubr.f32.gmra.mrb[0].mxu0 %v248
      %v2290 = vpop.f32.mrb[0].mxu0
      %v2291 = vadd.f32 0.0, %v2290
      %v2292 = vpop.f32.mrb[0].mxu0
      %2293 = vmatprep.mubr.f32.mxu0 0.0
      %2294 = vmatmul.mubr.f32.gmra.mrb[0].mxu0 %v251
      %v2295 = vpop.f32.mrb[0].mxu0
      %v2296 = vadd.f32 0.0, %v2295
      %v2297 = vpop.f32.mrb[0].mxu0
      %2298 = vdwg.mxu0
      %s2299 = scalar_lea.vmem %s2, 1024
      %v2300 = vld [vmem:[%s2299] sm:$0xff]
      %v2301 = vld [vmem:[%s2299 + $0x8] sm:$0xff]
      %v2302 = vld [vmem:[%s2299 + $0x10] sm:$0xff]
      %v2303 = vld [vmem:[%s2299 + $0x18] sm:$0xff]
      %v2304 = vld [vmem:[%s2299 + $0x20] sm:$0xff]
      %v2305 = vld [vmem:[%s2299 + $0x28] sm:$0xff]
      %v2306 = vld [vmem:[%s2299 + $0x30] sm:$0xff]
      %v2307 = vld [vmem:[%s2299 + $0x38] sm:$0xff]
      %v2308 = vld [vmem:[%s2299 + $0x40] sm:$0xff]
      %v2309 = vld [vmem:[%s2299 + $0x48] sm:$0xff]
      %v2310 = vld [vmem:[%s2299 + $0x50] sm:$0xff]
      %v2311 = vld [vmem:[%s2299 + $0x58] sm:$0xff]
      %v2312 = vld [vmem:[%s2299 + $0x60] sm:$0xff]
      %v2313 = vld [vmem:[%s2299 + $0x68] sm:$0xff]
      %v2314 = vld [vmem:[%s2299 + $0x70] sm:$0xff]
      %v2315 = vld [vmem:[%s2299 + $0x78] sm:$0xff]
      %v2316 = vld [vmem:[%s2299 + $0x80] sm:$0xff]
      %v2317 = vld [vmem:[%s2299 + $0x88] sm:$0xff]
      %v2318 = vld [vmem:[%s2299 + $0x90] sm:$0xff]
      %v2319 = vld [vmem:[%s2299 + $0x98] sm:$0xff]
      %v2320 = vld [vmem:[%s2299 + $0xa0] sm:$0xff]
      %v2321 = vld [vmem:[%s2299 + $0xa8] sm:$0xff]
      %v2322 = vld [vmem:[%s2299 + $0xb0] sm:$0xff]
      %v2323 = vld [vmem:[%s2299 + $0xb8] sm:$0xff]
      %v2324 = vld [vmem:[%s2299 + $0xc0] sm:$0xff]
      %v2325 = vld [vmem:[%s2299 + $0xc8] sm:$0xff]
      %v2326 = vld [vmem:[%s2299 + $0xd0] sm:$0xff]
      %v2327 = vld [vmem:[%s2299 + $0xd8] sm:$0xff]
      %v2328 = vld [vmem:[%s2299 + $0xe0] sm:$0xff]
      %v2329 = vld [vmem:[%s2299 + $0xe8] sm:$0xff]
      %v2330 = vld [vmem:[%s2299 + $0xf0] sm:$0xff]
      %v2331 = vld [vmem:[%s2299 + $0xf8] sm:$0xff]
      %v2332 = vld [vmem:[%s2299 + $0x100] sm:$0xff]
      %v2333 = vld [vmem:[%s2299 + $0x108] sm:$0xff]
      %v2334 = vld [vmem:[%s2299 + $0x110] sm:$0xff]
      %v2335 = vld [vmem:[%s2299 + $0x118] sm:$0xff]
      %v2336 = vld [vmem:[%s2299 + $0x120] sm:$0xff]
      %v2337 = vld [vmem:[%s2299 + $0x128] sm:$0xff]
      %v2338 = vld [vmem:[%s2299 + $0x130] sm:$0xff]
      %v2339 = vld [vmem:[%s2299 + $0x138] sm:$0xff]
      %v2340 = vld [vmem:[%s2299 + $0x140] sm:$0xff]
      %v2341 = vld [vmem:[%s2299 + $0x148] sm:$0xff]
      %v2342 = vld [vmem:[%s2299 + $0x150] sm:$0xff]
      %v2343 = vld [vmem:[%s2299 + $0x158] sm:$0xff]
      %v2344 = vld [vmem:[%s2299 + $0x160] sm:$0xff]
      %v2345 = vld [vmem:[%s2299 + $0x168] sm:$0xff]
      %v2346 = vld [vmem:[%s2299 + $0x170] sm:$0xff]
      %v2347 = vld [vmem:[%s2299 + $0x178] sm:$0xff]
      %v2348 = vld [vmem:[%s2299 + $0x180] sm:$0xff]
      %v2349 = vld [vmem:[%s2299 + $0x188] sm:$0xff]
      %v2350 = vld [vmem:[%s2299 + $0x190] sm:$0xff]
      %v2351 = vld [vmem:[%s2299 + $0x198] sm:$0xff]
      %v2352 = vld [vmem:[%s2299 + $0x1a0] sm:$0xff]
      %v2353 = vld [vmem:[%s2299 + $0x1a8] sm:$0xff]
      %v2354 = vld [vmem:[%s2299 + $0x1b0] sm:$0xff]
      %v2355 = vld [vmem:[%s2299 + $0x1b8] sm:$0xff]
      %v2356 = vld [vmem:[%s2299 + $0x1c0] sm:$0xff]
      %v2357 = vld [vmem:[%s2299 + $0x1c8] sm:$0xff]
      %v2358 = vld [vmem:[%s2299 + $0x1d0] sm:$0xff]
      %v2359 = vld [vmem:[%s2299 + $0x1d8] sm:$0xff]
      %v2360 = vld [vmem:[%s2299 + $0x1e0] sm:$0xff]
      %v2361 = vld [vmem:[%s2299 + $0x1e8] sm:$0xff]
      %v2362 = vld [vmem:[%s2299 + $0x1f0] sm:$0xff]
      %v2363 = vld [vmem:[%s2299 + $0x1f8] sm:$0xff]
      %v2365 = vsel %vm402, %v2300, 0
      %v2368 = vsel %vm402, %v2301, 0
      %v2371 = vsel %vm402, %v2302, 0
      %v2374 = vsel %vm402, %v2303, 0
      %v2377 = vsel %vm402, %v2304, 0
      %v2380 = vsel %vm402, %v2305, 0
      %v2383 = vsel %vm402, %v2306, 0
      %v2386 = vsel %vm402, %v2307, 0
      %v2389 = vsel %vm402, %v2308, 0
      %v2392 = vsel %vm402, %v2309, 0
      %v2395 = vsel %vm402, %v2310, 0
      %v2398 = vsel %vm402, %v2311, 0
      %v2401 = vsel %vm402, %v2312, 0
      %v2404 = vsel %vm402, %v2313, 0
      %v2407 = vsel %vm402, %v2314, 0
      %v2410 = vsel %vm402, %v2315, 0
      %v2413 = vsel %vm402, %v2316, 0
      %v2416 = vsel %vm402, %v2317, 0
      %v2419 = vsel %vm402, %v2318, 0
      %v2422 = vsel %vm402, %v2319, 0
      %v2425 = vsel %vm402, %v2320, 0
      %v2428 = vsel %vm402, %v2321, 0
      %v2431 = vsel %vm402, %v2322, 0
      %v2434 = vsel %vm402, %v2323, 0
      %v2437 = vsel %vm402, %v2324, 0
      %v2440 = vsel %vm402, %v2325, 0
      %v2443 = vsel %vm402, %v2326, 0
      %v2446 = vsel %vm402, %v2327, 0
      %v2449 = vsel %vm402, %v2328, 0
      %v2452 = vsel %vm402, %v2329, 0
      %v2455 = vsel %vm402, %v2330, 0
      %v2458 = vsel %vm402, %v2331, 0
      %v2461 = vsel %vm402, %v2332, 0
      %v2464 = vsel %vm402, %v2333, 0
      %v2467 = vsel %vm402, %v2334, 0
      %v2470 = vsel %vm402, %v2335, 0
      %v2473 = vsel %vm402, %v2336, 0
      %v2476 = vsel %vm402, %v2337, 0
      %v2479 = vsel %vm402, %v2338, 0
      %v2482 = vsel %vm402, %v2339, 0
      %v2485 = vsel %vm402, %v2340, 0
      %v2488 = vsel %vm402, %v2341, 0
      %v2491 = vsel %vm402, %v2342, 0
      %v2494 = vsel %vm402, %v2343, 0
      %v2497 = vsel %vm402, %v2344, 0
      %v2500 = vsel %vm402, %v2345, 0
      %v2503 = vsel %vm402, %v2346, 0
      %v2506 = vsel %vm402, %v2347, 0
      %v2509 = vsel %vm402, %v2348, 0
      %v2512 = vsel %vm402, %v2349, 0
      %v2515 = vsel %vm402, %v2350, 0
      %v2518 = vsel %vm402, %v2351, 0
      %v2521 = vsel %vm402, %v2352, 0
      %v2524 = vsel %vm402, %v2353, 0
      %v2527 = vsel %vm402, %v2354, 0
      %v2530 = vsel %vm402, %v2355, 0
      %v2533 = vsel %vm402, %v2356, 0
      %v2536 = vsel %vm402, %v2357, 0
      %v2539 = vsel %vm402, %v2358, 0
      %v2542 = vsel %vm402, %v2359, 0
      %v2545 = vsel %vm402, %v2360, 0
      %v2548 = vsel %vm402, %v2361, 0
      %v2551 = vsel %vm402, %v2362, 0
      %v2554 = vsel %vm402, %v2363, 0
      %2556 = vmatprep.subr.mxu0 0.0
      %2557 = vmatpush1.msra.mxu0 %v2281
      %2558 = vmatprep.subr.mxu0 0.0
      %2559 = vmatpush1.msra.mxu0 %v2286
      %2560 = vmatprep.subr.mxu0 0.0
      %2561 = vmatpush1.msra.mxu0 %v2291
      %2562 = vmatprep.subr.mxu0 0.0
      %2563 = vmatpush1.msra.mxu0 %v2296
      %2564 = vmatprep.subr.mxu0 0.0
      %2565 = vmatpush1.msra.mxu0 0.0
      %2566 = vmatprep.subr.mxu0 0.0
      %2567 = vmatpush1.msra.mxu0 0.0
      %2568 = vmatprep.subr.mxu0 0.0
      %2569 = vmatpush1.msra.mxu0 0.0
      %2570 = vmatprep.subr.mxu0 0.0
      %2571 = vmatpush1.msra.mxu0 0.0
      %2572 = vmatprep.subr.mxu0 0.0
      %2573 = vmatpush1.msra.mxu0 0.0
      %2574 = vmatprep.subr.mxu0 0.0
      %2575 = vmatpush1.msra.mxu0 0.0
      %2576 = vmatprep.subr.mxu0 0.0
      %2577 = vmatpush1.msra.mxu0 0.0
      %2578 = vmatprep.subr.mxu0 0.0
      %2579 = vmatpush1.msra.mxu0 0.0
      %2580 = vmatprep.subr.mxu0 0.0
      %2581 = vmatpush1.msra.mxu0 0.0
      %2582 = vmatprep.subr.mxu0 0.0
      %2583 = vmatpush1.msra.mxu0 0.0
      %2584 = vmatprep.subr.mxu0 0.0
      %2585 = vmatpush1.msra.mxu0 0.0
      %2586 = vmatprep.subr.mxu0 0.0
      %2587 = vmatpush1.msra.mxu0 0.0
      %2588 = vmatprep.subr.mxu0 0.0
      %2589 = vmatpush1.msra.mxu0 0.0
      %2590 = vmatprep.subr.mxu0 0.0
      %2591 = vmatpush1.msra.mxu0 0.0
      %2592 = vmatprep.subr.mxu0 0.0
      %2593 = vmatpush1.msra.mxu0 0.0
      %2594 = vmatprep.subr.mxu0 0.0
      %2595 = vmatpush1.msra.mxu0 0.0
      %2596 = vmatprep.subr.mxu0 0.0
      %2597 = vmatpush1.msra.mxu0 0.0
      %2598 = vmatprep.subr.mxu0 0.0
      %2599 = vmatpush1.msra.mxu0 0.0
      %2600 = vmatprep.subr.mxu0 0.0
      %2601 = vmatpush1.msra.mxu0 0.0
      %2602 = vmatprep.subr.mxu0 0.0
      %2603 = vmatpush1.msra.mxu0 0.0
      %2604 = vmatprep.subr.mxu0 0.0
      %2605 = vmatpush1.msra.mxu0 0.0
      %2606 = vmatprep.subr.mxu0 0.0
      %2607 = vmatpush1.msra.mxu0 0.0
      %2608 = vmatprep.subr.mxu0 0.0
      %2609 = vmatpush1.msra.mxu0 0.0
      %2610 = vmatprep.subr.mxu0 0.0
      %2611 = vmatpush1.msra.mxu0 0.0
      %2612 = vmatprep.subr.mxu0 0.0
      %2613 = vmatpush1.msra.mxu0 0.0
      %2614 = vmatprep.subr.mxu0 0.0
      %2615 = vmatpush1.msra.mxu0 0.0
      %2616 = vmatprep.subr.mxu0 0.0
      %2617 = vmatpush1.msra.mxu0 0.0
      %2618 = vmatprep.subr.mxu0 0.0
      %2619 = vmatpush1.msra.mxu0 0.0
      %2620 = vmatprep.mubr.f32.mxu0 0.0
      %2621 = vmatmul.mubr.f32.gmra.mrb[0].mxu0 %v2365
      %v2622 = vpop.f32.mrb[0].mxu0
      %v2623 = vadd.f32 0.0, %v2622
      %v2624 = vpop.f32.mrb[0].mxu0
      %2625 = vmatprep.mubr.f32.mxu0 0.0
      %2626 = vmatmul.mubr.f32.gmra.mrb[0].mxu0 %v2368
      %v2627 = vpop.f32.mrb[0].mxu0
      %v2628 = vadd.f32 0.0, %v2627
      %v2629 = vpop.f32.mrb[0].mxu0
      %2630 = vmatprep.mubr.f32.mxu0 0.0
      %2631 = vmatmul.mubr.f32.gmra.mrb[0].mxu0 %v2371
      %v2632 = vpop.f32.mrb[0].mxu0
      %v2633 = vadd.f32 0.0, %v2632
      %v2634 = vpop.f32.mrb[0].mxu0
      %2635 = vmatprep.mubr.f32.mxu0 0.0
      %2636 = vmatmul.mubr.f32.gmra.mrb[0].mxu0 %v2374
      %v2637 = vpop.f32.mrb[0].mxu0
      %v2638 = vadd.f32 0.0, %v2637
      %v2639 = vpop.f32.mrb[0].mxu0
      %2640 = vmatprep.mubr.f32.mxu0 0.0
      %2641 = vmatmul.mubr.f32.gmra.mrb[0].mxu0 %v2377
      %v2642 = vpop.f32.mrb[0].mxu0
      %v2643 = vadd.f32 0.0, %v2642
      %v2644 = vpop.f32.mrb[0].mxu0
      %2645 = vmatprep.mubr.f32.mxu0 0.0
      %2646 = vmatmul.mubr.f32.gmra.mrb[0].mxu0 %v2380
      %v2647 = vpop.f32.mrb[0].mxu0
      %v2648 = vadd.f32 0.0, %v2647
      %v2649 = vpop.f32.mrb[0].mxu0
      %2650 = vmatprep.mubr.f32.mxu0 0.0
      %2651 = vmatmul.mubr.f32.gmra.mrb[0].mxu0 %v2383
      %v2652 = vpop.f32.mrb[0].mxu0
      %v2653 = vadd.f32 0.0, %v2652
      %v2654 = vpop.f32.mrb[0].mxu0
      %2655 = vmatprep.mubr.f32.mxu0 0.0
      %2656 = vmatmul.mubr.f32.gmra.mrb[0].mxu0 %v2386
      %v2657 = vpop.f32.mrb[0].mxu0
      %v2658 = vadd.f32 0.0, %v2657
      %v2659 = vpop.f32.mrb[0].mxu0
      %2660 = vmatprep.mubr.f32.mxu0 0.0
      %2661 = vmatmul.mubr.f32.gmra.mrb[0].mxu0 %v2389
      %v2662 = vpop.f32.mrb[0].mxu0
      %v2663 = vadd.f32 0.0, %v2662
      %v2664 = vpop.f32.mrb[0].mxu0
      %2665 = vmatprep.mubr.f32.mxu0 0.0
      %2666 = vmatmul.mubr.f32.gmra.mrb[0].mxu0 %v2392
      %v2667 = vpop.f32.mrb[0].mxu0
      %v2668 = vadd.f32 0.0, %v2667
      %v2669 = vpop.f32.mrb[0].mxu0
      %2670 = vmatprep.mubr.f32.mxu0 0.0
      %2671 = vmatmul.mubr.f32.gmra.mrb[0].mxu0 %v2395
      %v2672 = vpop.f32.mrb[0].mxu0
      %v2673 = vadd.f32 0.0, %v2672
      %v2674 = vpop.f32.mrb[0].mxu0
      %2675 = vmatprep.mubr.f32.mxu0 0.0
      %2676 = vmatmul.mubr.f32.gmra.mrb[0].mxu0 %v2398
      %v2677 = vpop.f32.mrb[0].mxu0
      %v2678 = vadd.f32 0.0, %v2677
      %v2679 = vpop.f32.mrb[0].mxu0
      %2680 = vmatprep.mubr.f32.mxu0 0.0
      %2681 = vmatmul.mubr.f32.gmra.mrb[0].mxu0 %v2401
      %v2682 = vpop.f32.mrb[0].mxu0
      %v2683 = vadd.f32 0.0, %v2682
      %v2684 = vpop.f32.mrb[0].mxu0
      %2685 = vmatprep.mubr.f32.mxu0 0.0
      %2686 = vmatmul.mubr.f32.gmra.mrb[0].mxu0 %v2404
      %v2687 = vpop.f32.mrb[0].mxu0
      %v2688 = vadd.f32 0.0, %v2687
      %v2689 = vpop.f32.mrb[0].mxu0
      %2690 = vmatprep.mubr.f32.mxu0 0.0
      %2691 = vmatmul.mubr.f32.gmra.mrb[0].mxu0 %v2407
      %v2692 = vpop.f32.mrb[0].mxu0
      %v2693 = vadd.f32 0.0, %v2692
      %v2694 = vpop.f32.mrb[0].mxu0
      %2695 = vmatprep.mubr.f32.mxu0 0.0
      %2696 = vmatmul.mubr.f32.gmra.mrb[0].mxu0 %v2410
      %v2697 = vpop.f32.mrb[0].mxu0
      %v2698 = vadd.f32 0.0, %v2697
      %v2699 = vpop.f32.mrb[0].mxu0
      %2700 = vmatprep.mubr.f32.mxu0 0.0
      %2701 = vmatmul.mubr.f32.gmra.mrb[0].mxu0 %v2413
      %v2702 = vpop.f32.mrb[0].mxu0
      %v2703 = vadd.f32 0.0, %v2702
      %v2704 = vpop.f32.mrb[0].mxu0
      %2705 = vmatprep.mubr.f32.mxu0 0.0
      %2706 = vmatmul.mubr.f32.gmra.mrb[0].mxu0 %v2416
      %v2707 = vpop.f32.mrb[0].mxu0
      %v2708 = vadd.f32 0.0, %v2707
      %v2709 = vpop.f32.mrb[0].mxu0
      %2710 = vmatprep.mubr.f32.mxu0 0.0
      %2711 = vmatmul.mubr.f32.gmra.mrb[0].mxu0 %v2419
      %v2712 = vpop.f32.mrb[0].mxu0
      %v2713 = vadd.f32 0.0, %v2712
      %v2714 = vpop.f32.mrb[0].mxu0
      %2715 = vmatprep.mubr.f32.mxu0 0.0
      %2716 = vmatmul.mubr.f32.gmra.mrb[0].mxu0 %v2422
      %v2717 = vpop.f32.mrb[0].mxu0
      %v2718 = vadd.f32 0.0, %v2717
      %v2719 = vpop.f32.mrb[0].mxu0
      %2720 = vmatprep.mubr.f32.mxu0 0.0
      %2721 = vmatmul.mubr.f32.gmra.mrb[0].mxu0 %v2425
      %v2722 = vpop.f32.mrb[0].mxu0
      %v2723 = vadd.f32 0.0, %v2722
      %v2724 = vpop.f32.mrb[0].mxu0
      %2725 = vmatprep.mubr.f32.mxu0 0.0
      %2726 = vmatmul.mubr.f32.gmra.mrb[0].mxu0 %v2428
      %v2727 = vpop.f32.mrb[0].mxu0
      %v2728 = vadd.f32 0.0, %v2727
      %v2729 = vpop.f32.mrb[0].mxu0
      %2730 = vmatprep.mubr.f32.mxu0 0.0
      %2731 = vmatmul.mubr.f32.gmra.mrb[0].mxu0 %v2431
      %v2732 = vpop.f32.mrb[0].mxu0
      %v2733 = vadd.f32 0.0, %v2732
      %v2734 = vpop.f32.mrb[0].mxu0
      %2735 = vmatprep.mubr.f32.mxu0 0.0
      %2736 = vmatmul.mubr.f32.gmra.mrb[0].mxu0 %v2434
      %v2737 = vpop.f32.mrb[0].mxu0
      %v2738 = vadd.f32 0.0, %v2737
      %v2739 = vpop.f32.mrb[0].mxu0
      %2740 = vmatprep.mubr.f32.mxu0 0.0
      %2741 = vmatmul.mubr.f32.gmra.mrb[0].mxu0 %v2437
      %v2742 = vpop.f32.mrb[0].mxu0
      %v2743 = vadd.f32 0.0, %v2742
      %v2744 = vpop.f32.mrb[0].mxu0
      %2745 = vmatprep.mubr.f32.mxu0 0.0
      %2746 = vmatmul.mubr.f32.gmra.mrb[0].mxu0 %v2440
      %v2747 = vpop.f32.mrb[0].mxu0
      %v2748 = vadd.f32 0.0, %v2747
      %v2749 = vpop.f32.mrb[0].mxu0
      %2750 = vmatprep.mubr.f32.mxu0 0.0
      %2751 = vmatmul.mubr.f32.gmra.mrb[0].mxu0 %v2443
      %v2752 = vpop.f32.mrb[0].mxu0
      %v2753 = vadd.f32 0.0, %v2752
      %v2754 = vpop.f32.mrb[0].mxu0
      %2755 = vmatprep.mubr.f32.mxu0 0.0
      %2756 = vmatmul.mubr.f32.gmra.mrb[0].mxu0 %v2446
      %v2757 = vpop.f32.mrb[0].mxu0
      %v2758 = vadd.f32 0.0, %v2757
      %v2759 = vpop.f32.mrb[0].mxu0
      %2760 = vmatprep.mubr.f32.mxu0 0.0
      %2761 = vmatmul.mubr.f32.gmra.mrb[0].mxu0 %v2449
      %v2762 = vpop.f32.mrb[0].mxu0
      %v2763 = vadd.f32 0.0, %v2762
      %v2764 = vpop.f32.mrb[0].mxu0
      %2765 = vmatprep.mubr.f32.mxu0 0.0
      %2766 = vmatmul.mubr.f32.gmra.mrb[0].mxu0 %v2452
      %v2767 = vpop.f32.mrb[0].mxu0
      %v2768 = vadd.f32 0.0, %v2767
      %v2769 = vpop.f32.mrb[0].mxu0
      %2770 = vmatprep.mubr.f32.mxu0 0.0
      %2771 = vmatmul.mubr.f32.gmra.mrb[0].mxu0 %v2455
      %v2772 = vpop.f32.mrb[0].mxu0
      %v2773 = vadd.f32 0.0, %v2772
      %v2774 = vpop.f32.mrb[0].mxu0
      %2775 = vmatprep.mubr.f32.mxu0 0.0
      %2776 = vmatmul.mubr.f32.gmra.mrb[0].mxu0 %v2458
      %v2777 = vpop.f32.mrb[0].mxu0
      %v2778 = vadd.f32 0.0, %v2777
      %v2779 = vpop.f32.mrb[0].mxu0
      %2780 = vmatprep.mubr.f32.mxu0 0.0
      %2781 = vmatmul.mubr.f32.gmra.mrb[0].mxu0 %v2461
      %v2782 = vpop.f32.mrb[0].mxu0
      %v2783 = vadd.f32 0.0, %v2782
      %v2784 = vpop.f32.mrb[0].mxu0
      %2785 = vmatprep.mubr.f32.mxu0 0.0
      %2786 = vmatmul.mubr.f32.gmra.mrb[0].mxu0 %v2464
      %v2787 = vpop.f32.mrb[0].mxu0
      %v2788 = vadd.f32 0.0, %v2787
      %v2789 = vpop.f32.mrb[0].mxu0
      %2790 = vmatprep.mubr.f32.mxu0 0.0
      %2791 = vmatmul.mubr.f32.gmra.mrb[0].mxu0 %v2467
      %v2792 = vpop.f32.mrb[0].mxu0
      %v2793 = vadd.f32 0.0, %v2792
      %v2794 = vpop.f32.mrb[0].mxu0
      %2795 = vmatprep.mubr.f32.mxu0 0.0
      %2796 = vmatmul.mubr.f32.gmra.mrb[0].mxu0 %v2470
      %v2797 = vpop.f32.mrb[0].mxu0
      %v2798 = vadd.f32 0.0, %v2797
      %v2799 = vpop.f32.mrb[0].mxu0
      %2800 = vmatprep.mubr.f32.mxu0 0.0
      %2801 = vmatmul.mubr.f32.gmra.mrb[0].mxu0 %v2473
      %v2802 = vpop.f32.mrb[0].mxu0
      %v2803 = vadd.f32 0.0, %v2802
      %v2804 = vpop.f32.mrb[0].mxu0
      %2805 = vmatprep.mubr.f32.mxu0 0.0
      %2806 = vmatmul.mubr.f32.gmra.mrb[0].mxu0 %v2476
      %v2807 = vpop.f32.mrb[0].mxu0
      %v2808 = vadd.f32 0.0, %v2807
      %v2809 = vpop.f32.mrb[0].mxu0
      %2810 = vmatprep.mubr.f32.mxu0 0.0
      %2811 = vmatmul.mubr.f32.gmra.mrb[0].mxu0 %v2479
      %v2812 = vpop.f32.mrb[0].mxu0
      %v2813 = vadd.f32 0.0, %v2812
      %v2814 = vpop.f32.mrb[0].mxu0
      %2815 = vmatprep.mubr.f32.mxu0 0.0
      %2816 = vmatmul.mubr.f32.gmra.mrb[0].mxu0 %v2482
      %v2817 = vpop.f32.mrb[0].mxu0
      %v2818 = vadd.f32 0.0, %v2817
      %v2819 = vpop.f32.mrb[0].mxu0
      %2820 = vmatprep.mubr.f32.mxu0 0.0
      %2821 = vmatmul.mubr.f32.gmra.mrb[0].mxu0 %v2485
      %v2822 = vpop.f32.mrb[0].mxu0
      %v2823 = vadd.f32 0.0, %v2822
      %v2824 = vpop.f32.mrb[0].mxu0
      %2825 = vmatprep.mubr.f32.mxu0 0.0
      %2826 = vmatmul.mubr.f32.gmra.mrb[0].mxu0 %v2488
      %v2827 = vpop.f32.mrb[0].mxu0
      %v2828 = vadd.f32 0.0, %v2827
      %v2829 = vpop.f32.mrb[0].mxu0
      %2830 = vmatprep.mubr.f32.mxu0 0.0
      %2831 = vmatmul.mubr.f32.gmra.mrb[0].mxu0 %v2491
      %v2832 = vpop.f32.mrb[0].mxu0
      %v2833 = vadd.f32 0.0, %v2832
      %v2834 = vpop.f32.mrb[0].mxu0
      %2835 = vmatprep.mubr.f32.mxu0 0.0
      %2836 = vmatmul.mubr.f32.gmra.mrb[0].mxu0 %v2494
      %v2837 = vpop.f32.mrb[0].mxu0
      %v2838 = vadd.f32 0.0, %v2837
      %v2839 = vpop.f32.mrb[0].mxu0
      %2840 = vmatprep.mubr.f32.mxu0 0.0
      %2841 = vmatmul.mubr.f32.gmra.mrb[0].mxu0 %v2497
      %v2842 = vpop.f32.mrb[0].mxu0
      %v2843 = vadd.f32 0.0, %v2842
      %v2844 = vpop.f32.mrb[0].mxu0
      %2845 = vmatprep.mubr.f32.mxu0 0.0
      %2846 = vmatmul.mubr.f32.gmra.mrb[0].mxu0 %v2500
      %v2847 = vpop.f32.mrb[0].mxu0
      %v2848 = vadd.f32 0.0, %v2847
      %v2849 = vpop.f32.mrb[0].mxu0
      %2850 = vmatprep.mubr.f32.mxu0 0.0
      %2851 = vmatmul.mubr.f32.gmra.mrb[0].mxu0 %v2503
      %v2852 = vpop.f32.mrb[0].mxu0
      %v2853 = vadd.f32 0.0, %v2852
      %v2854 = vpop.f32.mrb[0].mxu0
      %2855 = vmatprep.mubr.f32.mxu0 0.0
      %2856 = vmatmul.mubr.f32.gmra.mrb[0].mxu0 %v2506
      %v2857 = vpop.f32.mrb[0].mxu0
      %v2858 = vadd.f32 0.0, %v2857
      %v2859 = vpop.f32.mrb[0].mxu0
      %2860 = vmatprep.mubr.f32.mxu0 0.0
      %2861 = vmatmul.mubr.f32.gmra.mrb[0].mxu0 %v2509
      %v2862 = vpop.f32.mrb[0].mxu0
      %v2863 = vadd.f32 0.0, %v2862
      %v2864 = vpop.f32.mrb[0].mxu0
      %2865 = vmatprep.mubr.f32.mxu0 0.0
      %2866 = vmatmul.mubr.f32.gmra.mrb[0].mxu0 %v2512
      %v2867 = vpop.f32.mrb[0].mxu0
      %v2868 = vadd.f32 0.0, %v2867
      %v2869 = vpop.f32.mrb[0].mxu0
      %2870 = vmatprep.mubr.f32.mxu0 0.0
      %2871 = vmatmul.mubr.f32.gmra.mrb[0].mxu0 %v2515
      %v2872 = vpop.f32.mrb[0].mxu0
      %v2873 = vadd.f32 0.0, %v2872
      %v2874 = vpop.f32.mrb[0].mxu0
      %2875 = vmatprep.mubr.f32.mxu0 0.0
      %2876 = vmatmul.mubr.f32.gmra.mrb[0].mxu0 %v2518
      %v2877 = vpop.f32.mrb[0].mxu0
      %v2878 = vadd.f32 0.0, %v2877
      %v2879 = vpop.f32.mrb[0].mxu0
      %2880 = vmatprep.mubr.f32.mxu0 0.0
      %2881 = vmatmul.mubr.f32.gmra.mrb[0].mxu0 %v2521
      %v2882 = vpop.f32.mrb[0].mxu0
      %v2883 = vadd.f32 0.0, %v2882
      %v2884 = vpop.f32.mrb[0].mxu0
      %2885 = vmatprep.mubr.f32.mxu0 0.0
      %2886 = vmatmul.mubr.f32.gmra.mrb[0].mxu0 %v2524
      %v2887 = vpop.f32.mrb[0].mxu0
      %v2888 = vadd.f32 0.0, %v2887
      %v2889 = vpop.f32.mrb[0].mxu0
      %2890 = vmatprep.mubr.f32.mxu0 0.0
      %2891 = vmatmul.mubr.f32.gmra.mrb[0].mxu0 %v2527
      %v2892 = vpop.f32.mrb[0].mxu0
      %v2893 = vadd.f32 0.0, %v2892
      %v2894 = vpop.f32.mrb[0].mxu0
      %2895 = vmatprep.mubr.f32.mxu0 0.0
      %2896 = vmatmul.mubr.f32.gmra.mrb[0].mxu0 %v2530
      %v2897 = vpop.f32.mrb[0].mxu0
      %v2898 = vadd.f32 0.0, %v2897
      %v2899 = vpop.f32.mrb[0].mxu0
      %2900 = vmatprep.mubr.f32.mxu0 0.0
      %2901 = vmatmul.mubr.f32.gmra.mrb[0].mxu0 %v2533
      %v2902 = vpop.f32.mrb[0].mxu0
      %v2903 = vadd.f32 0.0, %v2902
      %v2904 = vpop.f32.mrb[0].mxu0
      %2905 = vmatprep.mubr.f32.mxu0 0.0
      %2906 = vmatmul.mubr.f32.gmra.mrb[0].mxu0 %v2536
      %v2907 = vpop.f32.mrb[0].mxu0
      %v2908 = vadd.f32 0.0, %v2907
      %v2909 = vpop.f32.mrb[0].mxu0
      %2910 = vmatprep.mubr.f32.mxu0 0.0
      %2911 = vmatmul.mubr.f32.gmra.mrb[0].mxu0 %v2539
      %v2912 = vpop.f32.mrb[0].mxu0
      %v2913 = vadd.f32 0.0, %v2912
      %v2914 = vpop.f32.mrb[0].mxu0
      %2915 = vmatprep.mubr.f32.mxu0 0.0
      %2916 = vmatmul.mubr.f32.gmra.mrb[0].mxu0 %v2542
      %v2917 = vpop.f32.mrb[0].mxu0
      %v2918 = vadd.f32 0.0, %v2917
      %v2919 = vpop.f32.mrb[0].mxu0
      %2920 = vmatprep.mubr.f32.mxu0 0.0
      %2921 = vmatmul.mubr.f32.gmra.mrb[0].mxu0 %v2545
      %v2922 = vpop.f32.mrb[0].mxu0
      %v2923 = vadd.f32 0.0, %v2922
      %v2924 = vpop.f32.mrb[0].mxu0
      %2925 = vmatprep.mubr.f32.mxu0 0.0
      %2926 = vmatmul.mubr.f32.gmra.mrb[0].mxu0 %v2548
      %v2927 = vpop.f32.mrb[0].mxu0
      %v2928 = vadd.f32 0.0, %v2927
      %v2929 = vpop.f32.mrb[0].mxu0
      %2930 = vmatprep.mubr.f32.mxu0 0.0
      %2931 = vmatmul.mubr.f32.gmra.mrb[0].mxu0 %v2551
      %v2932 = vpop.f32.mrb[0].mxu0
      %v2933 = vadd.f32 0.0, %v2932
      %v2934 = vpop.f32.mrb[0].mxu0
      %2935 = vmatprep.mubr.f32.mxu0 0.0
      %2936 = vmatmul.mubr.f32.gmra.mrb[0].mxu0 %v2554
      %v2937 = vpop.f32.mrb[0].mxu0
      %v2938 = vadd.f32 0.0, %v2937
      %v2939 = vpop.f32.mrb[0].mxu0
      %2940 = vdwg.mxu0
      %v2941 = vmax.f32 %v2623, 0.0
      %v2942 = vmax.f32 %v2628, 0.0
      %v2943 = vmax.f32 %v2633, 0.0
      %v2944 = vmax.f32 %v2638, 0.0
      %v2945 = vmax.f32 %v2643, 0.0
      %v2946 = vmax.f32 %v2648, 0.0
      %v2947 = vmax.f32 %v2653, 0.0
      %v2948 = vmax.f32 %v2658, 0.0
      %v2949 = vmax.f32 %v2663, 0.0
      %v2950 = vmax.f32 %v2668, 0.0
      %v2951 = vmax.f32 %v2673, 0.0
      %v2952 = vmax.f32 %v2678, 0.0
      %v2953 = vmax.f32 %v2683, 0.0
      %v2954 = vmax.f32 %v2688, 0.0
      %v2955 = vmax.f32 %v2693, 0.0
      %v2956 = vmax.f32 %v2698, 0.0
      %v2957 = vmax.f32 %v2703, 0.0
      %v2958 = vmax.f32 %v2708, 0.0
      %v2959 = vmax.f32 %v2713, 0.0
      %v2960 = vmax.f32 %v2718, 0.0
      %v2961 = vmax.f32 %v2723, 0.0
      %v2962 = vmax.f32 %v2728, 0.0
      %v2963 = vmax.f32 %v2733, 0.0
      %v2964 = vmax.f32 %v2738, 0.0
      %v2965 = vmax.f32 %v2743, 0.0
      %v2966 = vmax.f32 %v2748, 0.0
      %v2967 = vmax.f32 %v2753, 0.0
      %v2968 = vmax.f32 %v2758, 0.0
      %v2969 = vmax.f32 %v2763, 0.0
      %v2970 = vmax.f32 %v2768, 0.0
      %v2971 = vmax.f32 %v2773, 0.0
      %v2972 = vmax.f32 %v2778, 0.0
      %v2973 = vmax.f32 %v2783, 0.0
      %v2974 = vmax.f32 %v2788, 0.0
      %v2975 = vmax.f32 %v2793, 0.0
      %v2976 = vmax.f32 %v2798, 0.0
      %v2977 = vmax.f32 %v2803, 0.0
      %v2978 = vmax.f32 %v2808, 0.0
      %v2979 = vmax.f32 %v2813, 0.0
      %v2980 = vmax.f32 %v2818, 0.0
      %v2981 = vmax.f32 %v2823, 0.0
      %v2982 = vmax.f32 %v2828, 0.0
      %v2983 = vmax.f32 %v2833, 0.0
      %v2984 = vmax.f32 %v2838, 0.0
      %v2985 = vmax.f32 %v2843, 0.0
      %v2986 = vmax.f32 %v2848, 0.0
      %v2987 = vmax.f32 %v2853, 0.0
      %v2988 = vmax.f32 %v2858, 0.0
      %v2989 = vmax.f32 %v2863, 0.0
      %v2990 = vmax.f32 %v2868, 0.0
      %v2991 = vmax.f32 %v2873, 0.0
      %v2992 = vmax.f32 %v2878, 0.0
      %v2993 = vmax.f32 %v2883, 0.0
      %v2994 = vmax.f32 %v2888, 0.0
      %v2995 = vmax.f32 %v2893, 0.0
      %v2996 = vmax.f32 %v2898, 0.0
      %v2997 = vmax.f32 %v2903, 0.0
      %v2998 = vmax.f32 %v2908, 0.0
      %v2999 = vmax.f32 %v2913, 0.0
      %v3000 = vmax.f32 %v2918, 0.0
      %v3001 = vmax.f32 %v2923, 0.0
      %v3002 = vmax.f32 %v2928, 0.0
      %v3003 = vmax.f32 %v2933, 0.0
      %v3004 = vmax.f32 %v2938, 0.0
      %s3005 = scalar_lea.vmem %s3, 256
      %v3006 = vld [vmem:[%s3005] sm:$0xff]
      %v3007 = vld [vmem:[%s3005 + $0x8] sm:$0xff]
      %v3008 = vld [vmem:[%s3005 + $0x10] sm:$0xff]
      %v3009 = vld [vmem:[%s3005 + $0x18] sm:$0xff]
      %v3010 = vld [vmem:[%s3005 + $0x20] sm:$0xff]
      %v3011 = vld [vmem:[%s3005 + $0x28] sm:$0xff]
      %v3012 = vld [vmem:[%s3005 + $0x30] sm:$0xff]
      %v3013 = vld [vmem:[%s3005 + $0x38] sm:$0xff]
      %v3014 = vld [vmem:[%s3005 + $0x40] sm:$0xff]
      %v3015 = vld [vmem:[%s3005 + $0x48] sm:$0xff]
      %v3016 = vld [vmem:[%s3005 + $0x50] sm:$0xff]
      %v3017 = vld [vmem:[%s3005 + $0x58] sm:$0xff]
      %v3018 = vld [vmem:[%s3005 + $0x60] sm:$0xff]
      %v3019 = vld [vmem:[%s3005 + $0x68] sm:$0xff]
      %v3020 = vld [vmem:[%s3005 + $0x70] sm:$0xff]
      %v3021 = vld [vmem:[%s3005 + $0x78] sm:$0xff]
      %3022 = vmatprep.subr.mxu0 0.0
      %3023 = vmatpush1.msra.mxu0 %v2941
      %3024 = vmatprep.subr.mxu0 0.0
      %3025 = vmatpush1.msra.mxu0 %v2942
      %3026 = vmatprep.subr.mxu0 0.0
      %3027 = vmatpush1.msra.mxu0 %v2943
      %3028 = vmatprep.subr.mxu0 0.0
      %3029 = vmatpush1.msra.mxu0 %v2944
      %3030 = vmatprep.subr.mxu0 0.0
      %3031 = vmatpush1.msra.mxu0 %v2945
      %3032 = vmatprep.subr.mxu0 0.0
      %3033 = vmatpush1.msra.mxu0 %v2946
      %3034 = vmatprep.subr.mxu0 0.0
      %3035 = vmatpush1.msra.mxu0 %v2947
      %3036 = vmatprep.subr.mxu0 0.0
      %3037 = vmatpush1.msra.mxu0 %v2948
      %3038 = vmatprep.subr.mxu0 0.0
      %3039 = vmatpush1.msra.mxu0 %v2949
      %3040 = vmatprep.subr.mxu0 0.0
      %3041 = vmatpush1.msra.mxu0 %v2950
      %3042 = vmatprep.subr.mxu0 0.0
      %3043 = vmatpush1.msra.mxu0 %v2951
      %3044 = vmatprep.subr.mxu0 0.0
      %3045 = vmatpush1.msra.mxu0 %v2952
      %3046 = vmatprep.subr.mxu0 0.0
      %3047 = vmatpush1.msra.mxu0 %v2953
      %3048 = vmatprep.subr.mxu0 0.0
      %3049 = vmatpush1.msra.mxu0 %v2954
      %3050 = vmatprep.subr.mxu0 0.0
      %3051 = vmatpush1.msra.mxu0 %v2955
      %3052 = vmatprep.subr.mxu0 0.0
      %3053 = vmatpush1.msra.mxu0 %v2956
      %3054 = vmatprep.subr.mxu0 0.0
      %3055 = vmatpush1.msra.mxu0 %v2957
      %3056 = vmatprep.subr.mxu0 0.0
      %3057 = vmatpush1.msra.mxu0 %v2958
      %3058 = vmatprep.subr.mxu0 0.0
      %3059 = vmatpush1.msra.mxu0 %v2959
      %3060 = vmatprep.subr.mxu0 0.0
      %3061 = vmatpush1.msra.mxu0 %v2960
      %3062 = vmatprep.subr.mxu0 0.0
      %3063 = vmatpush1.msra.mxu0 %v2961
      %3064 = vmatprep.subr.mxu0 0.0
      %3065 = vmatpush1.msra.mxu0 %v2962
      %3066 = vmatprep.subr.mxu0 0.0
      %3067 = vmatpush1.msra.mxu0 %v2963
      %3068 = vmatprep.subr.mxu0 0.0
      %3069 = vmatpush1.msra.mxu0 %v2964
      %3070 = vmatprep.subr.mxu0 0.0
      %3071 = vmatpush1.msra.mxu0 %v2965
      %3072 = vmatprep.subr.mxu0 0.0
      %3073 = vmatpush1.msra.mxu0 %v2966
      %3074 = vmatprep.subr.mxu0 0.0
      %3075 = vmatpush1.msra.mxu0 %v2967
      %3076 = vmatprep.subr.mxu0 0.0
      %3077 = vmatpush1.msra.mxu0 %v2968
      %3078 = vmatprep.subr.mxu0 0.0
      %3079 = vmatpush1.msra.mxu0 %v2969
      %3080 = vmatprep.subr.mxu0 0.0
      %3081 = vmatpush1.msra.mxu0 %v2970
      %3082 = vmatprep.subr.mxu0 0.0
      %3083 = vmatpush1.msra.mxu0 %v2971
      %3084 = vmatprep.subr.mxu0 0.0
      %3085 = vmatpush1.msra.mxu0 %v2972
      %3086 = vmatprep.mubr.f32.mxu0 %v3007
      %3087 = vmatmul.mubr.f32.gmra.mrb[0].mxu0 %v3006
      %v3088 = vpop.f32.mrb[0].mxu0
      %v3089 = vadd.f32 0.0, %v3088
      %v3090 = vpop.f32.mrb[0].mxu0
      %3091 = vmatprep.mubr.f32.mxu0 %v3011
      %3092 = vmatmul.mubr.f32.gmra.mrb[0].mxu0 %v3010
      %v3093 = vpop.f32.mrb[0].mxu0
      %v3094 = vadd.f32 0.0, %v3093
      %v3095 = vpop.f32.mrb[0].mxu0
      %3096 = vmatprep.mubr.f32.mxu0 %v3015
      %3097 = vmatmul.mubr.f32.gmra.mrb[0].mxu0 %v3014
      %v3098 = vpop.f32.mrb[0].mxu0
      %v3099 = vadd.f32 0.0, %v3098
      %v3100 = vpop.f32.mrb[0].mxu0
      %3101 = vmatprep.mubr.f32.mxu0 %v3019
      %3102 = vmatmul.mubr.f32.gmra.mrb[0].mxu0 %v3018
      %v3103 = vpop.f32.mrb[0].mxu0
      %v3104 = vadd.f32 0.0, %v3103
      %v3105 = vpop.f32.mrb[0].mxu0
      %3106 = vdwg.mxu0
      %3107 = vmatprep.subr.mxu0 0.0
      %3108 = vmatpush1.msra.mxu0 %v2973
      %3109 = vmatprep.subr.mxu0 0.0
      %3110 = vmatpush1.msra.mxu0 %v2974
      %3111 = vmatprep.subr.mxu0 0.0
      %3112 = vmatpush1.msra.mxu0 %v2975
      %3113 = vmatprep.subr.mxu0 0.0
      %3114 = vmatpush1.msra.mxu0 %v2976
      %3115 = vmatprep.subr.mxu0 0.0
      %3116 = vmatpush1.msra.mxu0 %v2977
      %3117 = vmatprep.subr.mxu0 0.0
      %3118 = vmatpush1.msra.mxu0 %v2978
      %3119 = vmatprep.subr.mxu0 0.0
      %3120 = vmatpush1.msra.mxu0 %v2979
      %3121 = vmatprep.subr.mxu0 0.0
      %3122 = vmatpush1.msra.mxu0 %v2980
      %3123 = vmatprep.subr.mxu0 0.0
      %3124 = vmatpush1.msra.mxu0 %v2981
      %3125 = vmatprep.subr.mxu0 0.0
      %3126 = vmatpush1.msra.mxu0 %v2982
      %3127 = vmatprep.subr.mxu0 0.0
      %3128 = vmatpush1.msra.mxu0 %v2983
      %3129 = vmatprep.subr.mxu0 0.0
      %3130 = vmatpush1.msra.mxu0 %v2984
      %3131 = vmatprep.subr.mxu0 0.0
      %3132 = vmatpush1.msra.mxu0 %v2985
      %3133 = vmatprep.subr.mxu0 0.0
      %3134 = vmatpush1.msra.mxu0 %v2986
      %3135 = vmatprep.subr.mxu0 0.0
      %3136 = vmatpush1.msra.mxu0 %v2987
      %3137 = vmatprep.subr.mxu0 0.0
      %3138 = vmatpush1.msra.mxu0 %v2988
      %3139 = vmatprep.subr.mxu0 0.0
      %3140 = vmatpush1.msra.mxu0 %v2989
      %3141 = vmatprep.subr.mxu0 0.0
      %3142 = vmatpush1.msra.mxu0 %v2990
      %3143 = vmatprep.subr.mxu0 0.0
      %3144 = vmatpush1.msra.mxu0 %v2991
      %3145 = vmatprep.subr.mxu0 0.0
      %3146 = vmatpush1.msra.mxu0 %v2992
      %3147 = vmatprep.subr.mxu0 0.0
      %3148 = vmatpush1.msra.mxu0 %v2993
      %3149 = vmatprep.subr.mxu0 0.0
      %3150 = vmatpush1.msra.mxu0 %v2994
      %3151 = vmatprep.subr.mxu0 0.0
      %3152 = vmatpush1.msra.mxu0 %v2995
      %3153 = vmatprep.subr.mxu0 0.0
      %3154 = vmatpush1.msra.mxu0 %v2996
      %3155 = vmatprep.subr.mxu0 0.0
      %3156 = vmatpush1.msra.mxu0 %v2997
      %3157 = vmatprep.subr.mxu0 0.0
      %3158 = vmatpush1.msra.mxu0 %v2998
      %3159 = vmatprep.subr.mxu0 0.0
      %3160 = vmatpush1.msra.mxu0 %v2999
      %3161 = vmatprep.subr.mxu0 0.0
      %3162 = vmatpush1.msra.mxu0 %v3000
      %3163 = vmatprep.subr.mxu0 0.0
      %3164 = vmatpush1.msra.mxu0 %v3001
      %3165 = vmatprep.subr.mxu0 0.0
      %3166 = vmatpush1.msra.mxu0 %v3002
      %3167 = vmatprep.subr.mxu0 0.0
      %3168 = vmatpush1.msra.mxu0 %v3003
      %3169 = vmatprep.subr.mxu0 0.0
      %3170 = vmatpush1.msra.mxu0 %v3004
      %3171 = vmatprep.mubr.f32.mxu0 %v3009
      %3172 = vmatmul.mubr.f32.gmra.mrb[0].mxu0 %v3008
      %v3173 = vpop.f32.mrb[0].mxu0
      %v3174 = vadd.f32 %v3089, %v3173
      %v3175 = vpop.f32.mrb[0].mxu0
      %3176 = vmatprep.mubr.f32.mxu0 %v3013
      %3177 = vmatmul.mubr.f32.gmra.mrb[0].mxu0 %v3012
      %v3178 = vpop.f32.mrb[0].mxu0
      %v3179 = vadd.f32 %v3094, %v3178
      %v3180 = vpop.f32.mrb[0].mxu0
      %3181 = vmatprep.mubr.f32.mxu0 %v3017
      %3182 = vmatmul.mubr.f32.gmra.mrb[0].mxu0 %v3016
      %v3183 = vpop.f32.mrb[0].mxu0
      %v3184 = vadd.f32 %v3099, %v3183
      %v3185 = vpop.f32.mrb[0].mxu0
      %3186 = vmatprep.mubr.f32.mxu0 %v3021
      %3187 = vmatmul.mubr.f32.gmra.mrb[0].mxu0 %v3020
      %v3188 = vpop.f32.mrb[0].mxu0
      %v3189 = vadd.f32 %v3104, %v3188
      %v3190 = vpop.f32.mrb[0].mxu0
      %3191 = vdwg.mxu0
      %v3192 = vadd.f32 %v2193, %v3174
      %v3193 = vadd.f32 %v2198, %v3179
      %v3194 = vadd.f32 %v2203, %v3184
      %v3195 = vadd.f32 %v2208, %v3189
      %3196 = vst.msk [vmem:[%s233] sm:$0xff] %vm240, %v3192
      %3197 = vst.msk [vmem:[%s233 + $0x8] sm:$0xff] %vm240, %v3193
      %3198 = vst.msk [vmem:[%s233 + $0x10] sm:$0xff] %vm240, %v3194
      %3199 = vst.msk [vmem:[%s233 + $0x18] sm:$0xff] %vm240, %v3195
      %p3200 = scmp.lt.s32.totalorder %s19, 1
      %s3201 = scalar_select %p3200, %s19, 1
      %p3202 = scmp.lt.s32.totalorder %s20, 0
      %s3203 = scalar_select %p3202, %s20, 0
      %s3204 = smul.addr %s3203, 4
      %s3205 = smul.addr %s3201, 4
      %s3206 = sadd.s32 %s3204, %s3205
      %s3207 = smul.addr %s3206, 8
      %s3208 = scalar_lea.vmem %s4, %s3207
      // Predicated region
      $region37: #{tpu_custom_call.1} parent=35 // pred_check
        %p3209 = pneg %p138
      $region38: #{tpu_custom_call.1} parent=35 // pred_check_branch
        %3211 = sbr.rel (%p3209) target = $region40
      $region39: #{tpu_custom_call.1} parent=35 // pred_region
        _
      $region40: #{tpu_custom_call.1} parent=35 // pred_fallthru
        _
    $region36: #{tpu_custom_call.1} parent=5 // pred_fallthru
      _
    %p3212 = scmp.le.s32.totalorder 2, %s10
    // Predicated region
    $region41: #{tpu_custom_call.1} parent=5 // pred_check
      %p3213 = pneg %p3212
    $region42: #{tpu_custom_call.1} parent=5 // pred_check_branch
      %3215 = sbr.rel (%p3213) target = $region44
    $region43: #{tpu_custom_call.1} parent=5 // pred_region
      %s3216 = ssub.s32 %s10, 2
      // Predicated region
      $region45: #{tpu_custom_call.1} parent=43 // pred_check
        %p3217 = pneg %p144
      $region46: #{tpu_custom_call.1} parent=43 // pred_check_branch
        %3219 = sbr.rel (%p3217) target = $region48
      $region47: #{tpu_custom_call.1} parent=43 // pred_region
        %p3220 = scmp.lt.s32.totalorder %s21, 1
        %s3221 = scalar_select %p3220, %s21, 1
        %p3222 = scmp.lt.s32.totalorder %s22, 0
        %s3223 = scalar_select %p3222, %s22, 0
        %s3224 = smul.addr %s3223, 4
        %s3225 = smul.addr %s3221, 4
        %s3226 = sadd.s32 %s3224, %s3225
        %s3227 = smul.addr %s3226, 8
        %s3228 = scalar_lea.vmem %s4, %s3227
      $region48: #{tpu_custom_call.1} parent=43 // pred_fallthru
        _
    $region44: #{tpu_custom_call.1} parent=5 // pred_fallthru
      _
  $region6: #{tpu_custom_call.1} parent=0 // loop_footer
    %s14 = sadd.s32 1, %s10
  $region7: #{tpu_custom_call.1} parent=0 // loop_footer_branch
    %9 = sbr.rel target = $region3
  $region8: #{tpu_custom_call.1} parent=0 // loop_exit
    _

// kernel: tpu_custom_call.1
$region0: #{tpu_custom_call.1}
  #allocation0 [shape = 'u32[]', space=smem, size = 0x4, offset = 0x4, fixed_abs, tag = 'smem constant byte address 0x4 - core index']
  #allocation1 [shape = 'u32[144,128]{1,0:T(1,128)}', space=vmem, size = 0x12000, scoped, tag = 'internal scratch']
  %s0 = inlined_call_operand.vmem [shape: f32[2,1,32,16], index: 0, kind: input, shape index: {}]
  %s1 = inlined_call_operand.vmem [shape: f32[3,16,16], index: 1, kind: input, shape index: {}]
  %s2 = inlined_call_operand.vmem [shape: f32[3,512,32], index: 2, kind: input, shape index: {}]
  %s3 = inlined_call_operand.vmem [shape: f32[3,32,512], index: 3, kind: input, shape index: {}]
  %s4 = inlined_call_operand.vmem [shape: f32[2,1,32,16], index: 4, kind: output, shape index: {}]
  %s5 = sld [smem:[#allocation0]]
  $region49: #{tpu_custom_call.1} parent=0
    _
  %s7 = ssub.s32 1, %s5
  %s8 = scalar_select 0, %s7, %s5
  loop: start=0, step=1, limit=4
  $region2: #{tpu_custom_call.1} parent=0 // loop_pre_header
    _
  $region3: #{tpu_custom_call.1} parent=0 // loop_header
    %s10 = sphi 0, %s14
    %p11 = scmp.ge.s32.totalorder %s10, 4
    %s17 = sphi 0, %s29
    %s18 = sphi 0, %s25
    %s19 = sphi 0, %s17
    %s20 = sphi 0, %s18
    %s21 = sphi 0, %s19
    %s22 = sphi 0, %s20
    %s34 = sphi 0, %s36
    %s37 = sphi 0, %s34
    %s38 = sphi 0, %s37
    %s54 = sphi 0, %s38
    %s58 = sphi 0, %s58
    %s60 = sphi 0, %s58
    %s61 = sphi 0, %s60
    %s75 = sphi 0, %s61
    %s79 = sphi 0, %s79
    %s81 = sphi 0, %s79
    %s82 = sphi 0, %s81
    %s96 = sphi 0, %s82
    %s100 = sphi 0, %s100
    %s102 = sphi 0, %s100
    %s103 = sphi 0, %s102
    %s117 = sphi 0, %s103
    %s125 = sphi 0, %s127
    %s128 = sphi 0, %s125
    %s129 = sphi 0, %s128
    %s145 = sphi 0, %s129
  $region4: #{tpu_custom_call.1} parent=0 // loop_header_branch
    %13 = sbr.rel (%p11) target = $region8
  $region5: #{tpu_custom_call.1} parent=0 // loop_body
    %s15 = ssub.s32 %s10, 1
    %s16 = ssub.s32 %s10, 2
    %s23 = sadd.s32 1, %s18
    %p24 = scmp.ge.s32.totalorder %s23, 1
    %s25 = scalar_select %p24, 0, %s23
    %s26 = sadd.s32 1, %s17
    %s27 = scalar_select %p24, %s26, %s17
    %p28 = scmp.ge.s32.totalorder %s27, 2
    %s29 = scalar_select %p28, 0, %s27
    %s30 = ssub.s32 %s17, %s29
    %s31 = ssub.s32 %s18, %s25
    %s32 = sor.u32 %s30, %s31
    %p33 = scmp.eq.s32.totalorder %s32, 0
    %s35 = sadd.s32 %s34, 1
    %s36 = scalar_select %p33, %s34, %s35
    %p39 = pneg %p33
    %p40 = scmp.eq.s32.totalorder %s10, 1
    %p41 = por %p39, %p40
    %p42 = scmp.ne.s32.totalorder %s34, %s37
    %p43 = scmp.eq.s32.totalorder %s10, 0
    %p44 = por %p42, %p43
    %p45 = scmp.ne.s32.totalorder %s34, %s37
    %p46 = scmp.eq.s32.totalorder %s15, 1
    %p47 = por %p45, %p46
    %p48 = scmp.ne.s32.totalorder %s37, %s38
    %p49 = scmp.eq.s32.totalorder %s15, 0
    %p50 = por %p48, %p49
    %p51 = scmp.ne.s32.totalorder %s37, %s38
    %p52 = scmp.eq.s32.totalorder %s16, 1
    %p53 = por %p51, %p52
    %p55 = scmp.ne.s32.totalorder %s38, %s54
    %p56 = scmp.eq.s32.totalorder %s16, 0
    %p57 = por %p55, %p56
    %s59 = sadd.s32 %s58, 1
    %p62 = scmp.eq.s32.totalorder %s10, 1
    %p63 = scmp.ne.s32.totalorder %s58, %s60
    %p64 = scmp.eq.s32.totalorder %s10, 0
    %p65 = por %p63, %p64
    %p66 = scmp.ne.s32.totalorder %s58, %s60
    %p67 = scmp.eq.s32.totalorder %s15, 1
    %p68 = por %p66, %p67
    %p69 = scmp.ne.s32.totalorder %s60, %s61
    %p70 = scmp.eq.s32.totalorder %s15, 0
    %p71 = por %p69, %p70
    %p72 = scmp.ne.s32.totalorder %s60, %s61
    %p73 = scmp.eq.s32.totalorder %s16, 1
    %p74 = por %p72, %p73
    %p76 = scmp.ne.s32.totalorder %s61, %s75
    %p77 = scmp.eq.s32.totalorder %s16, 0
    %p78 = por %p76, %p77
    %s80 = sadd.s32 %s79, 1
    %p83 = scmp.eq.s32.totalorder %s10, 1
    %p84 = scmp.ne.s32.totalorder %s79, %s81
    %p85 = scmp.eq.s32.totalorder %s10, 0
    %p86 = por %p84, %p85
    %p87 = scmp.ne.s32.totalorder %s79, %s81
    %p88 = scmp.eq.s32.totalorder %s15, 1
    %p89 = por %p87, %p88
    %p90 = scmp.ne.s32.totalorder %s81, %s82
    %p91 = scmp.eq.s32.totalorder %s15, 0
    %p92 = por %p90, %p91
    %p93 = scmp.ne.s32.totalorder %s81, %s82
    %p94 = scmp.eq.s32.totalorder %s16, 1
    %p95 = por %p93, %p94
    %p97 = scmp.ne.s32.totalorder %s82, %s96
    %p98 = scmp.eq.s32.totalorder %s16, 0
    %p99 = por %p97, %p98
    %s101 = sadd.s32 %s100, 1
    %p104 = scmp.eq.s32.totalorder %s10, 1
    %p105 = scmp.ne.s32.totalorder %s100, %s102
    %p106 = scmp.eq.s32.totalorder %s10, 0
    %p107 = por %p105, %p106
    %p108 = scmp.ne.s32.totalorder %s100, %s102
    %p109 = scmp.eq.s32.totalorder %s15, 1
    %p110 = por %p108, %p109
    %p111 = scmp.ne.s32.totalorder %s102, %s103
    %p112 = scmp.eq.s32.totalorder %s15, 0
    %p113 = por %p111, %p112
    %p114 = scmp.ne.s32.totalorder %s102, %s103
    %p115 = scmp.eq.s32.totalorder %s16, 1
    %p116 = por %p114, %p115
    %p118 = scmp.ne.s32.totalorder %s103, %s117
    %p119 = scmp.eq.s32.totalorder %s16, 0
    %p120 = por %p118, %p119
    %s121 = ssub.s32 %s17, %s29
    %s122 = ssub.s32 %s18, %s25
    %s123 = sor.u32 %s121, %s122
    %p124 = scmp.eq.s32.totalorder %s123, 0
    %s126 = sadd.s32 %s125, 1
    %s127 = scalar_select %p124, %s125, %s126
    %p130 = pneg %p124
    %p131 = scmp.eq.s32.totalorder %s10, 1
    %p132 = por %p130, %p131
    %p133 = scmp.ne.s32.totalorder %s125, %s128
    %p134 = scmp.eq.s32.totalorder %s10, 0
    %p135 = por %p133, %p134
    %p136 = scmp.ne.s32.totalorder %s125, %s128
    %p137 = scmp.eq.s32.totalorder %s15, 1
    %p138 = por %p136, %p137
    %p139 = scmp.ne.s32.totalorder %s128, %s129
    %p140 = scmp.eq.s32.totalorder %s15, 0
    %p141 = por %p139, %p140
    %p142 = scmp.ne.s32.totalorder %s128, %s129
    %p143 = scmp.eq.s32.totalorder %s16, 1
    %p144 = por %p142, %p143
    %p146 = scmp.ne.s32.totalorder %s129, %s145
    %p147 = scmp.eq.s32.totalorder %s16, 0
    %p148 = por %p146, %p147
    %p149 = scmp.le.s32.totalorder 1, %s10
    %p150 = scmp.lt.s32.totalorder %s10, 3
    %p151 = pnand %p149, %p150
    %p152 = pneg %p151
    // Predicated region
    $region9: #{tpu_custom_call.1} parent=5 // pred_check
      _
    $region10: #{tpu_custom_call.1} parent=5 // pred_check_branch
      %154 = sbr.rel (%p151) target = $region12
    $region11: #{tpu_custom_call.1} parent=5 // pred_region
      %s155 = ssub.s32 %s10, 1
      // Predicated region
      $region13: #{tpu_custom_call.1} parent=11 // pred_check
        %p156 = pneg %p71
      $region14: #{tpu_custom_call.1} parent=11 // pred_check_branch
        %158 = sbr.rel (%p156) target = $region16
      $region15: #{tpu_custom_call.1} parent=11 // pred_region
        _
      $region16: #{tpu_custom_call.1} parent=11 // pred_fallthru
        _
      // Predicated region
      $region17: #{tpu_custom_call.1} parent=11 // pred_check
        %p159 = pneg %p92
      $region18: #{tpu_custom_call.1} parent=11 // pred_check_branch
        %161 = sbr.rel (%p159) target = $region20
      $region19: #{tpu_custom_call.1} parent=11 // pred_region
        _
      $region20: #{tpu_custom_call.1} parent=11 // pred_fallthru
        _
      // Predicated region
      $region21: #{tpu_custom_call.1} parent=11 // pred_check
        %p162 = pneg %p113
      $region22: #{tpu_custom_call.1} parent=11 // pred_check_branch
        %164 = sbr.rel (%p162) target = $region24
      $region23: #{tpu_custom_call.1} parent=11 // pred_region
        _
      $region24: #{tpu_custom_call.1} parent=11 // pred_fallthru
        _
    $region12: #{tpu_custom_call.1} parent=5 // pred_fallthru
      _
    %p165 = scmp.lt.s32.totalorder %s10, 2
    // Predicated region
    $region25: #{tpu_custom_call.1} parent=5 // pred_check
      %p166 = pneg %p165
    $region26: #{tpu_custom_call.1} parent=5 // pred_check_branch
      %168 = sbr.rel (%p166) target = $region28
    $region27: #{tpu_custom_call.1} parent=5 // pred_region
      // Predicated region
      $region29: #{tpu_custom_call.1} parent=27 // pred_check
        %p169 = pneg %p44
      $region30: #{tpu_custom_call.1} parent=27 // pred_check_branch
        %171 = sbr.rel (%p169) target = $region32
      $region31: #{tpu_custom_call.1} parent=27 // pred_region
        %p172 = scmp.lt.s32.totalorder %s17, 1
        %s173 = scalar_select %p172, %s17, 1
        %p174 = scmp.lt.s32.totalorder %s18, 0
        %s175 = scalar_select %p174, %s18, 0
        %s176 = smul.addr %s175, 4
        %s177 = smul.addr %s173, 4
        %s178 = sadd.s32 %s176, %s177
        %s179 = smul.addr %s178, 8
        %s180 = scalar_lea.vmem %s0, %s179
      $region32: #{tpu_custom_call.1} parent=27 // pred_fallthru
        _
    $region28: #{tpu_custom_call.1} parent=5 // pred_fallthru
      _
    %p181 = scmp.le.s32.totalorder 1, %s10
    %p182 = scmp.lt.s32.totalorder %s10, 3
    %p183 = pnand %p181, %p182
    %p184 = pneg %p183
    // Predicated region
    $region33: #{tpu_custom_call.1} parent=5 // pred_check
      _
    $region34: #{tpu_custom_call.1} parent=5 // pred_check_branch
      %186 = sbr.rel (%p183) target = $region36
    $region35: #{tpu_custom_call.1} parent=5 // pred_region
      %s187 = ssub.s32 %s10, 1
      %p188 = scmp.lt.s32.totalorder %s19, 1
      %s189 = scalar_select %p188, %s19, 1
      %p190 = scmp.lt.s32.totalorder %s20, 0
      %s191 = scalar_select %p190, %s20, 0
      %s192 = smul.addr %s191, 4
      %s193 = smul.addr %s189, 4
      %s194 = sadd.s32 %s192, %s193
      %s195 = smul.addr %s194, 8
      %s196 = scalar_lea.vmem %s0, %s195
      %p197 = pneg %p50
      %p198 = pneg %p47
      %p199 = pneg %p71
      %p200 = pneg %p68
      %p201 = pneg %p92
      %p202 = pneg %p89
      %p203 = pneg %p113
      %p204 = pneg %p110
      %p205 = pneg %p141
      %p206 = pneg %p138
      %p207 = scmp.lt.s32.totalorder %s19, 1
      %s208 = scalar_select %p207, %s19, 1
      %p209 = scmp.lt.s32.totalorder %s20, 0
      %s210 = scalar_select %p209, %s20, 0
      %s211 = smul.addr %s210, 4
      %s212 = smul.addr %s208, 4
      %s213 = sadd.s32 %s211, %s212
      %s214 = smul.addr %s213, 8
      %s215 = scalar_lea.vmem %s4, %s214
      %p216 = scmp.lt.s32.totalorder %s19, 1
      %s217 = scalar_select %p216, %s19, 1
      %p218 = scmp.lt.s32.totalorder %s20, 0
      %s219 = scalar_select %p218, %s20, 0
      %s220 = smul.addr %s219, 4
      %s221 = smul.addr %s217, 4
      %s222 = sadd.s32 %s220, %s221
      %s223 = smul.addr %s222, 8
      %s224 = scalar_lea.vmem %s0, %s223
      %p225 = scmp.lt.s32.totalorder %s19, 1
      %s226 = scalar_select %p225, %s19, 1
      %p227 = scmp.lt.s32.totalorder %s20, 0
      %s228 = scalar_select %p227, %s20, 0
      %s229 = smul.addr %s228, 4
      %s230 = smul.addr %s226, 4
      %s231 = sadd.s32 %s229, %s230
      %s232 = smul.addr %s231, 8
      %s233 = scalar_lea.vmem %s4, %s232
      %v234 = vld [vmem:[%s224] sm:$0xff]
      %v235 = vld [vmem:[%s224 + $0x8] sm:$0xff]
      %v236 = vld [vmem:[%s224 + $0x10] sm:$0xff]
      %v237 = vld [vmem:[%s224 + $0x18] sm:$0xff]
      %v238 = vld [vmem:[%s1] sm:$0xff]
      %v239 = vld [vmem:[%s1 + $0x8] sm:$0xff]
      %vm240 = vcmask 130048
      %v242 = vsel %vm240, %v234, 0
      %v245 = vsel %vm240, %v235, 0
      %v248 = vsel %vm240, %v236, 0
      %v251 = vsel %vm240, %v237, 0
      %253 = vmatprep.subr.mxu0 0.0
      %254 = vmatpush1.msra.mxu0 %v238
      %255 = vmatprep.subr.mxu0 0.0
      %256 = vmatpush1.msra.mxu0 %v239
      %257 = vmatprep.subr.mxu0 0.0
      %258 = vmatpush1.msra.mxu0 0.0
      %259 = vmatprep.subr.mxu0 0.0
      %260 = vmatpush1.msra.mxu0 0.0
      %261 = vmatprep.subr.mxu0 0.0
      %262 = vmatpush1.msra.mxu0 0.0
      %263 = vmatprep.subr.mxu0 0.0
      %264 = vmatpush1.msra.mxu0 0.0
      %265 = vmatprep.subr.mxu0 0.0
      %266 = vmatpush1.msra.mxu0 0.0
      %267 = vmatprep.subr.mxu0 0.0
      %268 = vmatpush1.msra.mxu0 0.0
      %269 = vmatprep.subr.mxu0 0.0
      %270 = vmatpush1.msra.mxu0 0.0
      %271 = vmatprep.subr.mxu0 0.0
      %272 = vmatpush1.msra.mxu0 0.0
      %273 = vmatprep.subr.mxu0 0.0
      %274 = vmatpush1.msra.mxu0 0.0
      %275 = vmatprep.subr.mxu0 0.0
      %276 = vmatpush1.msra.mxu0 0.0
      %277 = vmatprep.subr.mxu0 0.0
      %278 = vmatpush1.msra.mxu0 0.0
      %279 = vmatprep.subr.mxu0 0.0
      %280 = vmatpush1.msra.mxu0 0.0
      %281 = vmatprep.subr.mxu0 0.0
      %282 = vmatpush1.msra.mxu0 0.0
      %283 = vmatprep.subr.mxu0 0.0
      %284 = vmatpush1.msra.mxu0 0.0
      %285 = vmatprep.subr.mxu0 0.0
      %286 = vmatpush1.msra.mxu0 0.0
      %287 = vmatprep.subr.mxu0 0.0
      %288 = vmatpush1.msra.mxu0 0.0
      %289 = vmatprep.subr.mxu0 0.0
      %290 = vmatpush1.msra.mxu0 0.0
      %291 = vmatprep.subr.mxu0 0.0
      %292 = vmatpush1.msra.mxu0 0.0
      %293 = vmatprep.subr.mxu0 0.0
      %294 = vmatpush1.msra.mxu0 0.0
      %295 = vmatprep.subr.mxu0 0.0
      %296 = vmatpush1.msra.mxu0 0.0
      %297 = vmatprep.subr.mxu0 0.0
      %298 = vmatpush1.msra.mxu0 0.0
      %299 = vmatprep.subr.mxu0 0.0
      %300 = vmatpush1.msra.mxu0 0.0
      %301 = vmatprep.subr.mxu0 0.0
      %302 = vmatpush1.msra.mxu0 0.0
      %303 = vmatprep.subr.mxu0 0.0
      %304 = vmatpush1.msra.mxu0 0.0
      %305 = vmatprep.subr.mxu0 0.0
      %306 = vmatpush1.msra.mxu0 0.0
      %307 = vmatprep.subr.mxu0 0.0
      %308 = vmatpush1.msra.mxu0 0.0
      %309 = vmatprep.subr.mxu0 0.0
      %310 = vmatpush1.msra.mxu0 0.0
      %311 = vmatprep.subr.mxu0 0.0
      %312 = vmatpush1.msra.mxu0 0.0
      %313 = vmatprep.subr.mxu0 0.0
      %314 = vmatpush1.msra.mxu0 0.0
      %315 = vmatprep.subr.mxu0 0.0
      %316 = vmatpush1.msra.mxu0 0.0
      %317 = vmatprep.mubr.f32.mxu0 0.0
      %318 = vmatmul.mubr.f32.gmra.mrb[0].mxu0 %v242
      %v319 = vpop.f32.mrb[0].mxu0
      %v320 = vadd.f32 0.0, %v319
      %v321 = vpop.f32.mrb[0].mxu0
      %322 = vmatprep.mubr.f32.mxu0 0.0
      %323 = vmatmul.mubr.f32.gmra.mrb[0].mxu0 %v245
      %v324 = vpop.f32.mrb[0].mxu0
      %v325 = vadd.f32 0.0, %v324
      %v326 = vpop.f32.mrb[0].mxu0
      %327 = vmatprep.mubr.f32.mxu0 0.0
      %328 = vmatmul.mubr.f32.gmra.mrb[0].mxu0 %v248
      %v329 = vpop.f32.mrb[0].mxu0
      %v330 = vadd.f32 0.0, %v329
      %v331 = vpop.f32.mrb[0].mxu0
      %332 = vmatprep.mubr.f32.mxu0 0.0
      %333 = vmatmul.mubr.f32.gmra.mrb[0].mxu0 %v251
      %v334 = vpop.f32.mrb[0].mxu0
      %v335 = vadd.f32 0.0, %v334
      %v336 = vpop.f32.mrb[0].mxu0
      %337 = vdwg.mxu0
      %v338 = vld [vmem:[%s2] sm:$0xff]
      %v339 = vld [vmem:[%s2 + $0x8] sm:$0xff]
      %v340 = vld [vmem:[%s2 + $0x10] sm:$0xff]
      %v341 = vld [vmem:[%s2 + $0x18] sm:$0xff]
      %v342 = vld [vmem:[%s2 + $0x20] sm:$0xff]
      %v343 = vld [vmem:[%s2 + $0x28] sm:$0xff]
      %v344 = vld [vmem:[%s2 + $0x30] sm:$0xff]
      %v345 = vld [vmem:[%s2 + $0x38] sm:$0xff]
      %v346 = vld [vmem:[%s2 + $0x40] sm:$0xff]
      %v347 = vld [vmem:[%s2 + $0x48] sm:$0xff]
      %v348 = vld [vmem:[%s2 + $0x50] sm:$0xff]
      %v349 = vld [vmem:[%s2 + $0x58] sm:$0xff]
      %v350 = vld [vmem:[%s2 + $0x60] sm:$0xff]
      %v351 = vld [vmem:[%s2 + $0x68] sm:$0xff]
      %v352 = vld [vmem:[%s2 + $0x70] sm:$0xff]
      %v353 = vld [vmem:[%s2 + $0x78] sm:$0xff]
      %v354 = vld [vmem:[%s2 + $0x80] sm:$0xff]
      %v355 = vld [vmem:[%s2 + $0x88] sm:$0xff]
      %v356 = vld [vmem:[%s2 + $0x90] sm:$0xff]
      %v357 = vld [vmem:[%s2 + $0x98] sm:$0xff]
      %v358 = vld [vmem:[%s2 + $0xa0] sm:$0xff]
      %v359 = vld [vmem:[%s2 + $0xa8] sm:$0xff]
      %v360 = vld [vmem:[%s2 + $0xb0] sm:$0xff]
      %v361 = vld [vmem:[%s2 + $0xb8] sm:$0xff]
      %v362 = vld [vmem:[%s2 + $0xc0] sm:$0xff]
      %v363 = vld [vmem:[%s2 + $0xc8] sm:$0xff]
      %v364 = vld [vmem:[%s2 + $0xd0] sm:$0xff]
      %v365 = vld [vmem:[%s2 + $0xd8] sm:$0xff]
      %v366 = vld [vmem:[%s2 + $0xe0] sm:$0xff]
      %v367 = vld [vmem:[%s2 + $0xe8] sm:$0xff]
      %v368 = vld [vmem:[%s2 + $0xf0] sm:$0xff]
      %v369 = vld [vmem:[%s2 + $0xf8] sm:$0xff]
      %v370 = vld [vmem:[%s2 + $0x100] sm:$0xff]
      %v371 = vld [vmem:[%s2 + $0x108] sm:$0xff]
      %v372 = vld [vmem:[%s2 + $0x110] sm:$0xff]
      %v373 = vld [vmem:[%s2 + $0x118] sm:$0xff]
      %v374 = vld [vmem:[%s2 + $0x120] sm:$0xff]
      %v375 = vld [vmem:[%s2 + $0x128] sm:$0xff]
      %v376 = vld [vmem:[%s2 + $0x130] sm:$0xff]
      %v377 = vld [vmem:[%s2 + $0x138] sm:$0xff]
      %v378 = vld [vmem:[%s2 + $0x140] sm:$0xff]
      %v379 = vld [vmem:[%s2 + $0x148] sm:$0xff]
      %v380 = vld [vmem:[%s2 + $0x150] sm:$0xff]
      %v381 = vld [vmem:[%s2 + $0x158] sm:$0xff]
      %v382 = vld [vmem:[%s2 + $0x160] sm:$0xff]
      %v383 = vld [vmem:[%s2 + $0x168] sm:$0xff]
      %v384 = vld [vmem:[%s2 + $0x170] sm:$0xff]
      %v385 = vld [vmem:[%s2 + $0x178] sm:$0xff]
      %v386 = vld [vmem:[%s2 + $0x180] sm:$0xff]
      %v387 = vld [vmem:[%s2 + $0x188] sm:$0xff]
      %v388 = vld [vmem:[%s2 + $0x190] sm:$0xff]
      %v389 = vld [vmem:[%s2 + $0x198] sm:$0xff]
      %v390 = vld [vmem:[%s2 + $0x1a0] sm:$0xff]
      %v391 = vld [vmem:[%s2 + $0x1a8] sm:$0xff]
      %v392 = vld [vmem:[%s2 + $0x1b0] sm:$0xff]
      %v393 = vld [vmem:[%s2 + $0x1b8] sm:$0xff]
      %v394 = vld [vmem:[%s2 + $0x1c0] sm:$0xff]
      %v395 = vld [vmem:[%s2 + $0x1c8] sm:$0xff]
      %v396 = vld [vmem:[%s2 + $0x1d0] sm:$0xff]
      %v397 = vld [vmem:[%s2 + $0x1d8] sm:$0xff]
      %v398 = vld [vmem:[%s2 + $0x1e0] sm:$0xff]
      %v399 = vld [vmem:[%s2 + $0x1e8] sm:$0xff]
      %v400 = vld [vmem:[%s2 + $0x1f0] sm:$0xff]
      %v401 = vld [vmem:[%s2 + $0x1f8] sm:$0xff]
      %vm402 = vcmask 261120
      %v404 = vsel %vm402, %v338, 0
      %v407 = vsel %vm402, %v339, 0
      %v410 = vsel %vm402, %v340, 0
      %v413 = vsel %vm402, %v341, 0
      %v416 = vsel %vm402, %v342, 0
      %v419 = vsel %vm402, %v343, 0
      %v422 = vsel %vm402, %v344, 0
      %v425 = vsel %vm402, %v345, 0
      %v428 = vsel %vm402, %v346, 0
      %v431 = vsel %vm402, %v347, 0
      %v434 = vsel %vm402, %v348, 0
      %v437 = vsel %vm402, %v349, 0
      %v440 = vsel %vm402, %v350, 0
      %v443 = vsel %vm402, %v351, 0
      %v446 = vsel %vm402, %v352, 0
      %v449 = vsel %vm402, %v353, 0
      %v452 = vsel %vm402, %v354, 0
      %v455 = vsel %vm402, %v355, 0
      %v458 = vsel %vm402, %v356, 0
      %v461 = vsel %vm402, %v357, 0
      %v464 = vsel %vm402, %v358, 0
      %v467 = vsel %vm402, %v359, 0
      %v470 = vsel %vm402, %v360, 0
      %v473 = vsel %vm402, %v361, 0
      %v476 = vsel %vm402, %v362, 0
      %v479 = vsel %vm402, %v363, 0
      %v482 = vsel %vm402, %v364, 0
      %v485 = vsel %vm402, %v365, 0
      %v488 = vsel %vm402, %v366, 0
      %v491 = vsel %vm402, %v367, 0
      %v494 = vsel %vm402, %v368, 0
      %v497 = vsel %vm402, %v369, 0
      %v500 = vsel %vm402, %v370, 0
      %v503 = vsel %vm402, %v371, 0
      %v506 = vsel %vm402, %v372, 0
      %v509 = vsel %vm402, %v373, 0
      %v512 = vsel %vm402, %v374, 0
      %v515 = vsel %vm402, %v375, 0
      %v518 = vsel %vm402, %v376, 0
      %v521 = vsel %vm402, %v377, 0
      %v524 = vsel %vm402, %v378, 0
      %v527 = vsel %vm402, %v379, 0
      %v530 = vsel %vm402, %v380, 0
      %v533 = vsel %vm402, %v381, 0
      %v536 = vsel %vm402, %v382, 0
      %v539 = vsel %vm402, %v383, 0
      %v542 = vsel %vm402, %v384, 0
      %v545 = vsel %vm402, %v385, 0
      %v548 = vsel %vm402, %v386, 0
      %v551 = vsel %vm402, %v387, 0
      %v554 = vsel %vm402, %v388, 0
      %v557 = vsel %vm402, %v389, 0
      %v560 = vsel %vm402, %v390, 0
      %v563 = vsel %vm402, %v391, 0
      %v566 = vsel %vm402, %v392, 0
      %v569 = vsel %vm402, %v393, 0
      %v572 = vsel %vm402, %v394, 0
      %v575 = vsel %vm402, %v395, 0
      %v578 = vsel %vm402, %v396, 0
      %v581 = vsel %vm402, %v397, 0
      %v584 = vsel %vm402, %v398, 0
      %v587 = vsel %vm402, %v399, 0
      %v590 = vsel %vm402, %v400, 0
      %v593 = vsel %vm402, %v401, 0
      %595 = vmatprep.subr.mxu0 0.0
      %596 = vmatpush1.msra.mxu0 %v320
      %597 = vmatprep.subr.mxu0 0.0
      %598 = vmatpush1.msra.mxu0 %v325
      %599 = vmatprep.subr.mxu0 0.0
      %600 = vmatpush1.msra.mxu0 %v330
      %601 = vmatprep.subr.mxu0 0.0
      %602 = vmatpush1.msra.mxu0 %v335
      %603 = vmatprep.subr.mxu0 0.0
      %604 = vmatpush1.msra.mxu0 0.0
      %605 = vmatprep.subr.mxu0 0.0
      %606 = vmatpush1.msra.mxu0 0.0
      %607 = vmatprep.subr.mxu0 0.0
      %608 = vmatpush1.msra.mxu0 0.0
      %609 = vmatprep.subr.mxu0 0.0
      %610 = vmatpush1.msra.mxu0 0.0
      %611 = vmatprep.subr.mxu0 0.0
      %612 = vmatpush1.msra.mxu0 0.0
      %613 = vmatprep.subr.mxu0 0.0
      %614 = vmatpush1.msra.mxu0 0.0
      %615 = vmatprep.subr.mxu0 0.0
      %616 = vmatpush1.msra.mxu0 0.0
      %617 = vmatprep.subr.mxu0 0.0
      %618 = vmatpush1.msra.mxu0 0.0
      %619 = vmatprep.subr.mxu0 0.0
      %620 = vmatpush1.msra.mxu0 0.0
      %621 = vmatprep.subr.mxu0 0.0
      %622 = vmatpush1.msra.mxu0 0.0
      %623 = vmatprep.subr.mxu0 0.0
      %624 = vmatpush1.msra.mxu0 0.0
      %625 = vmatprep.subr.mxu0 0.0
      %626 = vmatpush1.msra.mxu0 0.0
      %627 = vmatprep.subr.mxu0 0.0
      %628 = vmatpush1.msra.mxu0 0.0
      %629 = vmatprep.subr.mxu0 0.0
      %630 = vmatpush1.msra.mxu0 0.0
      %631 = vmatprep.subr.mxu0 0.0
      %632 = vmatpush1.msra.mxu0 0.0
      %633 = vmatprep.subr.mxu0 0.0
      %634 = vmatpush1.msra.mxu0 0.0
      %635 = vmatprep.subr.mxu0 0.0
      %636 = vmatpush1.msra.mxu0 0.0
      %637 = vmatprep.subr.mxu0 0.0
      %638 = vmatpush1.msra.mxu0 0.0
      %639 = vmatprep.subr.mxu0 0.0
      %640 = vmatpush1.msra.mxu0 0.0
      %641 = vmatprep.subr.mxu0 0.0
      %642 = vmatpush1.msra.mxu0 0.0
      %643 = vmatprep.subr.mxu0 0.0
      %644 = vmatpush1.msra.mxu0 0.0
      %645 = vmatprep.subr.mxu0 0.0
      %646 = vmatpush1.msra.mxu0 0.0
      %647 = vmatprep.subr.mxu0 0.0
      %648 = vmatpush1.msra.mxu0 0.0
      %649 = vmatprep.subr.mxu0 0.0
      %650 = vmatpush1.msra.mxu0 0.0
      %651 = vmatprep.subr.mxu0 0.0
      %652 = vmatpush1.msra.mxu0 0.0
      %653 = vmatprep.subr.mxu0 0.0
      %654 = vmatpush1.msra.mxu0 0.0
      %655 = vmatprep.subr.mxu0 0.0
      %656 = vmatpush1.msra.mxu0 0.0
      %657 = vmatprep.subr.mxu0 0.0
      %658 = vmatpush1.msra.mxu0 0.0
      %659 = vmatprep.mubr.f32.mxu0 0.0
      %660 = vmatmul.mubr.f32.gmra.mrb[0].mxu0 %v404
      %v661 = vpop.f32.mrb[0].mxu0
      %v662 = vadd.f32 0.0, %v661
      %v663 = vpop.f32.mrb[0].mxu0
      %664 = vmatprep.mubr.f32.mxu0 0.0
      %665 = vmatmul.mubr.f32.gmra.mrb[0].mxu0 %v407
      %v666 = vpop.f32.mrb[0].mxu0
      %v667 = vadd.f32 0.0, %v666
      %v668 = vpop.f32.mrb[0].mxu0
      %669 = vmatprep.mubr.f32.mxu0 0.0
      %670 = vmatmul.mubr.f32.gmra.mrb[0].mxu0 %v410
      %v671 = vpop.f32.mrb[0].mxu0
      %v672 = vadd.f32 0.0, %v671
      %v673 = vpop.f32.mrb[0].mxu0
      %674 = vmatprep.mubr.f32.mxu0 0.0
      %675 = vmatmul.mubr.f32.gmra.mrb[0].mxu0 %v413
      %v676 = vpop.f32.mrb[0].mxu0
      %v677 = vadd.f32 0.0, %v676
      %v678 = vpop.f32.mrb[0].mxu0
      %679 = vmatprep.mubr.f32.mxu0 0.0
      %680 = vmatmul.mubr.f32.gmra.mrb[0].mxu0 %v416
      %v681 = vpop.f32.mrb[0].mxu0
      %v682 = vadd.f32 0.0, %v681
      %v683 = vpop.f32.mrb[0].mxu0
      %684 = vmatprep.mubr.f32.mxu0 0.0
      %685 = vmatmul.mubr.f32.gmra.mrb[0].mxu0 %v419
      %v686 = vpop.f32.mrb[0].mxu0
      %v687 = vadd.f32 0.0, %v686
      %v688 = vpop.f32.mrb[0].mxu0
      %689 = vmatprep.mubr.f32.mxu0 0.0
      %690 = vmatmul.mubr.f32.gmra.mrb[0].mxu0 %v422
      %v691 = vpop.f32.mrb[0].mxu0
      %v692 = vadd.f32 0.0, %v691
      %v693 = vpop.f32.mrb[0].mxu0
      %694 = vmatprep.mubr.f32.mxu0 0.0
      %695 = vmatmul.mubr.f32.gmra.mrb[0].mxu0 %v425
      %v696 = vpop.f32.mrb[0].mxu0
      %v697 = vadd.f32 0.0, %v696
      %v698 = vpop.f32.mrb[0].mxu0
      %699 = vmatprep.mubr.f32.mxu0 0.0
      %700 = vmatmul.mubr.f32.gmra.mrb[0].mxu0 %v428
      %v701 = vpop.f32.mrb[0].mxu0
      %v702 = vadd.f32 0.0, %v701
      %v703 = vpop.f32.mrb[0].mxu0
      %704 = vmatprep.mubr.f32.mxu0 0.0
      %705 = vmatmul.mubr.f32.gmra.mrb[0].mxu0 %v431
      %v706 = vpop.f32.mrb[0].mxu0
      %v707 = vadd.f32 0.0, %v706
      %v708 = vpop.f32.mrb[0].mxu0
      %709 = vmatprep.mubr.f32.mxu0 0.0
      %710 = vmatmul.mubr.f32.gmra.mrb[0].mxu0 %v434
      %v711 = vpop.f32.mrb[0].mxu0
      %v712 = vadd.f32 0.0, %v711
      %v713 = vpop.f32.mrb[0].mxu0
      %714 = vmatprep.mubr.f32.mxu0 0.0
      %715 = vmatmul.mubr.f32.gmra.mrb[0].mxu0 %v437
      %v716 = vpop.f32.mrb[0].mxu0
      %v717 = vadd.f32 0.0, %v716
      %v718 = vpop.f32.mrb[0].mxu0
      %719 = vmatprep.mubr.f32.mxu0 0.0
      %720 = vmatmul.mubr.f32.gmra.mrb[0].mxu0 %v440
      %v721 = vpop.f32.mrb[0].mxu0
      %v722 = vadd.f32 0.0, %v721
      %v723 = vpop.f32.mrb[0].mxu0
      %724 = vmatprep.mubr.f32.mxu0 0.0
      %725 = vmatmul.mubr.f32.gmra.mrb[0].mxu0 %v443
      %v726 = vpop.f32.mrb[0].mxu0
      %v727 = vadd.f32 0.0, %v726
      %v728 = vpop.f32.mrb[0].mxu0
      %729 = vmatprep.mubr.f32.mxu0 0.0
      %730 = vmatmul.mubr.f32.gmra.mrb[0].mxu0 %v446
      %v731 = vpop.f32.mrb[0].mxu0
      %v732 = vadd.f32 0.0, %v731
      %v733 = vpop.f32.mrb[0].mxu0
      %734 = vmatprep.mubr.f32.mxu0 0.0
      %735 = vmatmul.mubr.f32.gmra.mrb[0].mxu0 %v449
      %v736 = vpop.f32.mrb[0].mxu0
      %v737 = vadd.f32 0.0, %v736
      %v738 = vpop.f32.mrb[0].mxu0
      %739 = vmatprep.mubr.f32.mxu0 0.0
      %740 = vmatmul.mubr.f32.gmra.mrb[0].mxu0 %v452
      %v741 = vpop.f32.mrb[0].mxu0
      %v742 = vadd.f32 0.0, %v741
      %v743 = vpop.f32.mrb[0].mxu0
      %744 = vmatprep.mubr.f32.mxu0 0.0
      %745 = vmatmul.mubr.f32.gmra.mrb[0].mxu0 %v455
      %v746 = vpop.f32.mrb[0].mxu0
      %v747 = vadd.f32 0.0, %v746
      %v748 = vpop.f32.mrb[0].mxu0
      %749 = vmatprep.mubr.f32.mxu0 0.0
      %750 = vmatmul.mubr.f32.gmra.mrb[0].mxu0 %v458
      %v751 = vpop.f32.mrb[0].mxu0
      %v752 = vadd.f32 0.0, %v751
      %v753 = vpop.f32.mrb[0].mxu0
      %754 = vmatprep.mubr.f32.mxu0 0.0
      %755 = vmatmul.mubr.f32.gmra.mrb[0].mxu0 %v461
      %v756 = vpop.f32.mrb[0].mxu0
      %v757 = vadd.f32 0.0, %v756
      %v758 = vpop.f32.mrb[0].mxu0
      %759 = vmatprep.mubr.f32.mxu0 0.0
      %760 = vmatmul.mubr.f32.gmra.mrb[0].mxu0 %v464
      %v761 = vpop.f32.mrb[0].mxu0
      %v762 = vadd.f32 0.0, %v761
      %v763 = vpop.f32.mrb[0].mxu0
      %764 = vmatprep.mubr.f32.mxu0 0.0
      %765 = vmatmul.mubr.f32.gmra.mrb[0].mxu0 %v467
      %v766 = vpop.f32.mrb[0].mxu0
      %v767 = vadd.f32 0.0, %v766
      %v768 = vpop.f32.mrb[0].mxu0
      %769 = vmatprep.mubr.f32.mxu0 0.0
      %770 = vmatmul.mubr.f32.gmra.mrb[0].mxu0 %v470
      %v771 = vpop.f32.mrb[0].mxu0
      %v772 = vadd.f32 0.0, %v771
      %v773 = vpop.f32.mrb[0].mxu0
      %774 = vmatprep.mubr.f32.mxu0 0.0
      %775 = vmatmul.mubr.f32.gmra.mrb[0].mxu0 %v473
      %v776 = vpop.f32.mrb[0].mxu0
      %v777 = vadd.f32 0.0, %v776
      %v778 = vpop.f32.mrb[0].mxu0
      %779 = vmatprep.mubr.f32.mxu0 0.0
      %780 = vmatmul.mubr.f32.gmra.mrb[0].mxu0 %v476
      %v781 = vpop.f32.mrb[0].mxu0
      %v782 = vadd.f32 0.0, %v781
      %v783 = vpop.f32.mrb[0].mxu0
      %784 = vmatprep.mubr.f32.mxu0 0.0
      %785 = vmatmul.mubr.f32.gmra.mrb[0].mxu0 %v479
      %v786 = vpop.f32.mrb[0].mxu0
      %v787 = vadd.f32 0.0, %v786
      %v788 = vpop.f32.mrb[0].mxu0
      %789 = vmatprep.mubr.f32.mxu0 0.0
      %790 = vmatmul.mubr.f32.gmra.mrb[0].mxu0 %v482
      %v791 = vpop.f32.mrb[0].mxu0
      %v792 = vadd.f32 0.0, %v791
      %v793 = vpop.f32.mrb[0].mxu0
      %794 = vmatprep.mubr.f32.mxu0 0.0
      %795 = vmatmul.mubr.f32.gmra.mrb[0].mxu0 %v485
      %v796 = vpop.f32.mrb[0].mxu0
      %v797 = vadd.f32 0.0, %v796
      %v798 = vpop.f32.mrb[0].mxu0
      %799 = vmatprep.mubr.f32.mxu0 0.0
      %800 = vmatmul.mubr.f32.gmra.mrb[0].mxu0 %v488
      %v801 = vpop.f32.mrb[0].mxu0
      %v802 = vadd.f32 0.0, %v801
      %v803 = vpop.f32.mrb[0].mxu0
      %804 = vmatprep.mubr.f32.mxu0 0.0
      %805 = vmatmul.mubr.f32.gmra.mrb[0].mxu0 %v491
      %v806 = vpop.f32.mrb[0].mxu0
      %v807 = vadd.f32 0.0, %v806
      %v808 = vpop.f32.mrb[0].mxu0
      %809 = vmatprep.mubr.f32.mxu0 0.0
      %810 = vmatmul.mubr.f32.gmra.mrb[0].mxu0 %v494
      %v811 = vpop.f32.mrb[0].mxu0
      %v812 = vadd.f32 0.0, %v811
      %v813 = vpop.f32.mrb[0].mxu0
      %814 = vmatprep.mubr.f32.mxu0 0.0
      %815 = vmatmul.mubr.f32.gmra.mrb[0].mxu0 %v497
      %v816 = vpop.f32.mrb[0].mxu0
      %v817 = vadd.f32 0.0, %v816
      %v818 = vpop.f32.mrb[0].mxu0
      %819 = vmatprep.mubr.f32.mxu0 0.0
      %820 = vmatmul.mubr.f32.gmra.mrb[0].mxu0 %v500
      %v821 = vpop.f32.mrb[0].mxu0
      %v822 = vadd.f32 0.0, %v821
      %v823 = vpop.f32.mrb[0].mxu0
      %824 = vmatprep.mubr.f32.mxu0 0.0
      %825 = vmatmul.mubr.f32.gmra.mrb[0].mxu0 %v503
      %v826 = vpop.f32.mrb[0].mxu0
      %v827 = vadd.f32 0.0, %v826
      %v828 = vpop.f32.mrb[0].mxu0
      %829 = vmatprep.mubr.f32.mxu0 0.0
      %830 = vmatmul.mubr.f32.gmra.mrb[0].mxu0 %v506
      %v831 = vpop.f32.mrb[0].mxu0
      %v832 = vadd.f32 0.0, %v831
      %v833 = vpop.f32.mrb[0].mxu0
      %834 = vmatprep.mubr.f32.mxu0 0.0
      %835 = vmatmul.mubr.f32.gmra.mrb[0].mxu0 %v509
      %v836 = vpop.f32.mrb[0].mxu0
      %v837 = vadd.f32 0.0, %v836
      %v838 = vpop.f32.mrb[0].mxu0
      %839 = vmatprep.mubr.f32.mxu0 0.0
      %840 = vmatmul.mubr.f32.gmra.mrb[0].mxu0 %v512
      %v841 = vpop.f32.mrb[0].mxu0
      %v842 = vadd.f32 0.0, %v841
      %v843 = vpop.f32.mrb[0].mxu0
      %844 = vmatprep.mubr.f32.mxu0 0.0
      %845 = vmatmul.mubr.f32.gmra.mrb[0].mxu0 %v515
      %v846 = vpop.f32.mrb[0].mxu0
      %v847 = vadd.f32 0.0, %v846
      %v848 = vpop.f32.mrb[0].mxu0
      %849 = vmatprep.mubr.f32.mxu0 0.0
      %850 = vmatmul.mubr.f32.gmra.mrb[0].mxu0 %v518
      %v851 = vpop.f32.mrb[0].mxu0
      %v852 = vadd.f32 0.0, %v851
      %v853 = vpop.f32.mrb[0].mxu0
      %854 = vmatprep.mubr.f32.mxu0 0.0
      %855 = vmatmul.mubr.f32.gmra.mrb[0].mxu0 %v521
      %v856 = vpop.f32.mrb[0].mxu0
      %v857 = vadd.f32 0.0, %v856
      %v858 = vpop.f32.mrb[0].mxu0
      %859 = vmatprep.mubr.f32.mxu0 0.0
      %860 = vmatmul.mubr.f32.gmra.mrb[0].mxu0 %v524
      %v861 = vpop.f32.mrb[0].mxu0
      %v862 = vadd.f32 0.0, %v861
      %v863 = vpop.f32.mrb[0].mxu0
      %864 = vmatprep.mubr.f32.mxu0 0.0
      %865 = vmatmul.mubr.f32.gmra.mrb[0].mxu0 %v527
      %v866 = vpop.f32.mrb[0].mxu0
      %v867 = vadd.f32 0.0, %v866
      %v868 = vpop.f32.mrb[0].mxu0
      %869 = vmatprep.mubr.f32.mxu0 0.0
      %870 = vmatmul.mubr.f32.gmra.mrb[0].mxu0 %v530
      %v871 = vpop.f32.mrb[0].mxu0
      %v872 = vadd.f32 0.0, %v871
      %v873 = vpop.f32.mrb[0].mxu0
      %874 = vmatprep.mubr.f32.mxu0 0.0
      %875 = vmatmul.mubr.f32.gmra.mrb[0].mxu0 %v533
      %v876 = vpop.f32.mrb[0].mxu0
      %v877 = vadd.f32 0.0, %v876
      %v878 = vpop.f32.mrb[0].mxu0
      %879 = vmatprep.mubr.f32.mxu0 0.0
      %880 = vmatmul.mubr.f32.gmra.mrb[0].mxu0 %v536
      %v881 = vpop.f32.mrb[0].mxu0
      %v882 = vadd.f32 0.0, %v881
      %v883 = vpop.f32.mrb[0].mxu0
      %884 = vmatprep.mubr.f32.mxu0 0.0
      %885 = vmatmul.mubr.f32.gmra.mrb[0].mxu0 %v539
      %v886 = vpop.f32.mrb[0].mxu0
      %v887 = vadd.f32 0.0, %v886
      %v888 = vpop.f32.mrb[0].mxu0
      %889 = vmatprep.mubr.f32.mxu0 0.0
      %890 = vmatmul.mubr.f32.gmra.mrb[0].mxu0 %v542
      %v891 = vpop.f32.mrb[0].mxu0
      %v892 = vadd.f32 0.0, %v891
      %v893 = vpop.f32.mrb[0].mxu0
      %894 = vmatprep.mubr.f32.mxu0 0.0
      %895 = vmatmul.mubr.f32.gmra.mrb[0].mxu0 %v545
      %v896 = vpop.f32.mrb[0].mxu0
      %v897 = vadd.f32 0.0, %v896
      %v898 = vpop.f32.mrb[0].mxu0
      %899 = vmatprep.mubr.f32.mxu0 0.0
      %900 = vmatmul.mubr.f32.gmra.mrb[0].mxu0 %v548
      %v901 = vpop.f32.mrb[0].mxu0
      %v902 = vadd.f32 0.0, %v901
      %v903 = vpop.f32.mrb[0].mxu0
      %904 = vmatprep.mubr.f32.mxu0 0.0
      %905 = vmatmul.mubr.f32.gmra.mrb[0].mxu0 %v551
      %v906 = vpop.f32.mrb[0].mxu0
      %v907 = vadd.f32 0.0, %v906
      %v908 = vpop.f32.mrb[0].mxu0
      %909 = vmatprep.mubr.f32.mxu0 0.0
      %910 = vmatmul.mubr.f32.gmra.mrb[0].mxu0 %v554
      %v911 = vpop.f32.mrb[0].mxu0
      %v912 = vadd.f32 0.0, %v911
      %v913 = vpop.f32.mrb[0].mxu0
      %914 = vmatprep.mubr.f32.mxu0 0.0
      %915 = vmatmul.mubr.f32.gmra.mrb[0].mxu0 %v557
      %v916 = vpop.f32.mrb[0].mxu0
      %v917 = vadd.f32 0.0, %v916
      %v918 = vpop.f32.mrb[0].mxu0
      %919 = vmatprep.mubr.f32.mxu0 0.0
      %920 = vmatmul.mubr.f32.gmra.mrb[0].mxu0 %v560
      %v921 = vpop.f32.mrb[0].mxu0
      %v922 = vadd.f32 0.0, %v921
      %v923 = vpop.f32.mrb[0].mxu0
      %924 = vmatprep.mubr.f32.mxu0 0.0
      %925 = vmatmul.mubr.f32.gmra.mrb[0].mxu0 %v563
      %v926 = vpop.f32.mrb[0].mxu0
      %v927 = vadd.f32 0.0, %v926
      %v928 = vpop.f32.mrb[0].mxu0
      %929 = vmatprep.mubr.f32.mxu0 0.0
      %930 = vmatmul.mubr.f32.gmra.mrb[0].mxu0 %v566
      %v931 = vpop.f32.mrb[0].mxu0
      %v932 = vadd.f32 0.0, %v931
      %v933 = vpop.f32.mrb[0].mxu0
      %934 = vmatprep.mubr.f32.mxu0 0.0
      %935 = vmatmul.mubr.f32.gmra.mrb[0].mxu0 %v569
      %v936 = vpop.f32.mrb[0].mxu0
      %v937 = vadd.f32 0.0, %v936
      %v938 = vpop.f32.mrb[0].mxu0
      %939 = vmatprep.mubr.f32.mxu0 0.0
      %940 = vmatmul.mubr.f32.gmra.mrb[0].mxu0 %v572
      %v941 = vpop.f32.mrb[0].mxu0
      %v942 = vadd.f32 0.0, %v941
      %v943 = vpop.f32.mrb[0].mxu0
      %944 = vmatprep.mubr.f32.mxu0 0.0
      %945 = vmatmul.mubr.f32.gmra.mrb[0].mxu0 %v575
      %v946 = vpop.f32.mrb[0].mxu0
      %v947 = vadd.f32 0.0, %v946
      %v948 = vpop.f32.mrb[0].mxu0
      %949 = vmatprep.mubr.f32.mxu0 0.0
      %950 = vmatmul.mubr.f32.gmra.mrb[0].mxu0 %v578
      %v951 = vpop.f32.mrb[0].mxu0
      %v952 = vadd.f32 0.0, %v951
      %v953 = vpop.f32.mrb[0].mxu0
      %954 = vmatprep.mubr.f32.mxu0 0.0
      %955 = vmatmul.mubr.f32.gmra.mrb[0].mxu0 %v581
      %v956 = vpop.f32.mrb[0].mxu0
      %v957 = vadd.f32 0.0, %v956
      %v958 = vpop.f32.mrb[0].mxu0
      %959 = vmatprep.mubr.f32.mxu0 0.0
      %960 = vmatmul.mubr.f32.gmra.mrb[0].mxu0 %v584
      %v961 = vpop.f32.mrb[0].mxu0
      %v962 = vadd.f32 0.0, %v961
      %v963 = vpop.f32.mrb[0].mxu0
      %964 = vmatprep.mubr.f32.mxu0 0.0
      %965 = vmatmul.mubr.f32.gmra.mrb[0].mxu0 %v587
      %v966 = vpop.f32.mrb[0].mxu0
      %v967 = vadd.f32 0.0, %v966
      %v968 = vpop.f32.mrb[0].mxu0
      %969 = vmatprep.mubr.f32.mxu0 0.0
      %970 = vmatmul.mubr.f32.gmra.mrb[0].mxu0 %v590
      %v971 = vpop.f32.mrb[0].mxu0
      %v972 = vadd.f32 0.0, %v971
      %v973 = vpop.f32.mrb[0].mxu0
      %974 = vmatprep.mubr.f32.mxu0 0.0
      %975 = vmatmul.mubr.f32.gmra.mrb[0].mxu0 %v593
      %v976 = vpop.f32.mrb[0].mxu0
      %v977 = vadd.f32 0.0, %v976
      %v978 = vpop.f32.mrb[0].mxu0
      %979 = vdwg.mxu0
      %v980 = vmax.f32 %v662, 0.0
      %v981 = vmax.f32 %v667, 0.0
      %v982 = vmax.f32 %v672, 0.0
      %v983 = vmax.f32 %v677, 0.0
      %v984 = vmax.f32 %v682, 0.0
      %v985 = vmax.f32 %v687, 0.0
      %v986 = vmax.f32 %v692, 0.0
      %v987 = vmax.f32 %v697, 0.0
      %v988 = vmax.f32 %v702, 0.0
      %v989 = vmax.f32 %v707, 0.0
      %v990 = vmax.f32 %v712, 0.0
      %v991 = vmax.f32 %v717, 0.0
      %v992 = vmax.f32 %v722, 0.0
      %v993 = vmax.f32 %v727, 0.0
      %v994 = vmax.f32 %v732, 0.0
      %v995 = vmax.f32 %v737, 0.0
      %v996 = vmax.f32 %v742, 0.0
      %v997 = vmax.f32 %v747, 0.0
      %v998 = vmax.f32 %v752, 0.0
      %v999 = vmax.f32 %v757, 0.0
      %v1000 = vmax.f32 %v762, 0.0
      %v1001 = vmax.f32 %v767, 0.0
      %v1002 = vmax.f32 %v772, 0.0
      %v1003 = vmax.f32 %v777, 0.0
      %v1004 = vmax.f32 %v782, 0.0
      %v1005 = vmax.f32 %v787, 0.0
      %v1006 = vmax.f32 %v792, 0.0
      %v1007 = vmax.f32 %v797, 0.0
      %v1008 = vmax.f32 %v802, 0.0
      %v1009 = vmax.f32 %v807, 0.0
      %v1010 = vmax.f32 %v812, 0.0
      %v1011 = vmax.f32 %v817, 0.0
      %v1012 = vmax.f32 %v822, 0.0
      %v1013 = vmax.f32 %v827, 0.0
      %v1014 = vmax.f32 %v832, 0.0
      %v1015 = vmax.f32 %v837, 0.0
      %v1016 = vmax.f32 %v842, 0.0
      %v1017 = vmax.f32 %v847, 0.0
      %v1018 = vmax.f32 %v852, 0.0
      %v1019 = vmax.f32 %v857, 0.0
      %v1020 = vmax.f32 %v862, 0.0
      %v1021 = vmax.f32 %v867, 0.0
      %v1022 = vmax.f32 %v872, 0.0
      %v1023 = vmax.f32 %v877, 0.0
      %v1024 = vmax.f32 %v882, 0.0
      %v1025 = vmax.f32 %v887, 0.0
      %v1026 = vmax.f32 %v892, 0.0
      %v1027 = vmax.f32 %v897, 0.0
      %v1028 = vmax.f32 %v902, 0.0
      %v1029 = vmax.f32 %v907, 0.0
      %v1030 = vmax.f32 %v912, 0.0
      %v1031 = vmax.f32 %v917, 0.0
      %v1032 = vmax.f32 %v922, 0.0
      %v1033 = vmax.f32 %v927, 0.0
      %v1034 = vmax.f32 %v932, 0.0
      %v1035 = vmax.f32 %v937, 0.0
      %v1036 = vmax.f32 %v942, 0.0
      %v1037 = vmax.f32 %v947, 0.0
      %v1038 = vmax.f32 %v952, 0.0
      %v1039 = vmax.f32 %v957, 0.0
      %v1040 = vmax.f32 %v962, 0.0
      %v1041 = vmax.f32 %v967, 0.0
      %v1042 = vmax.f32 %v972, 0.0
      %v1043 = vmax.f32 %v977, 0.0
      %v1044 = vld [vmem:[%s3] sm:$0xff]
      %v1045 = vld [vmem:[%s3 + $0x8] sm:$0xff]
      %v1046 = vld [vmem:[%s3 + $0x10] sm:$0xff]
      %v1047 = vld [vmem:[%s3 + $0x18] sm:$0xff]
      %v1048 = vld [vmem:[%s3 + $0x20] sm:$0xff]
      %v1049 = vld [vmem:[%s3 + $0x28] sm:$0xff]
      %v1050 = vld [vmem:[%s3 + $0x30] sm:$0xff]
      %v1051 = vld [vmem:[%s3 + $0x38] sm:$0xff]
      %v1052 = vld [vmem:[%s3 + $0x40] sm:$0xff]
      %v1053 = vld [vmem:[%s3 + $0x48] sm:$0xff]
      %v1054 = vld [vmem:[%s3 + $0x50] sm:$0xff]
      %v1055 = vld [vmem:[%s3 + $0x58] sm:$0xff]
      %v1056 = vld [vmem:[%s3 + $0x60] sm:$0xff]
      %v1057 = vld [vmem:[%s3 + $0x68] sm:$0xff]
      %v1058 = vld [vmem:[%s3 + $0x70] sm:$0xff]
      %v1059 = vld [vmem:[%s3 + $0x78] sm:$0xff]
      %s1060 = scalar_lea.vmem %s1, 16
      %v1061 = vld [vmem:[%s1060] sm:$0xff]
      %v1062 = vld [vmem:[%s1060 + $0x8] sm:$0xff]
      %1063 = vmatprep.subr.mxu0 0.0
      %1064 = vmatpush1.msra.mxu0 %v1061
      %1065 = vmatprep.subr.mxu0 0.0
      %1066 = vmatpush1.msra.mxu0 %v1062
      %1067 = vmatprep.subr.mxu0 0.0
      %1068 = vmatpush1.msra.mxu0 0.0
      %1069 = vmatprep.subr.mxu0 0.0
      %1070 = vmatpush1.msra.mxu0 0.0
      %1071 = vmatprep.subr.mxu0 0.0
      %1072 = vmatpush1.msra.mxu0 0.0
      %1073 = vmatprep.subr.mxu0 0.0
      %1074 = vmatpush1.msra.mxu0 0.0
      %1075 = vmatprep.subr.mxu0 0.0
      %1076 = vmatpush1.msra.mxu0 0.0
      %1077 = vmatprep.subr.mxu0 0.0
      %1078 = vmatpush1.msra.mxu0 0.0
      %1079 = vmatprep.subr.mxu0 0.0
      %1080 = vmatpush1.msra.mxu0 0.0
      %1081 = vmatprep.subr.mxu0 0.0
      %1082 = vmatpush1.msra.mxu0 0.0
      %1083 = vmatprep.subr.mxu0 0.0
      %1084 = vmatpush1.msra.mxu0 0.0
      %1085 = vmatprep.subr.mxu0 0.0
      %1086 = vmatpush1.msra.mxu0 0.0
      %1087 = vmatprep.subr.mxu0 0.0
      %1088 = vmatpush1.msra.mxu0 0.0
      %1089 = vmatprep.subr.mxu0 0.0
      %1090 = vmatpush1.msra.mxu0 0.0
      %1091 = vmatprep.subr.mxu0 0.0
      %1092 = vmatpush1.msra.mxu0 0.0
      %1093 = vmatprep.subr.mxu0 0.0
      %1094 = vmatpush1.msra.mxu0 0.0
      %1095 = vmatprep.subr.mxu0 0.0
      %1096 = vmatpush1.msra.mxu0 0.0
      %1097 = vmatprep.subr.mxu0 0.0
      %1098 = vmatpush1.msra.mxu0 0.0
      %1099 = vmatprep.subr.mxu0 0.0
      %1100 = vmatpush1.msra.mxu0 0.0
      %1101 = vmatprep.subr.mxu0 0.0
      %1102 = vmatpush1.msra.mxu0 0.0
      %1103 = vmatprep.subr.mxu0 0.0
      %1104 = vmatpush1.msra.mxu0 0.0
      %1105 = vmatprep.subr.mxu0 0.0
      %1106 = vmatpush1.msra.mxu0 0.0
      %1107 = vmatprep.subr.mxu0 0.0
      %1108 = vmatpush1.msra.mxu0 0.0
      %1109 = vmatprep.subr.mxu0 0.0
      %1110 = vmatpush1.msra.mxu0 0.0
      %1111 = vmatprep.subr.mxu0 0.0
      %1112 = vmatpush1.msra.mxu0 0.0
      %1113 = vmatprep.subr.mxu0 0.0
      %1114 = vmatpush1.msra.mxu0 0.0
      %1115 = vmatprep.subr.mxu0 0.0
      %1116 = vmatpush1.msra.mxu0 0.0
      %1117 = vmatprep.subr.mxu0 0.0
      %1118 = vmatpush1.msra.mxu0 0.0
      %1119 = vmatprep.subr.mxu0 0.0
      %1120 = vmatpush1.msra.mxu0 0.0
      %1121 = vmatprep.subr.mxu0 0.0
      %1122 = vmatpush1.msra.mxu0 0.0
      %1123 = vmatprep.subr.mxu0 0.0
      %1124 = vmatpush1.msra.mxu0 0.0
      %1125 = vmatprep.subr.mxu0 0.0
      %1126 = vmatpush1.msra.mxu0 0.0
      %1127 = vmatprep.mubr.f32.mxu0 0.0
      %1128 = vmatmul.mubr.f32.gmra.mrb[0].mxu0 %v242
      %v1129 = vpop.f32.mrb[0].mxu0
      %v1130 = vadd.f32 0.0, %v1129
      %v1131 = vpop.f32.mrb[0].mxu0
      %1132 = vmatprep.mubr.f32.mxu0 0.0
      %1133 = vmatmul.mubr.f32.gmra.mrb[0].mxu0 %v245
      %v1134 = vpop.f32.mrb[0].mxu0
      %v1135 = vadd.f32 0.0, %v1134
      %v1136 = vpop.f32.mrb[0].mxu0
      %1137 = vmatprep.mubr.f32.mxu0 0.0
      %1138 = vmatmul.mubr.f32.gmra.mrb[0].mxu0 %v248
      %v1139 = vpop.f32.mrb[0].mxu0
      %v1140 = vadd.f32 0.0, %v1139
      %v1141 = vpop.f32.mrb[0].mxu0
      %1142 = vmatprep.mubr.f32.mxu0 0.0
      %1143 = vmatmul.mubr.f32.gmra.mrb[0].mxu0 %v251
      %v1144 = vpop.f32.mrb[0].mxu0
      %v1145 = vadd.f32 0.0, %v1144
      %v1146 = vpop.f32.mrb[0].mxu0
      %1147 = vdwg.mxu0
      %s1148 = scalar_lea.vmem %s2, 512
      %v1149 = vld [vmem:[%s1148] sm:$0xff]
      %v1150 = vld [vmem:[%s1148 + $0x8] sm:$0xff]
      %v1151 = vld [vmem:[%s1148 + $0x10] sm:$0xff]
      %v1152 = vld [vmem:[%s1148 + $0x18] sm:$0xff]
      %v1153 = vld [vmem:[%s1148 + $0x20] sm:$0xff]
      %v1154 = vld [vmem:[%s1148 + $0x28] sm:$0xff]
      %v1155 = vld [vmem:[%s1148 + $0x30] sm:$0xff]
      %v1156 = vld [vmem:[%s1148 + $0x38] sm:$0xff]
      %v1157 = vld [vmem:[%s1148 + $0x40] sm:$0xff]
      %v1158 = vld [vmem:[%s1148 + $0x48] sm:$0xff]
      %v1159 = vld [vmem:[%s1148 + $0x50] sm:$0xff]
      %v1160 = vld [vmem:[%s1148 + $0x58] sm:$0xff]
      %v1161 = vld [vmem:[%s1148 + $0x60] sm:$0xff]
      %v1162 = vld [vmem:[%s1148 + $0x68] sm:$0xff]
      %v1163 = vld [vmem:[%s1148 + $0x70] sm:$0xff]
      %v1164 = vld [vmem:[%s1148 + $0x78] sm:$0xff]
      %v1165 = vld [vmem:[%s1148 + $0x80] sm:$0xff]
      %v1166 = vld [vmem:[%s1148 + $0x88] sm:$0xff]
      %v1167 = vld [vmem:[%s1148 + $0x90] sm:$0xff]
      %v1168 = vld [vmem:[%s1148 + $0x98] sm:$0xff]
      %v1169 = vld [vmem:[%s1148 + $0xa0] sm:$0xff]
      %v1170 = vld [vmem:[%s1148 + $0xa8] sm:$0xff]
      %v1171 = vld [vmem:[%s1148 + $0xb0] sm:$0xff]
      %v1172 = vld [vmem:[%s1148 + $0xb8] sm:$0xff]
      %v1173 = vld [vmem:[%s1148 + $0xc0] sm:$0xff]
      %v1174 = vld [vmem:[%s1148 + $0xc8] sm:$0xff]
      %v1175 = vld [vmem:[%s1148 + $0xd0] sm:$0xff]
      %v1176 = vld [vmem:[%s1148 + $0xd8] sm:$0xff]
      %v1177 = vld [vmem:[%s1148 + $0xe0] sm:$0xff]
      %v1178 = vld [vmem:[%s1148 + $0xe8] sm:$0xff]
      %v1179 = vld [vmem:[%s1148 + $0xf0] sm:$0xff]
      %v1180 = vld [vmem:[%s1148 + $0xf8] sm:$0xff]
      %v1181 = vld [vmem:[%s1148 + $0x100] sm:$0xff]
      %v1182 = vld [vmem:[%s1148 + $0x108] sm:$0xff]
      %v1183 = vld [vmem:[%s1148 + $0x110] sm:$0xff]
      %v1184 = vld [vmem:[%s1148 + $0x118] sm:$0xff]
      %v1185 = vld [vmem:[%s1148 + $0x120] sm:$0xff]
      %v1186 = vld [vmem:[%s1148 + $0x128] sm:$0xff]
      %v1187 = vld [vmem:[%s1148 + $0x130] sm:$0xff]
      %v1188 = vld [vmem:[%s1148 + $0x138] sm:$0xff]
      %v1189 = vld [vmem:[%s1148 + $0x140] sm:$0xff]
      %v1190 = vld [vmem:[%s1148 + $0x148] sm:$0xff]
      %v1191 = vld [vmem:[%s1148 + $0x150] sm:$0xff]
      %v1192 = vld [vmem:[%s1148 + $0x158] sm:$0xff]
      %v1193 = vld [vmem:[%s1148 + $0x160] sm:$0xff]
      %v1194 = vld [vmem:[%s1148 + $0x168] sm:$0xff]
      %v1195 = vld [vmem:[%s1148 + $0x170] sm:$0xff]
      %v1196 = vld [vmem:[%s1148 + $0x178] sm:$0xff]
      %v1197 = vld [vmem:[%s1148 + $0x180] sm:$0xff]
      %v1198 = vld [vmem:[%s1148 + $0x188] sm:$0xff]
      %v1199 = vld [vmem:[%s1148 + $0x190] sm:$0xff]
      %v1200 = vld [vmem:[%s1148 + $0x198] sm:$0xff]
      %v1201 = vld [vmem:[%s1148 + $0x1a0] sm:$0xff]
      %v1202 = vld [vmem:[%s1148 + $0x1a8] sm:$0xff]
      %v1203 = vld [vmem:[%s1148 + $0x1b0] sm:$0xff]
      %v1204 = vld [vmem:[%s1148 + $0x1b8] sm:$0xff]
      %v1205 = vld [vmem:[%s1148 + $0x1c0] sm:$0xff]
      %v1206 = vld [vmem:[%s1148 + $0x1c8] sm:$0xff]
      %v1207 = vld [vmem:[%s1148 + $0x1d0] sm:$0xff]
      %v1208 = vld [vmem:[%s1148 + $0x1d8] sm:$0xff]
      %v1209 = vld [vmem:[%s1148 + $0x1e0] sm:$0xff]
      %v1210 = vld [vmem:[%s1148 + $0x1e8] sm:$0xff]
      %v1211 = vld [vmem:[%s1148 + $0x1f0] sm:$0xff]
      %v1212 = vld [vmem:[%s1148 + $0x1f8] sm:$0xff]
      %v1214 = vsel %vm402, %v1149, 0
      %v1217 = vsel %vm402, %v1150, 0
      %v1220 = vsel %vm402, %v1151, 0
      %v1223 = vsel %vm402, %v1152, 0
      %v1226 = vsel %vm402, %v1153, 0
      %v1229 = vsel %vm402, %v1154, 0
      %v1232 = vsel %vm402, %v1155, 0
      %v1235 = vsel %vm402, %v1156, 0
      %v1238 = vsel %vm402, %v1157, 0
      %v1241 = vsel %vm402, %v1158, 0
      %v1244 = vsel %vm402, %v1159, 0
      %v1247 = vsel %vm402, %v1160, 0
      %v1250 = vsel %vm402, %v1161, 0
      %v1253 = vsel %vm402, %v1162, 0
      %v1256 = vsel %vm402, %v1163, 0
      %v1259 = vsel %vm402, %v1164, 0
      %v1262 = vsel %vm402, %v1165, 0
      %v1265 = vsel %vm402, %v1166, 0
      %v1268 = vsel %vm402, %v1167, 0
      %v1271 = vsel %vm402, %v1168, 0
      %v1274 = vsel %vm402, %v1169, 0
      %v1277 = vsel %vm402, %v1170, 0
      %v1280 = vsel %vm402, %v1171, 0
      %v1283 = vsel %vm402, %v1172, 0
      %v1286 = vsel %vm402, %v1173, 0
      %v1289 = vsel %vm402, %v1174, 0
      %v1292 = vsel %vm402, %v1175, 0
      %v1295 = vsel %vm402, %v1176, 0
      %v1298 = vsel %vm402, %v1177, 0
      %v1301 = vsel %vm402, %v1178, 0
      %v1304 = vsel %vm402, %v1179, 0
      %v1307 = vsel %vm402, %v1180, 0
      %v1310 = vsel %vm402, %v1181, 0
      %v1313 = vsel %vm402, %v1182, 0
      %v1316 = vsel %vm402, %v1183, 0
      %v1319 = vsel %vm402, %v1184, 0
      %v1322 = vsel %vm402, %v1185, 0
      %v1325 = vsel %vm402, %v1186, 0
      %v1328 = vsel %vm402, %v1187, 0
      %v1331 = vsel %vm402, %v1188, 0
      %v1334 = vsel %vm402, %v1189, 0
      %v1337 = vsel %vm402, %v1190, 0
      %v1340 = vsel %vm402, %v1191, 0
      %v1343 = vsel %vm402, %v1192, 0
      %v1346 = vsel %vm402, %v1193, 0
      %v1349 = vsel %vm402, %v1194, 0
      %v1352 = vsel %vm402, %v1195, 0
      %v1355 = vsel %vm402, %v1196, 0
      %v1358 = vsel %vm402, %v1197, 0
      %v1361 = vsel %vm402, %v1198, 0
      %v1364 = vsel %vm402, %v1199, 0
      %v1367 = vsel %vm402, %v1200, 0
      %v1370 = vsel %vm402, %v1201, 0
      %v1373 = vsel %vm402, %v1202, 0
      %v1376 = vsel %vm402, %v1203, 0
      %v1379 = vsel %vm402, %v1204, 0
      %v1382 = vsel %vm402, %v1205, 0
      %v1385 = vsel %vm402, %v1206, 0
      %v1388 = vsel %vm402, %v1207, 0
      %v1391 = vsel %vm402, %v1208, 0
      %v1394 = vsel %vm402, %v1209, 0
      %v1397 = vsel %vm402, %v1210, 0
      %v1400 = vsel %vm402, %v1211, 0
      %v1403 = vsel %vm402, %v1212, 0
      %1405 = vmatprep.subr.mxu0 0.0
      %1406 = vmatpush1.msra.mxu0 %v1130
      %1407 = vmatprep.subr.mxu0 0.0
      %1408 = vmatpush1.msra.mxu0 %v1135
      %1409 = vmatprep.subr.mxu0 0.0
      %1410 = vmatpush1.msra.mxu0 %v1140
      %1411 = vmatprep.subr.mxu0 0.0
      %1412 = vmatpush1.msra.mxu0 %v1145
      %1413 = vmatprep.subr.mxu0 0.0
      %1414 = vmatpush1.msra.mxu0 0.0
      %1415 = vmatprep.subr.mxu0 0.0
      %1416 = vmatpush1.msra.mxu0 0.0
      %1417 = vmatprep.subr.mxu0 0.0
      %1418 = vmatpush1.msra.mxu0 0.0
      %1419 = vmatprep.subr.mxu0 0.0
      %1420 = vmatpush1.msra.mxu0 0.0
      %1421 = vmatprep.subr.mxu0 0.0
      %1422 = vmatpush1.msra.mxu0 0.0
      %1423 = vmatprep.subr.mxu0 0.0
      %1424 = vmatpush1.msra.mxu0 0.0
      %1425 = vmatprep.subr.mxu0 0.0
      %1426 = vmatpush1.msra.mxu0 0.0
      %1427 = vmatprep.subr.mxu0 0.0
      %1428 = vmatpush1.msra.mxu0 0.0
      %1429 = vmatprep.subr.mxu0 0.0
      %1430 = vmatpush1.msra.mxu0 0.0
      %1431 = vmatprep.subr.mxu0 0.0
      %1432 = vmatpush1.msra.mxu0 0.0
      %1433 = vmatprep.subr.mxu0 0.0
      %1434 = vmatpush1.msra.mxu0 0.0
      %1435 = vmatprep.subr.mxu0 0.0
      %1436 = vmatpush1.msra.mxu0 0.0
      %1437 = vmatprep.subr.mxu0 0.0
      %1438 = vmatpush1.msra.mxu0 0.0
      %1439 = vmatprep.subr.mxu0 0.0
      %1440 = vmatpush1.msra.mxu0 0.0
      %1441 = vmatprep.subr.mxu0 0.0
      %1442 = vmatpush1.msra.mxu0 0.0
      %1443 = vmatprep.subr.mxu0 0.0
      %1444 = vmatpush1.msra.mxu0 0.0
      %1445 = vmatprep.subr.mxu0 0.0
      %1446 = vmatpush1.msra.mxu0 0.0
      %1447 = vmatprep.subr.mxu0 0.0
      %1448 = vmatpush1.msra.mxu0 0.0
      %1449 = vmatprep.subr.mxu0 0.0
      %1450 = vmatpush1.msra.mxu0 0.0
      %1451 = vmatprep.subr.mxu0 0.0
      %1452 = vmatpush1.msra.mxu0 0.0
      %1453 = vmatprep.subr.mxu0 0.0
      %1454 = vmatpush1.msra.mxu0 0.0
      %1455 = vmatprep.subr.mxu0 0.0
      %1456 = vmatpush1.msra.mxu0 0.0
      %1457 = vmatprep.subr.mxu0 0.0
      %1458 = vmatpush1.msra.mxu0 0.0
      %1459 = vmatprep.subr.mxu0 0.0
      %1460 = vmatpush1.msra.mxu0 0.0
      %1461 = vmatprep.subr.mxu0 0.0
      %1462 = vmatpush1.msra.mxu0 0.0
      %1463 = vmatprep.subr.mxu0 0.0
      %1464 = vmatpush1.msra.mxu0 0.0
      %1465 = vmatprep.subr.mxu0 0.0
      %1466 = vmatpush1.msra.mxu0 0.0
      %1467 = vmatprep.subr.mxu0 0.0
      %1468 = vmatpush1.msra.mxu0 0.0
      %1469 = vmatprep.mubr.f32.mxu0 0.0
      %1470 = vmatmul.mubr.f32.gmra.mrb[0].mxu0 %v1214
      %v1471 = vpop.f32.mrb[0].mxu0
      %v1472 = vadd.f32 0.0, %v1471
      %v1473 = vpop.f32.mrb[0].mxu0
      %1474 = vmatprep.mubr.f32.mxu0 0.0
      %1475 = vmatmul.mubr.f32.gmra.mrb[0].mxu0 %v1217
      %v1476 = vpop.f32.mrb[0].mxu0
      %v1477 = vadd.f32 0.0, %v1476
      %v1478 = vpop.f32.mrb[0].mxu0
      %1479 = vmatprep.mubr.f32.mxu0 0.0
      %1480 = vmatmul.mubr.f32.gmra.mrb[0].mxu0 %v1220
      %v1481 = vpop.f32.mrb[0].mxu0
      %v1482 = vadd.f32 0.0, %v1481
      %v1483 = vpop.f32.mrb[0].mxu0
      %1484 = vmatprep.mubr.f32.mxu0 0.0
      %1485 = vmatmul.mubr.f32.gmra.mrb[0].mxu0 %v1223
      %v1486 = vpop.f32.mrb[0].mxu0
      %v1487 = vadd.f32 0.0, %v1486
      %v1488 = vpop.f32.mrb[0].mxu0
      %1489 = vmatprep.mubr.f32.mxu0 0.0
      %1490 = vmatmul.mubr.f32.gmra.mrb[0].mxu0 %v1226
      %v1491 = vpop.f32.mrb[0].mxu0
      %v1492 = vadd.f32 0.0, %v1491
      %v1493 = vpop.f32.mrb[0].mxu0
      %1494 = vmatprep.mubr.f32.mxu0 0.0
      %1495 = vmatmul.mubr.f32.gmra.mrb[0].mxu0 %v1229
      %v1496 = vpop.f32.mrb[0].mxu0
      %v1497 = vadd.f32 0.0, %v1496
      %v1498 = vpop.f32.mrb[0].mxu0
      %1499 = vmatprep.mubr.f32.mxu0 0.0
      %1500 = vmatmul.mubr.f32.gmra.mrb[0].mxu0 %v1232
      %v1501 = vpop.f32.mrb[0].mxu0
      %v1502 = vadd.f32 0.0, %v1501
      %v1503 = vpop.f32.mrb[0].mxu0
      %1504 = vmatprep.mubr.f32.mxu0 0.0
      %1505 = vmatmul.mubr.f32.gmra.mrb[0].mxu0 %v1235
      %v1506 = vpop.f32.mrb[0].mxu0
      %v1507 = vadd.f32 0.0, %v1506
      %v1508 = vpop.f32.mrb[0].mxu0
      %1509 = vmatprep.mubr.f32.mxu0 0.0
      %1510 = vmatmul.mubr.f32.gmra.mrb[0].mxu0 %v1238
      %v1511 = vpop.f32.mrb[0].mxu0
      %v1512 = vadd.f32 0.0, %v1511
      %v1513 = vpop.f32.mrb[0].mxu0
      %1514 = vmatprep.mubr.f32.mxu0 0.0
      %1515 = vmatmul.mubr.f32.gmra.mrb[0].mxu0 %v1241
      %v1516 = vpop.f32.mrb[0].mxu0
      %v1517 = vadd.f32 0.0, %v1516
      %v1518 = vpop.f32.mrb[0].mxu0
      %1519 = vmatprep.mubr.f32.mxu0 0.0
      %1520 = vmatmul.mubr.f32.gmra.mrb[0].mxu0 %v1244
      %v1521 = vpop.f32.mrb[0].mxu0
      %v1522 = vadd.f32 0.0, %v1521
      %v1523 = vpop.f32.mrb[0].mxu0
      %1524 = vmatprep.mubr.f32.mxu0 0.0
      %1525 = vmatmul.mubr.f32.gmra.mrb[0].mxu0 %v1247
      %v1526 = vpop.f32.mrb[0].mxu0
      %v1527 = vadd.f32 0.0, %v1526
      %v1528 = vpop.f32.mrb[0].mxu0
      %1529 = vmatprep.mubr.f32.mxu0 0.0
      %1530 = vmatmul.mubr.f32.gmra.mrb[0].mxu0 %v1250
      %v1531 = vpop.f32.mrb[0].mxu0
      %v1532 = vadd.f32 0.0, %v1531
      %v1533 = vpop.f32.mrb[0].mxu0
      %1534 = vmatprep.mubr.f32.mxu0 0.0
      %1535 = vmatmul.mubr.f32.gmra.mrb[0].mxu0 %v1253
      %v1536 = vpop.f32.mrb[0].mxu0
      %v1537 = vadd.f32 0.0, %v1536
      %v1538 = vpop.f32.mrb[0].mxu0
      %1539 = vmatprep.mubr.f32.mxu0 0.0
      %1540 = vmatmul.mubr.f32.gmra.mrb[0].mxu0 %v1256
      %v1541 = vpop.f32.mrb[0].mxu0
      %v1542 = vadd.f32 0.0, %v1541
      %v1543 = vpop.f32.mrb[0].mxu0
      %1544 = vmatprep.mubr.f32.mxu0 0.0
      %1545 = vmatmul.mubr.f32.gmra.mrb[0].mxu0 %v1259
      %v1546 = vpop.f32.mrb[0].mxu0
      %v1547 = vadd.f32 0.0, %v1546
      %v1548 = vpop.f32.mrb[0].mxu0
      %1549 = vmatprep.mubr.f32.mxu0 0.0
      %1550 = vmatmul.mubr.f32.gmra.mrb[0].mxu0 %v1262
      %v1551 = vpop.f32.mrb[0].mxu0
      %v1552 = vadd.f32 0.0, %v1551
      %v1553 = vpop.f32.mrb[0].mxu0
      %1554 = vmatprep.mubr.f32.mxu0 0.0
      %1555 = vmatmul.mubr.f32.gmra.mrb[0].mxu0 %v1265
      %v1556 = vpop.f32.mrb[0].mxu0
      %v1557 = vadd.f32 0.0, %v1556
      %v1558 = vpop.f32.mrb[0].mxu0
      %1559 = vmatprep.mubr.f32.mxu0 0.0
      %1560 = vmatmul.mubr.f32.gmra.mrb[0].mxu0 %v1268
      %v1561 = vpop.f32.mrb[0].mxu0
      %v1562 = vadd.f32 0.0, %v1561
      %v1563 = vpop.f32.mrb[0].mxu0
      %1564 = vmatprep.mubr.f32.mxu0 0.0
      %1565 = vmatmul.mubr.f32.gmra.mrb[0].mxu0 %v1271
      %v1566 = vpop.f32.mrb[0].mxu0
      %v1567 = vadd.f32 0.0, %v1566
      %v1568 = vpop.f32.mrb[0].mxu0
      %1569 = vmatprep.mubr.f32.mxu0 0.0
      %1570 = vmatmul.mubr.f32.gmra.mrb[0].mxu0 %v1274
      %v1571 = vpop.f32.mrb[0].mxu0
      %v1572 = vadd.f32 0.0, %v1571
      %v1573 = vpop.f32.mrb[0].mxu0
      %1574 = vmatprep.mubr.f32.mxu0 0.0
      %1575 = vmatmul.mubr.f32.gmra.mrb[0].mxu0 %v1277
      %v1576 = vpop.f32.mrb[0].mxu0
      %v1577 = vadd.f32 0.0, %v1576
      %v1578 = vpop.f32.mrb[0].mxu0
      %1579 = vmatprep.mubr.f32.mxu0 0.0
      %1580 = vmatmul.mubr.f32.gmra.mrb[0].mxu0 %v1280
      %v1581 = vpop.f32.mrb[0].mxu0
      %v1582 = vadd.f32 0.0, %v1581
      %v1583 = vpop.f32.mrb[0].mxu0
      %1584 = vmatprep.mubr.f32.mxu0 0.0
      %1585 = vmatmul.mubr.f32.gmra.mrb[0].mxu0 %v1283
      %v1586 = vpop.f32.mrb[0].mxu0
      %v1587 = vadd.f32 0.0, %v1586
      %v1588 = vpop.f32.mrb[0].mxu0
      %1589 = vmatprep.mubr.f32.mxu0 0.0
      %1590 = vmatmul.mubr.f32.gmra.mrb[0].mxu0 %v1286
      %v1591 = vpop.f32.mrb[0].mxu0
      %v1592 = vadd.f32 0.0, %v1591
      %v1593 = vpop.f32.mrb[0].mxu0
      %1594 = vmatprep.mubr.f32.mxu0 0.0
      %1595 = vmatmul.mubr.f32.gmra.mrb[0].mxu0 %v1289
      %v1596 = vpop.f32.mrb[0].mxu0
      %v1597 = vadd.f32 0.0, %v1596
      %v1598 = vpop.f32.mrb[0].mxu0
      %1599 = vmatprep.mubr.f32.mxu0 0.0
      %1600 = vmatmul.mubr.f32.gmra.mrb[0].mxu0 %v1292
      %v1601 = vpop.f32.mrb[0].mxu0
      %v1602 = vadd.f32 0.0, %v1601
      %v1603 = vpop.f32.mrb[0].mxu0
      %1604 = vmatprep.mubr.f32.mxu0 0.0
      %1605 = vmatmul.mubr.f32.gmra.mrb[0].mxu0 %v1295
      %v1606 = vpop.f32.mrb[0].mxu0
      %v1607 = vadd.f32 0.0, %v1606
      %v1608 = vpop.f32.mrb[0].mxu0
      %1609 = vmatprep.mubr.f32.mxu0 0.0
      %1610 = vmatmul.mubr.f32.gmra.mrb[0].mxu0 %v1298
      %v1611 = vpop.f32.mrb[0].mxu0
      %v1612 = vadd.f32 0.0, %v1611
      %v1613 = vpop.f32.mrb[0].mxu0
      %1614 = vmatprep.mubr.f32.mxu0 0.0
      %1615 = vmatmul.mubr.f32.gmra.mrb[0].mxu0 %v1301
      %v1616 = vpop.f32.mrb[0].mxu0
      %v1617 = vadd.f32 0.0, %v1616
      %v1618 = vpop.f32.mrb[0].mxu0
      %1619 = vmatprep.mubr.f32.mxu0 0.0
      %1620 = vmatmul.mubr.f32.gmra.mrb[0].mxu0 %v1304
      %v1621 = vpop.f32.mrb[0].mxu0
      %v1622 = vadd.f32 0.0, %v1621
      %v1623 = vpop.f32.mrb[0].mxu0
      %1624 = vmatprep.mubr.f32.mxu0 0.0
      %1625 = vmatmul.mubr.f32.gmra.mrb[0].mxu0 %v1307
      %v1626 = vpop.f32.mrb[0].mxu0
      %v1627 = vadd.f32 0.0, %v1626
      %v1628 = vpop.f32.mrb[0].mxu0
      %1629 = vmatprep.mubr.f32.mxu0 0.0
      %1630 = vmatmul.mubr.f32.gmra.mrb[0].mxu0 %v1310
      %v1631 = vpop.f32.mrb[0].mxu0
      %v1632 = vadd.f32 0.0, %v1631
      %v1633 = vpop.f32.mrb[0].mxu0
      %1634 = vmatprep.mubr.f32.mxu0 0.0
      %1635 = vmatmul.mubr.f32.gmra.mrb[0].mxu0 %v1313
      %v1636 = vpop.f32.mrb[0].mxu0
      %v1637 = vadd.f32 0.0, %v1636
      %v1638 = vpop.f32.mrb[0].mxu0
      %1639 = vmatprep.mubr.f32.mxu0 0.0
      %1640 = vmatmul.mubr.f32.gmra.mrb[0].mxu0 %v1316
      %v1641 = vpop.f32.mrb[0].mxu0
      %v1642 = vadd.f32 0.0, %v1641
      %v1643 = vpop.f32.mrb[0].mxu0
      %1644 = vmatprep.mubr.f32.mxu0 0.0
      %1645 = vmatmul.mubr.f32.gmra.mrb[0].mxu0 %v1319
      %v1646 = vpop.f32.mrb[0].mxu0
      %v1647 = vadd.f32 0.0, %v1646
      %v1648 = vpop.f32.mrb[0].mxu0
      %1649 = vmatprep.mubr.f32.mxu0 0.0
      %1650 = vmatmul.mubr.f32.gmra.mrb[0].mxu0 %v1322
      %v1651 = vpop.f32.mrb[0].mxu0
      %v1652 = vadd.f32 0.0, %v1651
      %v1653 = vpop.f32.mrb[0].mxu0
      %1654 = vmatprep.mubr.f32.mxu0 0.0
      %1655 = vmatmul.mubr.f32.gmra.mrb[0].mxu0 %v1325
      %v1656 = vpop.f32.mrb[0].mxu0
      %v1657 = vadd.f32 0.0, %v1656
      %v1658 = vpop.f32.mrb[0].mxu0
      %1659 = vmatprep.mubr.f32.mxu0 0.0
      %1660 = vmatmul.mubr.f32.gmra.mrb[0].mxu0 %v1328
      %v1661 = vpop.f32.mrb[0].mxu0
      %v1662 = vadd.f32 0.0, %v1661
      %v1663 = vpop.f32.mrb[0].mxu0
      %1664 = vmatprep.mubr.f32.mxu0 0.0
      %1665 = vmatmul.mubr.f32.gmra.mrb[0].mxu0 %v1331
      %v1666 = vpop.f32.mrb[0].mxu0
      %v1667 = vadd.f32 0.0, %v1666
      %v1668 = vpop.f32.mrb[0].mxu0
      %1669 = vmatprep.mubr.f32.mxu0 0.0
      %1670 = vmatmul.mubr.f32.gmra.mrb[0].mxu0 %v1334
      %v1671 = vpop.f32.mrb[0].mxu0
      %v1672 = vadd.f32 0.0, %v1671
      %v1673 = vpop.f32.mrb[0].mxu0
      %1674 = vmatprep.mubr.f32.mxu0 0.0
      %1675 = vmatmul.mubr.f32.gmra.mrb[0].mxu0 %v1337
      %v1676 = vpop.f32.mrb[0].mxu0
      %v1677 = vadd.f32 0.0, %v1676
      %v1678 = vpop.f32.mrb[0].mxu0
      %1679 = vmatprep.mubr.f32.mxu0 0.0
      %1680 = vmatmul.mubr.f32.gmra.mrb[0].mxu0 %v1340
      %v1681 = vpop.f32.mrb[0].mxu0
      %v1682 = vadd.f32 0.0, %v1681
      %v1683 = vpop.f32.mrb[0].mxu0
      %1684 = vmatprep.mubr.f32.mxu0 0.0
      %1685 = vmatmul.mubr.f32.gmra.mrb[0].mxu0 %v1343
      %v1686 = vpop.f32.mrb[0].mxu0
      %v1687 = vadd.f32 0.0, %v1686
      %v1688 = vpop.f32.mrb[0].mxu0
      %1689 = vmatprep.mubr.f32.mxu0 0.0
      %1690 = vmatmul.mubr.f32.gmra.mrb[0].mxu0 %v1346
      %v1691 = vpop.f32.mrb[0].mxu0
      %v1692 = vadd.f32 0.0, %v1691
      %v1693 = vpop.f32.mrb[0].mxu0
      %1694 = vmatprep.mubr.f32.mxu0 0.0
      %1695 = vmatmul.mubr.f32.gmra.mrb[0].mxu0 %v1349
      %v1696 = vpop.f32.mrb[0].mxu0
      %v1697 = vadd.f32 0.0, %v1696
      %v1698 = vpop.f32.mrb[0].mxu0
      %1699 = vmatprep.mubr.f32.mxu0 0.0
      %1700 = vmatmul.mubr.f32.gmra.mrb[0].mxu0 %v1352
      %v1701 = vpop.f32.mrb[0].mxu0
      %v1702 = vadd.f32 0.0, %v1701
      %v1703 = vpop.f32.mrb[0].mxu0
      %1704 = vmatprep.mubr.f32.mxu0 0.0
      %1705 = vmatmul.mubr.f32.gmra.mrb[0].mxu0 %v1355
      %v1706 = vpop.f32.mrb[0].mxu0
      %v1707 = vadd.f32 0.0, %v1706
      %v1708 = vpop.f32.mrb[0].mxu0
      %1709 = vmatprep.mubr.f32.mxu0 0.0
      %1710 = vmatmul.mubr.f32.gmra.mrb[0].mxu0 %v1358
      %v1711 = vpop.f32.mrb[0].mxu0
      %v1712 = vadd.f32 0.0, %v1711
      %v1713 = vpop.f32.mrb[0].mxu0
      %1714 = vmatprep.mubr.f32.mxu0 0.0
      %1715 = vmatmul.mubr.f32.gmra.mrb[0].mxu0 %v1361
      %v1716 = vpop.f32.mrb[0].mxu0
      %v1717 = vadd.f32 0.0, %v1716
      %v1718 = vpop.f32.mrb[0].mxu0
      %1719 = vmatprep.mubr.f32.mxu0 0.0
      %1720 = vmatmul.mubr.f32.gmra.mrb[0].mxu0 %v1364
      %v1721 = vpop.f32.mrb[0].mxu0
      %v1722 = vadd.f32 0.0, %v1721
      %v1723 = vpop.f32.mrb[0].mxu0
      %1724 = vmatprep.mubr.f32.mxu0 0.0
      %1725 = vmatmul.mubr.f32.gmra.mrb[0].mxu0 %v1367
      %v1726 = vpop.f32.mrb[0].mxu0
      %v1727 = vadd.f32 0.0, %v1726
      %v1728 = vpop.f32.mrb[0].mxu0
      %1729 = vmatprep.mubr.f32.mxu0 0.0
      %1730 = vmatmul.mubr.f32.gmra.mrb[0].mxu0 %v1370
      %v1731 = vpop.f32.mrb[0].mxu0
      %v1732 = vadd.f32 0.0, %v1731
      %v1733 = vpop.f32.mrb[0].mxu0
      %1734 = vmatprep.mubr.f32.mxu0 0.0
      %1735 = vmatmul.mubr.f32.gmra.mrb[0].mxu0 %v1373
      %v1736 = vpop.f32.mrb[0].mxu0
      %v1737 = vadd.f32 0.0, %v1736
      %v1738 = vpop.f32.mrb[0].mxu0
      %1739 = vmatprep.mubr.f32.mxu0 0.0
      %1740 = vmatmul.mubr.f32.gmra.mrb[0].mxu0 %v1376
      %v1741 = vpop.f32.mrb[0].mxu0
      %v1742 = vadd.f32 0.0, %v1741
      %v1743 = vpop.f32.mrb[0].mxu0
      %1744 = vmatprep.mubr.f32.mxu0 0.0
      %1745 = vmatmul.mubr.f32.gmra.mrb[0].mxu0 %v1379
      %v1746 = vpop.f32.mrb[0].mxu0
      %v1747 = vadd.f32 0.0, %v1746
      %v1748 = vpop.f32.mrb[0].mxu0
      %1749 = vmatprep.mubr.f32.mxu0 0.0
      %1750 = vmatmul.mubr.f32.gmra.mrb[0].mxu0 %v1382
      %v1751 = vpop.f32.mrb[0].mxu0
      %v1752 = vadd.f32 0.0, %v1751
      %v1753 = vpop.f32.mrb[0].mxu0
      %1754 = vmatprep.mubr.f32.mxu0 0.0
      %1755 = vmatmul.mubr.f32.gmra.mrb[0].mxu0 %v1385
      %v1756 = vpop.f32.mrb[0].mxu0
      %v1757 = vadd.f32 0.0, %v1756
      %v1758 = vpop.f32.mrb[0].mxu0
      %1759 = vmatprep.mubr.f32.mxu0 0.0
      %1760 = vmatmul.mubr.f32.gmra.mrb[0].mxu0 %v1388
      %v1761 = vpop.f32.mrb[0].mxu0
      %v1762 = vadd.f32 0.0, %v1761
      %v1763 = vpop.f32.mrb[0].mxu0
      %1764 = vmatprep.mubr.f32.mxu0 0.0
      %1765 = vmatmul.mubr.f32.gmra.mrb[0].mxu0 %v1391
      %v1766 = vpop.f32.mrb[0].mxu0
      %v1767 = vadd.f32 0.0, %v1766
      %v1768 = vpop.f32.mrb[0].mxu0
      %1769 = vmatprep.mubr.f32.mxu0 0.0
      %1770 = vmatmul.mubr.f32.gmra.mrb[0].mxu0 %v1394
      %v1771 = vpop.f32.mrb[0].mxu0
      %v1772 = vadd.f32 0.0, %v1771
      %v1773 = vpop.f32.mrb[0].mxu0
      %1774 = vmatprep.mubr.f32.mxu0 0.0
      %1775 = vmatmul.mubr.f32.gmra.mrb[0].mxu0 %v1397
      %v1776 = vpop.f32.mrb[0].mxu0
      %v1777 = vadd.f32 0.0, %v1776
      %v1778 = vpop.f32.mrb[0].mxu0
      %1779 = vmatprep.mubr.f32.mxu0 0.0
      %1780 = vmatmul.mubr.f32.gmra.mrb[0].mxu0 %v1400
      %v1781 = vpop.f32.mrb[0].mxu0
      %v1782 = vadd.f32 0.0, %v1781
      %v1783 = vpop.f32.mrb[0].mxu0
      %1784 = vmatprep.mubr.f32.mxu0 0.0
      %1785 = vmatmul.mubr.f32.gmra.mrb[0].mxu0 %v1403
      %v1786 = vpop.f32.mrb[0].mxu0
      %v1787 = vadd.f32 0.0, %v1786
      %v1788 = vpop.f32.mrb[0].mxu0
      %1789 = vdwg.mxu0
      %v1790 = vmax.f32 %v1472, 0.0
      %v1791 = vmax.f32 %v1477, 0.0
      %v1792 = vmax.f32 %v1482, 0.0
      %v1793 = vmax.f32 %v1487, 0.0
      %v1794 = vmax.f32 %v1492, 0.0
      %v1795 = vmax.f32 %v1497, 0.0
      %v1796 = vmax.f32 %v1502, 0.0
      %v1797 = vmax.f32 %v1507, 0.0
      %v1798 = vmax.f32 %v1512, 0.0
      %v1799 = vmax.f32 %v1517, 0.0
      %v1800 = vmax.f32 %v1522, 0.0
      %v1801 = vmax.f32 %v1527, 0.0
      %v1802 = vmax.f32 %v1532, 0.0
      %v1803 = vmax.f32 %v1537, 0.0
      %v1804 = vmax.f32 %v1542, 0.0
      %v1805 = vmax.f32 %v1547, 0.0
      %v1806 = vmax.f32 %v1552, 0.0
      %v1807 = vmax.f32 %v1557, 0.0
      %v1808 = vmax.f32 %v1562, 0.0
      %v1809 = vmax.f32 %v1567, 0.0
      %v1810 = vmax.f32 %v1572, 0.0
      %v1811 = vmax.f32 %v1577, 0.0
      %v1812 = vmax.f32 %v1582, 0.0
      %v1813 = vmax.f32 %v1587, 0.0
      %v1814 = vmax.f32 %v1592, 0.0
      %v1815 = vmax.f32 %v1597, 0.0
      %v1816 = vmax.f32 %v1602, 0.0
      %v1817 = vmax.f32 %v1607, 0.0
      %v1818 = vmax.f32 %v1612, 0.0
      %v1819 = vmax.f32 %v1617, 0.0
      %v1820 = vmax.f32 %v1622, 0.0
      %v1821 = vmax.f32 %v1627, 0.0
      %v1822 = vmax.f32 %v1632, 0.0
      %v1823 = vmax.f32 %v1637, 0.0
      %v1824 = vmax.f32 %v1642, 0.0
      %v1825 = vmax.f32 %v1647, 0.0
      %v1826 = vmax.f32 %v1652, 0.0
      %v1827 = vmax.f32 %v1657, 0.0
      %v1828 = vmax.f32 %v1662, 0.0
      %v1829 = vmax.f32 %v1667, 0.0
      %v1830 = vmax.f32 %v1672, 0.0
      %v1831 = vmax.f32 %v1677, 0.0
      %v1832 = vmax.f32 %v1682, 0.0
      %v1833 = vmax.f32 %v1687, 0.0
      %v1834 = vmax.f32 %v1692, 0.0
      %v1835 = vmax.f32 %v1697, 0.0
      %v1836 = vmax.f32 %v1702, 0.0
      %v1837 = vmax.f32 %v1707, 0.0
      %v1838 = vmax.f32 %v1712, 0.0
      %v1839 = vmax.f32 %v1717, 0.0
      %v1840 = vmax.f32 %v1722, 0.0
      %v1841 = vmax.f32 %v1727, 0.0
      %v1842 = vmax.f32 %v1732, 0.0
      %v1843 = vmax.f32 %v1737, 0.0
      %v1844 = vmax.f32 %v1742, 0.0
      %v1845 = vmax.f32 %v1747, 0.0
      %v1846 = vmax.f32 %v1752, 0.0
      %v1847 = vmax.f32 %v1757, 0.0
      %v1848 = vmax.f32 %v1762, 0.0
      %v1849 = vmax.f32 %v1767, 0.0
      %v1850 = vmax.f32 %v1772, 0.0
      %v1851 = vmax.f32 %v1777, 0.0
      %v1852 = vmax.f32 %v1782, 0.0
      %v1853 = vmax.f32 %v1787, 0.0
      %s1854 = scalar_lea.vmem %s3, 128
      %v1855 = vld [vmem:[%s1854] sm:$0xff]
      %v1856 = vld [vmem:[%s1854 + $0x8] sm:$0xff]
      %v1857 = vld [vmem:[%s1854 + $0x10] sm:$0xff]
      %v1858 = vld [vmem:[%s1854 + $0x18] sm:$0xff]
      %v1859 = vld [vmem:[%s1854 + $0x20] sm:$0xff]
      %v1860 = vld [vmem:[%s1854 + $0x28] sm:$0xff]
      %v1861 = vld [vmem:[%s1854 + $0x30] sm:$0xff]
      %v1862 = vld [vmem:[%s1854 + $0x38] sm:$0xff]
      %v1863 = vld [vmem:[%s1854 + $0x40] sm:$0xff]
      %v1864 = vld [vmem:[%s1854 + $0x48] sm:$0xff]
      %v1865 = vld [vmem:[%s1854 + $0x50] sm:$0xff]
      %v1866 = vld [vmem:[%s1854 + $0x58] sm:$0xff]
      %v1867 = vld [vmem:[%s1854 + $0x60] sm:$0xff]
      %v1868 = vld [vmem:[%s1854 + $0x68] sm:$0xff]
      %v1869 = vld [vmem:[%s1854 + $0x70] sm:$0xff]
      %v1870 = vld [vmem:[%s1854 + $0x78] sm:$0xff]
      %1871 = vmatprep.subr.mxu0 0.0
      %1872 = vmatpush1.msra.mxu0 %v1790
      %1873 = vmatprep.subr.mxu0 0.0
      %1874 = vmatpush1.msra.mxu0 %v1791
      %1875 = vmatprep.subr.mxu0 0.0
      %1876 = vmatpush1.msra.mxu0 %v1792
      %1877 = vmatprep.subr.mxu0 0.0
      %1878 = vmatpush1.msra.mxu0 %v1793
      %1879 = vmatprep.subr.mxu0 0.0
      %1880 = vmatpush1.msra.mxu0 %v1794
      %1881 = vmatprep.subr.mxu0 0.0
      %1882 = vmatpush1.msra.mxu0 %v1795
      %1883 = vmatprep.subr.mxu0 0.0
      %1884 = vmatpush1.msra.mxu0 %v1796
      %1885 = vmatprep.subr.mxu0 0.0
      %1886 = vmatpush1.msra.mxu0 %v1797
      %1887 = vmatprep.subr.mxu0 0.0
      %1888 = vmatpush1.msra.mxu0 %v1798
      %1889 = vmatprep.subr.mxu0 0.0
      %1890 = vmatpush1.msra.mxu0 %v1799
      %1891 = vmatprep.subr.mxu0 0.0
      %1892 = vmatpush1.msra.mxu0 %v1800
      %1893 = vmatprep.subr.mxu0 0.0
      %1894 = vmatpush1.msra.mxu0 %v1801
      %1895 = vmatprep.subr.mxu0 0.0
      %1896 = vmatpush1.msra.mxu0 %v1802
      %1897 = vmatprep.subr.mxu0 0.0
      %1898 = vmatpush1.msra.mxu0 %v1803
      %1899 = vmatprep.subr.mxu0 0.0
      %1900 = vmatpush1.msra.mxu0 %v1804
      %1901 = vmatprep.subr.mxu0 0.0
      %1902 = vmatpush1.msra.mxu0 %v1805
      %1903 = vmatprep.subr.mxu0 0.0
      %1904 = vmatpush1.msra.mxu0 %v1806
      %1905 = vmatprep.subr.mxu0 0.0
      %1906 = vmatpush1.msra.mxu0 %v1807
      %1907 = vmatprep.subr.mxu0 0.0
      %1908 = vmatpush1.msra.mxu0 %v1808
      %1909 = vmatprep.subr.mxu0 0.0
      %1910 = vmatpush1.msra.mxu0 %v1809
      %1911 = vmatprep.subr.mxu0 0.0
      %1912 = vmatpush1.msra.mxu0 %v1810
      %1913 = vmatprep.subr.mxu0 0.0
      %1914 = vmatpush1.msra.mxu0 %v1811
      %1915 = vmatprep.subr.mxu0 0.0
      %1916 = vmatpush1.msra.mxu0 %v1812
      %1917 = vmatprep.subr.mxu0 0.0
      %1918 = vmatpush1.msra.mxu0 %v1813
      %1919 = vmatprep.subr.mxu0 0.0
      %1920 = vmatpush1.msra.mxu0 %v1814
      %1921 = vmatprep.subr.mxu0 0.0
      %1922 = vmatpush1.msra.mxu0 %v1815
      %1923 = vmatprep.subr.mxu0 0.0
      %1924 = vmatpush1.msra.mxu0 %v1816
      %1925 = vmatprep.subr.mxu0 0.0
      %1926 = vmatpush1.msra.mxu0 %v1817
      %1927 = vmatprep.subr.mxu0 0.0
      %1928 = vmatpush1.msra.mxu0 %v1818
      %1929 = vmatprep.subr.mxu0 0.0
      %1930 = vmatpush1.msra.mxu0 %v1819
      %1931 = vmatprep.subr.mxu0 0.0
      %1932 = vmatpush1.msra.mxu0 %v1820
      %1933 = vmatprep.subr.mxu0 0.0
      %1934 = vmatpush1.msra.mxu0 %v1821
      %1935 = vmatprep.mubr.f32.mxu0 %v1856
      %1936 = vmatmul.mubr.f32.gmra.mrb[0].mxu0 %v1855
      %v1937 = vpop.f32.mrb[0].mxu0
      %v1938 = vadd.f32 0.0, %v1937
      %v1939 = vpop.f32.mrb[0].mxu0
      %1940 = vmatprep.mubr.f32.mxu0 %v1860
      %1941 = vmatmul.mubr.f32.gmra.mrb[0].mxu0 %v1859
      %v1942 = vpop.f32.mrb[0].mxu0
      %v1943 = vadd.f32 0.0, %v1942
      %v1944 = vpop.f32.mrb[0].mxu0
      %1945 = vmatprep.mubr.f32.mxu0 %v1864
      %1946 = vmatmul.mubr.f32.gmra.mrb[0].mxu0 %v1863
      %v1947 = vpop.f32.mrb[0].mxu0
      %v1948 = vadd.f32 0.0, %v1947
      %v1949 = vpop.f32.mrb[0].mxu0
      %1950 = vmatprep.mubr.f32.mxu0 %v1868
      %1951 = vmatmul.mubr.f32.gmra.mrb[0].mxu0 %v1867
      %v1952 = vpop.f32.mrb[0].mxu0
      %v1953 = vadd.f32 0.0, %v1952
      %v1954 = vpop.f32.mrb[0].mxu0
      %1955 = vdwg.mxu0
      %1956 = vmatprep.subr.mxu0 0.0
      %1957 = vmatpush1.msra.mxu0 %v1822
      %1958 = vmatprep.subr.mxu0 0.0
      %1959 = vmatpush1.msra.mxu0 %v1823
      %1960 = vmatprep.subr.mxu0 0.0
      %1961 = vmatpush1.msra.mxu0 %v1824
      %1962 = vmatprep.subr.mxu0 0.0
      %1963 = vmatpush1.msra.mxu0 %v1825
      %1964 = vmatprep.subr.mxu0 0.0
      %1965 = vmatpush1.msra.mxu0 %v1826
      %1966 = vmatprep.subr.mxu0 0.0
      %1967 = vmatpush1.msra.mxu0 %v1827
      %1968 = vmatprep.subr.mxu0 0.0
      %1969 = vmatpush1.msra.mxu0 %v1828
      %1970 = vmatprep.subr.mxu0 0.0
      %1971 = vmatpush1.msra.mxu0 %v1829
      %1972 = vmatprep.subr.mxu0 0.0
      %1973 = vmatpush1.msra.mxu0 %v1830
      %1974 = vmatprep.subr.mxu0 0.0
      %1975 = vmatpush1.msra.mxu0 %v1831
      %1976 = vmatprep.subr.mxu0 0.0
      %1977 = vmatpush1.msra.mxu0 %v1832
      %1978 = vmatprep.subr.mxu0 0.0
      %1979 = vmatpush1.msra.mxu0 %v1833
      %1980 = vmatprep.subr.mxu0 0.0
      %1981 = vmatpush1.msra.mxu0 %v1834
      %1982 = vmatprep.subr.mxu0 0.0
      %1983 = vmatpush1.msra.mxu0 %v1835
      %1984 = vmatprep.subr.mxu0 0.0
      %1985 = vmatpush1.msra.mxu0 %v1836
      %1986 = vmatprep.subr.mxu0 0.0
      %1987 = vmatpush1.msra.mxu0 %v1837
      %1988 = vmatprep.subr.mxu0 0.0
      %1989 = vmatpush1.msra.mxu0 %v1838
      %1990 = vmatprep.subr.mxu0 0.0
      %1991 = vmatpush1.msra.mxu0 %v1839
      %1992 = vmatprep.subr.mxu0 0.0
      %1993 = vmatpush1.msra.mxu0 %v1840
      %1994 = vmatprep.subr.mxu0 0.0
      %1995 = vmatpush1.msra.mxu0 %v1841
      %1996 = vmatprep.subr.mxu0 0.0
      %1997 = vmatpush1.msra.mxu0 %v1842
      %1998 = vmatprep.subr.mxu0 0.0
      %1999 = vmatpush1.msra.mxu0 %v1843
      %2000 = vmatprep.subr.mxu0 0.0
      %2001 = vmatpush1.msra.mxu0 %v1844
      %2002 = vmatprep.subr.mxu0 0.0
      %2003 = vmatpush1.msra.mxu0 %v1845
      %2004 = vmatprep.subr.mxu0 0.0
      %2005 = vmatpush1.msra.mxu0 %v1846
      %2006 = vmatprep.subr.mxu0 0.0
      %2007 = vmatpush1.msra.mxu0 %v1847
      %2008 = vmatprep.subr.mxu0 0.0
      %2009 = vmatpush1.msra.mxu0 %v1848
      %2010 = vmatprep.subr.mxu0 0.0
      %2011 = vmatpush1.msra.mxu0 %v1849
      %2012 = vmatprep.subr.mxu0 0.0
      %2013 = vmatpush1.msra.mxu0 %v1850
      %2014 = vmatprep.subr.mxu0 0.0
      %2015 = vmatpush1.msra.mxu0 %v1851
      %2016 = vmatprep.subr.mxu0 0.0
      %2017 = vmatpush1.msra.mxu0 %v1852
      %2018 = vmatprep.subr.mxu0 0.0
      %2019 = vmatpush1.msra.mxu0 %v1853
      %2020 = vmatprep.mubr.f32.mxu0 %v1858
      %2021 = vmatmul.mubr.f32.gmra.mrb[0].mxu0 %v1857
      %v2022 = vpop.f32.mrb[0].mxu0
      %v2023 = vadd.f32 %v1938, %v2022
      %v2024 = vpop.f32.mrb[0].mxu0
      %2025 = vmatprep.mubr.f32.mxu0 %v1862
      %2026 = vmatmul.mubr.f32.gmra.mrb[0].mxu0 %v1861
      %v2027 = vpop.f32.mrb[0].mxu0
      %v2028 = vadd.f32 %v1943, %v2027
      %v2029 = vpop.f32.mrb[0].mxu0
      %2030 = vmatprep.mubr.f32.mxu0 %v1866
      %2031 = vmatmul.mubr.f32.gmra.mrb[0].mxu0 %v1865
      %v2032 = vpop.f32.mrb[0].mxu0
      %v2033 = vadd.f32 %v1948, %v2032
      %v2034 = vpop.f32.mrb[0].mxu0
      %2035 = vmatprep.mubr.f32.mxu0 %v1870
      %2036 = vmatmul.mubr.f32.gmra.mrb[0].mxu0 %v1869
      %v2037 = vpop.f32.mrb[0].mxu0
      %v2038 = vadd.f32 %v1953, %v2037
      %v2039 = vpop.f32.mrb[0].mxu0
      %2040 = vdwg.mxu0
      %2041 = vmatprep.subr.mxu0 0.0
      %2042 = vmatpush1.msra.mxu0 %v980
      %2043 = vmatprep.subr.mxu0 0.0
      %2044 = vmatpush1.msra.mxu0 %v981
      %2045 = vmatprep.subr.mxu0 0.0
      %2046 = vmatpush1.msra.mxu0 %v982
      %2047 = vmatprep.subr.mxu0 0.0
      %2048 = vmatpush1.msra.mxu0 %v983
      %2049 = vmatprep.subr.mxu0 0.0
      %2050 = vmatpush1.msra.mxu0 %v984
      %2051 = vmatprep.subr.mxu0 0.0
      %2052 = vmatpush1.msra.mxu0 %v985
      %2053 = vmatprep.subr.mxu0 0.0
      %2054 = vmatpush1.msra.mxu0 %v986
      %2055 = vmatprep.subr.mxu0 0.0
      %2056 = vmatpush1.msra.mxu0 %v987
      %2057 = vmatprep.subr.mxu0 0.0
      %2058 = vmatpush1.msra.mxu0 %v988
      %2059 = vmatprep.subr.mxu0 0.0
      %2060 = vmatpush1.msra.mxu0 %v989
      %2061 = vmatprep.subr.mxu0 0.0
      %2062 = vmatpush1.msra.mxu0 %v990
      %2063 = vmatprep.subr.mxu0 0.0
      %2064 = vmatpush1.msra.mxu0 %v991
      %2065 = vmatprep.subr.mxu0 0.0
      %2066 = vmatpush1.msra.mxu0 %v992
      %2067 = vmatprep.subr.mxu0 0.0
      %2068 = vmatpush1.msra.mxu0 %v993
      %2069 = vmatprep.subr.mxu0 0.0
      %2070 = vmatpush1.msra.mxu0 %v994
      %2071 = vmatprep.subr.mxu0 0.0
      %2072 = vmatpush1.msra.mxu0 %v995
      %2073 = vmatprep.subr.mxu0 0.0
      %2074 = vmatpush1.msra.mxu0 %v996
      %2075 = vmatprep.subr.mxu0 0.0
      %2076 = vmatpush1.msra.mxu0 %v997
      %2077 = vmatprep.subr.mxu0 0.0
      %2078 = vmatpush1.msra.mxu0 %v998
      %2079 = vmatprep.subr.mxu0 0.0
      %2080 = vmatpush1.msra.mxu0 %v999
      %2081 = vmatprep.subr.mxu0 0.0
      %2082 = vmatpush1.msra.mxu0 %v1000
      %2083 = vmatprep.subr.mxu0 0.0
      %2084 = vmatpush1.msra.mxu0 %v1001
      %2085 = vmatprep.subr.mxu0 0.0
      %2086 = vmatpush1.msra.mxu0 %v1002
      %2087 = vmatprep.subr.mxu0 0.0
      %2088 = vmatpush1.msra.mxu0 %v1003
      %2089 = vmatprep.subr.mxu0 0.0
      %2090 = vmatpush1.msra.mxu0 %v1004
      %2091 = vmatprep.subr.mxu0 0.0
      %2092 = vmatpush1.msra.mxu0 %v1005
      %2093 = vmatprep.subr.mxu0 0.0
      %2094 = vmatpush1.msra.mxu0 %v1006
      %2095 = vmatprep.subr.mxu0 0.0
      %2096 = vmatpush1.msra.mxu0 %v1007
      %2097 = vmatprep.subr.mxu0 0.0
      %2098 = vmatpush1.msra.mxu0 %v1008
      %2099 = vmatprep.subr.mxu0 0.0
      %2100 = vmatpush1.msra.mxu0 %v1009
      %2101 = vmatprep.subr.mxu0 0.0
      %2102 = vmatpush1.msra.mxu0 %v1010
      %2103 = vmatprep.subr.mxu0 0.0
      %2104 = vmatpush1.msra.mxu0 %v1011
      %2105 = vmatprep.mubr.f32.mxu0 %v1045
      %2106 = vmatmul.mubr.f32.gmra.mrb[0].mxu0 %v1044
      %v2107 = vpop.f32.mrb[0].mxu0
      %v2108 = vadd.f32 %v2023, %v2107
      %v2109 = vpop.f32.mrb[0].mxu0
      %2110 = vmatprep.mubr.f32.mxu0 %v1049
      %2111 = vmatmul.mubr.f32.gmra.mrb[0].mxu0 %v1048
      %v2112 = vpop.f32.mrb[0].mxu0
      %v2113 = vadd.f32 %v2028, %v2112
      %v2114 = vpop.f32.mrb[0].mxu0
      %2115 = vmatprep.mubr.f32.mxu0 %v1053
      %2116 = vmatmul.mubr.f32.gmra.mrb[0].mxu0 %v1052
      %v2117 = vpop.f32.mrb[0].mxu0
      %v2118 = vadd.f32 %v2033, %v2117
      %v2119 = vpop.f32.mrb[0].mxu0
      %2120 = vmatprep.mubr.f32.mxu0 %v1057
      %2121 = vmatmul.mubr.f32.gmra.mrb[0].mxu0 %v1056
      %v2122 = vpop.f32.mrb[0].mxu0
      %v2123 = vadd.f32 %v2038, %v2122
      %v2124 = vpop.f32.mrb[0].mxu0
      %2125 = vdwg.mxu0
      %2126 = vmatprep.subr.mxu0 0.0
      %2127 = vmatpush1.msra.mxu0 %v1012
      %2128 = vmatprep.subr.mxu0 0.0
      %2129 = vmatpush1.msra.mxu0 %v1013
      %2130 = vmatprep.subr.mxu0 0.0
      %2131 = vmatpush1.msra.mxu0 %v1014
      %2132 = vmatprep.subr.mxu0 0.0
      %2133 = vmatpush1.msra.mxu0 %v1015
      %2134 = vmatprep.subr.mxu0 0.0
      %2135 = vmatpush1.msra.mxu0 %v1016
      %2136 = vmatprep.subr.mxu0 0.0
      %2137 = vmatpush1.msra.mxu0 %v1017
      %2138 = vmatprep.subr.mxu0 0.0
      %2139 = vmatpush1.msra.mxu0 %v1018
      %2140 = vmatprep.subr.mxu0 0.0
      %2141 = vmatpush1.msra.mxu0 %v1019
      %2142 = vmatprep.subr.mxu0 0.0
      %2143 = vmatpush1.msra.mxu0 %v1020
      %2144 = vmatprep.subr.mxu0 0.0
      %2145 = vmatpush1.msra.mxu0 %v1021
      %2146 = vmatprep.subr.mxu0 0.0
      %2147 = vmatpush1.msra.mxu0 %v1022
      %2148 = vmatprep.subr.mxu0 0.0
      %2149 = vmatpush1.msra.mxu0 %v1023
      %2150 = vmatprep.subr.mxu0 0.0
      %2151 = vmatpush1.msra.mxu0 %v1024
      %2152 = vmatprep.subr.mxu0 0.0
      %2153 = vmatpush1.msra.mxu0 %v1025
      %2154 = vmatprep.subr.mxu0 0.0
      %2155 = vmatpush1.msra.mxu0 %v1026
      %2156 = vmatprep.subr.mxu0 0.0
      %2157 = vmatpush1.msra.mxu0 %v1027
      %2158 = vmatprep.subr.mxu0 0.0
      %2159 = vmatpush1.msra.mxu0 %v1028
      %2160 = vmatprep.subr.mxu0 0.0
      %2161 = vmatpush1.msra.mxu0 %v1029
      %2162 = vmatprep.subr.mxu0 0.0
      %2163 = vmatpush1.msra.mxu0 %v1030
      %2164 = vmatprep.subr.mxu0 0.0
      %2165 = vmatpush1.msra.mxu0 %v1031
      %2166 = vmatprep.subr.mxu0 0.0
      %2167 = vmatpush1.msra.mxu0 %v1032
      %2168 = vmatprep.subr.mxu0 0.0
      %2169 = vmatpush1.msra.mxu0 %v1033
      %2170 = vmatprep.subr.mxu0 0.0
      %2171 = vmatpush1.msra.mxu0 %v1034
      %2172 = vmatprep.subr.mxu0 0.0
      %2173 = vmatpush1.msra.mxu0 %v1035
      %2174 = vmatprep.subr.mxu0 0.0
      %2175 = vmatpush1.msra.mxu0 %v1036
      %2176 = vmatprep.subr.mxu0 0.0
      %2177 = vmatpush1.msra.mxu0 %v1037
      %2178 = vmatprep.subr.mxu0 0.0
      %2179 = vmatpush1.msra.mxu0 %v1038
      %2180 = vmatprep.subr.mxu0 0.0
      %2181 = vmatpush1.msra.mxu0 %v1039
      %2182 = vmatprep.subr.mxu0 0.0
      %2183 = vmatpush1.msra.mxu0 %v1040
      %2184 = vmatprep.subr.mxu0 0.0
      %2185 = vmatpush1.msra.mxu0 %v1041
      %2186 = vmatprep.subr.mxu0 0.0
      %2187 = vmatpush1.msra.mxu0 %v1042
      %2188 = vmatprep.subr.mxu0 0.0
      %2189 = vmatpush1.msra.mxu0 %v1043
      %2190 = vmatprep.mubr.f32.mxu0 %v1047
      %2191 = vmatmul.mubr.f32.gmra.mrb[0].mxu0 %v1046
      %v2192 = vpop.f32.mrb[0].mxu0
      %v2193 = vadd.f32 %v2108, %v2192
      %v2194 = vpop.f32.mrb[0].mxu0
      %2195 = vmatprep.mubr.f32.mxu0 %v1051
      %2196 = vmatmul.mubr.f32.gmra.mrb[0].mxu0 %v1050
      %v2197 = vpop.f32.mrb[0].mxu0
      %v2198 = vadd.f32 %v2113, %v2197
      %v2199 = vpop.f32.mrb[0].mxu0
      %2200 = vmatprep.mubr.f32.mxu0 %v1055
      %2201 = vmatmul.mubr.f32.gmra.mrb[0].mxu0 %v1054
      %v2202 = vpop.f32.mrb[0].mxu0
      %v2203 = vadd.f32 %v2118, %v2202
      %v2204 = vpop.f32.mrb[0].mxu0
      %2205 = vmatprep.mubr.f32.mxu0 %v1059
      %2206 = vmatmul.mubr.f32.gmra.mrb[0].mxu0 %v1058
      %v2207 = vpop.f32.mrb[0].mxu0
      %v2208 = vadd.f32 %v2123, %v2207
      %v2209 = vpop.f32.mrb[0].mxu0
      %2210 = vdwg.mxu0
      %s2211 = scalar_lea.vmem %s1, 32
      %v2212 = vld [vmem:[%s2211] sm:$0xff]
      %v2213 = vld [vmem:[%s2211 + $0x8] sm:$0xff]
      %2214 = vmatprep.subr.mxu0 0.0
      %2215 = vmatpush1.msra.mxu0 %v2212
      %2216 = vmatprep.subr.mxu0 0.0
      %2217 = vmatpush1.msra.mxu0 %v2213
      %2218 = vmatprep.subr.mxu0 0.0
      %2219 = vmatpush1.msra.mxu0 0.0
      %2220 = vmatprep.subr.mxu0 0.0
      %2221 = vmatpush1.msra.mxu0 0.0
      %2222 = vmatprep.subr.mxu0 0.0
      %2223 = vmatpush1.msra.mxu0 0.0
      %2224 = vmatprep.subr.mxu0 0.0
      %2225 = vmatpush1.msra.mxu0 0.0
      %2226 = vmatprep.subr.mxu0 0.0
      %2227 = vmatpush1.msra.mxu0 0.0
      %2228 = vmatprep.subr.mxu0 0.0
      %2229 = vmatpush1.msra.mxu0 0.0
      %2230 = vmatprep.subr.mxu0 0.0
      %2231 = vmatpush1.msra.mxu0 0.0
      %2232 = vmatprep.subr.mxu0 0.0
      %2233 = vmatpush1.msra.mxu0 0.0
      %2234 = vmatprep.subr.mxu0 0.0
      %2235 = vmatpush1.msra.mxu0 0.0
      %2236 = vmatprep.subr.mxu0 0.0
      %2237 = vmatpush1.msra.mxu0 0.0
      %2238 = vmatprep.subr.mxu0 0.0
      %2239 = vmatpush1.msra.mxu0 0.0
      %2240 = vmatprep.subr.mxu0 0.0
      %2241 = vmatpush1.msra.mxu0 0.0
      %2242 = vmatprep.subr.mxu0 0.0
      %2243 = vmatpush1.msra.mxu0 0.0
      %2244 = vmatprep.subr.mxu0 0.0
      %2245 = vmatpush1.msra.mxu0 0.0
      %2246 = vmatprep.subr.mxu0 0.0
      %2247 = vmatpush1.msra.mxu0 0.0
      %2248 = vmatprep.subr.mxu0 0.0
      %2249 = vmatpush1.msra.mxu0 0.0
      %2250 = vmatprep.subr.mxu0 0.0
      %2251 = vmatpush1.msra.mxu0 0.0
      %2252 = vmatprep.subr.mxu0 0.0
      %2253 = vmatpush1.msra.mxu0 0.0
      %2254 = vmatprep.subr.mxu0 0.0
      %2255 = vmatpush1.msra.mxu0 0.0
      %2256 = vmatprep.subr.mxu0 0.0
      %2257 = vmatpush1.msra.mxu0 0.0
      %2258 = vmatprep.subr.mxu0 0.0
      %2259 = vmatpush1.msra.mxu0 0.0
      %2260 = vmatprep.subr.mxu0 0.0
      %2261 = vmatpush1.msra.mxu0 0.0
      %2262 = vmatprep.subr.mxu0 0.0
      %2263 = vmatpush1.msra.mxu0 0.0
      %2264 = vmatprep.subr.mxu0 0.0
      %2265 = vmatpush1.msra.mxu0 0.0
      %2266 = vmatprep.subr.mxu0 0.0
      %2267 = vmatpush1.msra.mxu0 0.0
      %2268 = vmatprep.subr.mxu0 0.0
      %2269 = vmatpush1.msra.mxu0 0.0
      %2270 = vmatprep.subr.mxu0 0.0
      %2271 = vmatpush1.msra.mxu0 0.0
      %2272 = vmatprep.subr.mxu0 0.0
      %2273 = vmatpush1.msra.mxu0 0.0
      %2274 = vmatprep.subr.mxu0 0.0
      %2275 = vmatpush1.msra.mxu0 0.0
      %2276 = vmatprep.subr.mxu0 0.0
      %2277 = vmatpush1.msra.mxu0 0.0
      %2278 = vmatprep.mubr.f32.mxu0 0.0
      %2279 = vmatmul.mubr.f32.gmra.mrb[0].mxu0 %v242
      %v2280 = vpop.f32.mrb[0].mxu0
      %v2281 = vadd.f32 0.0, %v2280
      %v2282 = vpop.f32.mrb[0].mxu0
      %2283 = vmatprep.mubr.f32.mxu0 0.0
      %2284 = vmatmul.mubr.f32.gmra.mrb[0].mxu0 %v245
      %v2285 = vpop.f32.mrb[0].mxu0
      %v2286 = vadd.f32 0.0, %v2285
      %v2287 = vpop.f32.mrb[0].mxu0
      %2288 = vmatprep.mubr.f32.mxu0 0.0
      %2289 = vmatmul.mubr.f32.gmra.mrb[0].mxu0 %v248
      %v2290 = vpop.f32.mrb[0].mxu0
      %v2291 = vadd.f32 0.0, %v2290
      %v2292 = vpop.f32.mrb[0].mxu0
      %2293 = vmatprep.mubr.f32.mxu0 0.0
      %2294 = vmatmul.mubr.f32.gmra.mrb[0].mxu0 %v251
      %v2295 = vpop.f32.mrb[0].mxu0
      %v2296 = vadd.f32 0.0, %v2295
      %v2297 = vpop.f32.mrb[0].mxu0
      %2298 = vdwg.mxu0
      %s2299 = scalar_lea.vmem %s2, 1024
      %v2300 = vld [vmem:[%s2299] sm:$0xff]
      %v2301 = vld [vmem:[%s2299 + $0x8] sm:$0xff]
      %v2302 = vld [vmem:[%s2299 + $0x10] sm:$0xff]
      %v2303 = vld [vmem:[%s2299 + $0x18] sm:$0xff]
      %v2304 = vld [vmem:[%s2299 + $0x20] sm:$0xff]
      %v2305 = vld [vmem:[%s2299 + $0x28] sm:$0xff]
      %v2306 = vld [vmem:[%s2299 + $0x30] sm:$0xff]
      %v2307 = vld [vmem:[%s2299 + $0x38] sm:$0xff]
      %v2308 = vld [vmem:[%s2299 + $0x40] sm:$0xff]
      %v2309 = vld [vmem:[%s2299 + $0x48] sm:$0xff]
      %v2310 = vld [vmem:[%s2299 + $0x50] sm:$0xff]
      %v2311 = vld [vmem:[%s2299 + $0x58] sm:$0xff]
      %v2312 = vld [vmem:[%s2299 + $0x60] sm:$0xff]
      %v2313 = vld [vmem:[%s2299 + $0x68] sm:$0xff]
      %v2314 = vld [vmem:[%s2299 + $0x70] sm:$0xff]
      %v2315 = vld [vmem:[%s2299 + $0x78] sm:$0xff]
      %v2316 = vld [vmem:[%s2299 + $0x80] sm:$0xff]
      %v2317 = vld [vmem:[%s2299 + $0x88] sm:$0xff]
      %v2318 = vld [vmem:[%s2299 + $0x90] sm:$0xff]
      %v2319 = vld [vmem:[%s2299 + $0x98] sm:$0xff]
      %v2320 = vld [vmem:[%s2299 + $0xa0] sm:$0xff]
      %v2321 = vld [vmem:[%s2299 + $0xa8] sm:$0xff]
      %v2322 = vld [vmem:[%s2299 + $0xb0] sm:$0xff]
      %v2323 = vld [vmem:[%s2299 + $0xb8] sm:$0xff]
      %v2324 = vld [vmem:[%s2299 + $0xc0] sm:$0xff]
      %v2325 = vld [vmem:[%s2299 + $0xc8] sm:$0xff]
      %v2326 = vld [vmem:[%s2299 + $0xd0] sm:$0xff]
      %v2327 = vld [vmem:[%s2299 + $0xd8] sm:$0xff]
      %v2328 = vld [vmem:[%s2299 + $0xe0] sm:$0xff]
      %v2329 = vld [vmem:[%s2299 + $0xe8] sm:$0xff]
      %v2330 = vld [vmem:[%s2299 + $0xf0] sm:$0xff]
      %v2331 = vld [vmem:[%s2299 + $0xf8] sm:$0xff]
      %v2332 = vld [vmem:[%s2299 + $0x100] sm:$0xff]
      %v2333 = vld [vmem:[%s2299 + $0x108] sm:$0xff]
      %v2334 = vld [vmem:[%s2299 + $0x110] sm:$0xff]
      %v2335 = vld [vmem:[%s2299 + $0x118] sm:$0xff]
      %v2336 = vld [vmem:[%s2299 + $0x120] sm:$0xff]
      %v2337 = vld [vmem:[%s2299 + $0x128] sm:$0xff]
      %v2338 = vld [vmem:[%s2299 + $0x130] sm:$0xff]
      %v2339 = vld [vmem:[%s2299 + $0x138] sm:$0xff]
      %v2340 = vld [vmem:[%s2299 + $0x140] sm:$0xff]
      %v2341 = vld [vmem:[%s2299 + $0x148] sm:$0xff]
      %v2342 = vld [vmem:[%s2299 + $0x150] sm:$0xff]
      %v2343 = vld [vmem:[%s2299 + $0x158] sm:$0xff]
      %v2344 = vld [vmem:[%s2299 + $0x160] sm:$0xff]
      %v2345 = vld [vmem:[%s2299 + $0x168] sm:$0xff]
      %v2346 = vld [vmem:[%s2299 + $0x170] sm:$0xff]
      %v2347 = vld [vmem:[%s2299 + $0x178] sm:$0xff]
      %v2348 = vld [vmem:[%s2299 + $0x180] sm:$0xff]
      %v2349 = vld [vmem:[%s2299 + $0x188] sm:$0xff]
      %v2350 = vld [vmem:[%s2299 + $0x190] sm:$0xff]
      %v2351 = vld [vmem:[%s2299 + $0x198] sm:$0xff]
      %v2352 = vld [vmem:[%s2299 + $0x1a0] sm:$0xff]
      %v2353 = vld [vmem:[%s2299 + $0x1a8] sm:$0xff]
      %v2354 = vld [vmem:[%s2299 + $0x1b0] sm:$0xff]
      %v2355 = vld [vmem:[%s2299 + $0x1b8] sm:$0xff]
      %v2356 = vld [vmem:[%s2299 + $0x1c0] sm:$0xff]
      %v2357 = vld [vmem:[%s2299 + $0x1c8] sm:$0xff]
      %v2358 = vld [vmem:[%s2299 + $0x1d0] sm:$0xff]
      %v2359 = vld [vmem:[%s2299 + $0x1d8] sm:$0xff]
      %v2360 = vld [vmem:[%s2299 + $0x1e0] sm:$0xff]
      %v2361 = vld [vmem:[%s2299 + $0x1e8] sm:$0xff]
      %v2362 = vld [vmem:[%s2299 + $0x1f0] sm:$0xff]
      %v2363 = vld [vmem:[%s2299 + $0x1f8] sm:$0xff]
      %v2365 = vsel %vm402, %v2300, 0
      %v2368 = vsel %vm402, %v2301, 0
      %v2371 = vsel %vm402, %v2302, 0
      %v2374 = vsel %vm402, %v2303, 0
      %v2377 = vsel %vm402, %v2304, 0
      %v2380 = vsel %vm402, %v2305, 0
      %v2383 = vsel %vm402, %v2306, 0
      %v2386 = vsel %vm402, %v2307, 0
      %v2389 = vsel %vm402, %v2308, 0
      %v2392 = vsel %vm402, %v2309, 0
      %v2395 = vsel %vm402, %v2310, 0
      %v2398 = vsel %vm402, %v2311, 0
      %v2401 = vsel %vm402, %v2312, 0
      %v2404 = vsel %vm402, %v2313, 0
      %v2407 = vsel %vm402, %v2314, 0
      %v2410 = vsel %vm402, %v2315, 0
      %v2413 = vsel %vm402, %v2316, 0
      %v2416 = vsel %vm402, %v2317, 0
      %v2419 = vsel %vm402, %v2318, 0
      %v2422 = vsel %vm402, %v2319, 0
      %v2425 = vsel %vm402, %v2320, 0
      %v2428 = vsel %vm402, %v2321, 0
      %v2431 = vsel %vm402, %v2322, 0
      %v2434 = vsel %vm402, %v2323, 0
      %v2437 = vsel %vm402, %v2324, 0
      %v2440 = vsel %vm402, %v2325, 0
      %v2443 = vsel %vm402, %v2326, 0
      %v2446 = vsel %vm402, %v2327, 0
      %v2449 = vsel %vm402, %v2328, 0
      %v2452 = vsel %vm402, %v2329, 0
      %v2455 = vsel %vm402, %v2330, 0
      %v2458 = vsel %vm402, %v2331, 0
      %v2461 = vsel %vm402, %v2332, 0
      %v2464 = vsel %vm402, %v2333, 0
      %v2467 = vsel %vm402, %v2334, 0
      %v2470 = vsel %vm402, %v2335, 0
      %v2473 = vsel %vm402, %v2336, 0
      %v2476 = vsel %vm402, %v2337, 0
      %v2479 = vsel %vm402, %v2338, 0
      %v2482 = vsel %vm402, %v2339, 0
      %v2485 = vsel %vm402, %v2340, 0
      %v2488 = vsel %vm402, %v2341, 0
      %v2491 = vsel %vm402, %v2342, 0
      %v2494 = vsel %vm402, %v2343, 0
      %v2497 = vsel %vm402, %v2344, 0
      %v2500 = vsel %vm402, %v2345, 0
      %v2503 = vsel %vm402, %v2346, 0
      %v2506 = vsel %vm402, %v2347, 0
      %v2509 = vsel %vm402, %v2348, 0
      %v2512 = vsel %vm402, %v2349, 0
      %v2515 = vsel %vm402, %v2350, 0
      %v2518 = vsel %vm402, %v2351, 0
      %v2521 = vsel %vm402, %v2352, 0
      %v2524 = vsel %vm402, %v2353, 0
      %v2527 = vsel %vm402, %v2354, 0
      %v2530 = vsel %vm402, %v2355, 0
      %v2533 = vsel %vm402, %v2356, 0
      %v2536 = vsel %vm402, %v2357, 0
      %v2539 = vsel %vm402, %v2358, 0
      %v2542 = vsel %vm402, %v2359, 0
      %v2545 = vsel %vm402, %v2360, 0
      %v2548 = vsel %vm402, %v2361, 0
      %v2551 = vsel %vm402, %v2362, 0
      %v2554 = vsel %vm402, %v2363, 0
      %2556 = vmatprep.subr.mxu0 0.0
      %2557 = vmatpush1.msra.mxu0 %v2281
      %2558 = vmatprep.subr.mxu0 0.0
      %2559 = vmatpush1.msra.mxu0 %v2286
      %2560 = vmatprep.subr.mxu0 0.0
      %2561 = vmatpush1.msra.mxu0 %v2291
      %2562 = vmatprep.subr.mxu0 0.0
      %2563 = vmatpush1.msra.mxu0 %v2296
      %2564 = vmatprep.subr.mxu0 0.0
      %2565 = vmatpush1.msra.mxu0 0.0
      %2566 = vmatprep.subr.mxu0 0.0
      %2567 = vmatpush1.msra.mxu0 0.0
      %2568 = vmatprep.subr.mxu0 0.0
      %2569 = vmatpush1.msra.mxu0 0.0
      %2570 = vmatprep.subr.mxu0 0.0
      %2571 = vmatpush1.msra.mxu0 0.0
      %2572 = vmatprep.subr.mxu0 0.0
      %2573 = vmatpush1.msra.mxu0 0.0
      %2574 = vmatprep.subr.mxu0 0.0
      %2575 = vmatpush1.msra.mxu0 0.0
      %2576 = vmatprep.subr.mxu0 0.0
      %2577 = vmatpush1.msra.mxu0 0.0
      %2578 = vmatprep.subr.mxu0 0.0
      %2579 = vmatpush1.msra.mxu0 0.0
      %2580 = vmatprep.subr.mxu0 0.0
      %2581 = vmatpush1.msra.mxu0 0.0
      %2582 = vmatprep.subr.mxu0 0.0
      %2583 = vmatpush1.msra.mxu0 0.0
      %2584 = vmatprep.subr.mxu0 0.0
      %2585 = vmatpush1.msra.mxu0 0.0
      %2586 = vmatprep.subr.mxu0 0.0
      %2587 = vmatpush1.msra.mxu0 0.0
      %2588 = vmatprep.subr.mxu0 0.0
      %2589 = vmatpush1.msra.mxu0 0.0
      %2590 = vmatprep.subr.mxu0 0.0
      %2591 = vmatpush1.msra.mxu0 0.0
      %2592 = vmatprep.subr.mxu0 0.0
      %2593 = vmatpush1.msra.mxu0 0.0
      %2594 = vmatprep.subr.mxu0 0.0
      %2595 = vmatpush1.msra.mxu0 0.0
      %2596 = vmatprep.subr.mxu0 0.0
      %2597 = vmatpush1.msra.mxu0 0.0
      %2598 = vmatprep.subr.mxu0 0.0
      %2599 = vmatpush1.msra.mxu0 0.0
      %2600 = vmatprep.subr.mxu0 0.0
      %2601 = vmatpush1.msra.mxu0 0.0
      %2602 = vmatprep.subr.mxu0 0.0
      %2603 = vmatpush1.msra.mxu0 0.0
      %2604 = vmatprep.subr.mxu0 0.0
      %2605 = vmatpush1.msra.mxu0 0.0
      %2606 = vmatprep.subr.mxu0 0.0
      %2607 = vmatpush1.msra.mxu0 0.0
      %2608 = vmatprep.subr.mxu0 0.0
      %2609 = vmatpush1.msra.mxu0 0.0
      %2610 = vmatprep.subr.mxu0 0.0
      %2611 = vmatpush1.msra.mxu0 0.0
      %2612 = vmatprep.subr.mxu0 0.0
      %2613 = vmatpush1.msra.mxu0 0.0
      %2614 = vmatprep.subr.mxu0 0.0
      %2615 = vmatpush1.msra.mxu0 0.0
      %2616 = vmatprep.subr.mxu0 0.0
      %2617 = vmatpush1.msra.mxu0 0.0
      %2618 = vmatprep.subr.mxu0 0.0
      %2619 = vmatpush1.msra.mxu0 0.0
      %2620 = vmatprep.mubr.f32.mxu0 0.0
      %2621 = vmatmul.mubr.f32.gmra.mrb[0].mxu0 %v2365
      %v2622 = vpop.f32.mrb[0].mxu0
      %v2623 = vadd.f32 0.0, %v2622
      %v2624 = vpop.f32.mrb[0].mxu0
      %2625 = vmatprep.mubr.f32.mxu0 0.0
      %2626 = vmatmul.mubr.f32.gmra.mrb[0].mxu0 %v2368
      %v2627 = vpop.f32.mrb[0].mxu0
      %v2628 = vadd.f32 0.0, %v2627
      %v2629 = vpop.f32.mrb[0].mxu0
      %2630 = vmatprep.mubr.f32.mxu0 0.0
      %2631 = vmatmul.mubr.f32.gmra.mrb[0].mxu0 %v2371
      %v2632 = vpop.f32.mrb[0].mxu0
      %v2633 = vadd.f32 0.0, %v2632
      %v2634 = vpop.f32.mrb[0].mxu0
      %2635 = vmatprep.mubr.f32.mxu0 0.0
      %2636 = vmatmul.mubr.f32.gmra.mrb[0].mxu0 %v2374
      %v2637 = vpop.f32.mrb[0].mxu0
      %v2638 = vadd.f32 0.0, %v2637
      %v2639 = vpop.f32.mrb[0].mxu0
      %2640 = vmatprep.mubr.f32.mxu0 0.0
      %2641 = vmatmul.mubr.f32.gmra.mrb[0].mxu0 %v2377
      %v2642 = vpop.f32.mrb[0].mxu0
      %v2643 = vadd.f32 0.0, %v2642
      %v2644 = vpop.f32.mrb[0].mxu0
      %2645 = vmatprep.mubr.f32.mxu0 0.0
      %2646 = vmatmul.mubr.f32.gmra.mrb[0].mxu0 %v2380
      %v2647 = vpop.f32.mrb[0].mxu0
      %v2648 = vadd.f32 0.0, %v2647
      %v2649 = vpop.f32.mrb[0].mxu0
      %2650 = vmatprep.mubr.f32.mxu0 0.0
      %2651 = vmatmul.mubr.f32.gmra.mrb[0].mxu0 %v2383
      %v2652 = vpop.f32.mrb[0].mxu0
      %v2653 = vadd.f32 0.0, %v2652
      %v2654 = vpop.f32.mrb[0].mxu0
      %2655 = vmatprep.mubr.f32.mxu0 0.0
      %2656 = vmatmul.mubr.f32.gmra.mrb[0].mxu0 %v2386
      %v2657 = vpop.f32.mrb[0].mxu0
      %v2658 = vadd.f32 0.0, %v2657
      %v2659 = vpop.f32.mrb[0].mxu0
      %2660 = vmatprep.mubr.f32.mxu0 0.0
      %2661 = vmatmul.mubr.f32.gmra.mrb[0].mxu0 %v2389
      %v2662 = vpop.f32.mrb[0].mxu0
      %v2663 = vadd.f32 0.0, %v2662
      %v2664 = vpop.f32.mrb[0].mxu0
      %2665 = vmatprep.mubr.f32.mxu0 0.0
      %2666 = vmatmul.mubr.f32.gmra.mrb[0].mxu0 %v2392
      %v2667 = vpop.f32.mrb[0].mxu0
      %v2668 = vadd.f32 0.0, %v2667
      %v2669 = vpop.f32.mrb[0].mxu0
      %2670 = vmatprep.mubr.f32.mxu0 0.0
      %2671 = vmatmul.mubr.f32.gmra.mrb[0].mxu0 %v2395
      %v2672 = vpop.f32.mrb[0].mxu0
      %v2673 = vadd.f32 0.0, %v2672
      %v2674 = vpop.f32.mrb[0].mxu0
      %2675 = vmatprep.mubr.f32.mxu0 0.0
      %2676 = vmatmul.mubr.f32.gmra.mrb[0].mxu0 %v2398
      %v2677 = vpop.f32.mrb[0].mxu0
      %v2678 = vadd.f32 0.0, %v2677
      %v2679 = vpop.f32.mrb[0].mxu0
      %2680 = vmatprep.mubr.f32.mxu0 0.0
      %2681 = vmatmul.mubr.f32.gmra.mrb[0].mxu0 %v2401
      %v2682 = vpop.f32.mrb[0].mxu0
      %v2683 = vadd.f32 0.0, %v2682
      %v2684 = vpop.f32.mrb[0].mxu0
      %2685 = vmatprep.mubr.f32.mxu0 0.0
      %2686 = vmatmul.mubr.f32.gmra.mrb[0].mxu0 %v2404
      %v2687 = vpop.f32.mrb[0].mxu0
      %v2688 = vadd.f32 0.0, %v2687
      %v2689 = vpop.f32.mrb[0].mxu0
      %2690 = vmatprep.mubr.f32.mxu0 0.0
      %2691 = vmatmul.mubr.f32.gmra.mrb[0].mxu0 %v2407
      %v2692 = vpop.f32.mrb[0].mxu0
      %v2693 = vadd.f32 0.0, %v2692
      %v2694 = vpop.f32.mrb[0].mxu0
      %2695 = vmatprep.mubr.f32.mxu0 0.0
      %2696 = vmatmul.mubr.f32.gmra.mrb[0].mxu0 %v2410
      %v2697 = vpop.f32.mrb[0].mxu0
      %v2698 = vadd.f32 0.0, %v2697
      %v2699 = vpop.f32.mrb[0].mxu0
      %2700 = vmatprep.mubr.f32.mxu0 0.0
      %2701 = vmatmul.mubr.f32.gmra.mrb[0].mxu0 %v2413
      %v2702 = vpop.f32.mrb[0].mxu0
      %v2703 = vadd.f32 0.0, %v2702
      %v2704 = vpop.f32.mrb[0].mxu0
      %2705 = vmatprep.mubr.f32.mxu0 0.0
      %2706 = vmatmul.mubr.f32.gmra.mrb[0].mxu0 %v2416
      %v2707 = vpop.f32.mrb[0].mxu0
      %v2708 = vadd.f32 0.0, %v2707
      %v2709 = vpop.f32.mrb[0].mxu0
      %2710 = vmatprep.mubr.f32.mxu0 0.0
      %2711 = vmatmul.mubr.f32.gmra.mrb[0].mxu0 %v2419
      %v2712 = vpop.f32.mrb[0].mxu0
      %v2713 = vadd.f32 0.0, %v2712
      %v2714 = vpop.f32.mrb[0].mxu0
      %2715 = vmatprep.mubr.f32.mxu0 0.0
      %2716 = vmatmul.mubr.f32.gmra.mrb[0].mxu0 %v2422
      %v2717 = vpop.f32.mrb[0].mxu0
      %v2718 = vadd.f32 0.0, %v2717
      %v2719 = vpop.f32.mrb[0].mxu0
      %2720 = vmatprep.mubr.f32.mxu0 0.0
      %2721 = vmatmul.mubr.f32.gmra.mrb[0].mxu0 %v2425
      %v2722 = vpop.f32.mrb[0].mxu0
      %v2723 = vadd.f32 0.0, %v2722
      %v2724 = vpop.f32.mrb[0].mxu0
      %2725 = vmatprep.mubr.f32.mxu0 0.0
      %2726 = vmatmul.mubr.f32.gmra.mrb[0].mxu0 %v2428
      %v2727 = vpop.f32.mrb[0].mxu0
      %v2728 = vadd.f32 0.0, %v2727
      %v2729 = vpop.f32.mrb[0].mxu0
      %2730 = vmatprep.mubr.f32.mxu0 0.0
      %2731 = vmatmul.mubr.f32.gmra.mrb[0].mxu0 %v2431
      %v2732 = vpop.f32.mrb[0].mxu0
      %v2733 = vadd.f32 0.0, %v2732
      %v2734 = vpop.f32.mrb[0].mxu0
      %2735 = vmatprep.mubr.f32.mxu0 0.0
      %2736 = vmatmul.mubr.f32.gmra.mrb[0].mxu0 %v2434
      %v2737 = vpop.f32.mrb[0].mxu0
      %v2738 = vadd.f32 0.0, %v2737
      %v2739 = vpop.f32.mrb[0].mxu0
      %2740 = vmatprep.mubr.f32.mxu0 0.0
      %2741 = vmatmul.mubr.f32.gmra.mrb[0].mxu0 %v2437
      %v2742 = vpop.f32.mrb[0].mxu0
      %v2743 = vadd.f32 0.0, %v2742
      %v2744 = vpop.f32.mrb[0].mxu0
      %2745 = vmatprep.mubr.f32.mxu0 0.0
      %2746 = vmatmul.mubr.f32.gmra.mrb[0].mxu0 %v2440
      %v2747 = vpop.f32.mrb[0].mxu0
      %v2748 = vadd.f32 0.0, %v2747
      %v2749 = vpop.f32.mrb[0].mxu0
      %2750 = vmatprep.mubr.f32.mxu0 0.0
      %2751 = vmatmul.mubr.f32.gmra.mrb[0].mxu0 %v2443
      %v2752 = vpop.f32.mrb[0].mxu0
      %v2753 = vadd.f32 0.0, %v2752
      %v2754 = vpop.f32.mrb[0].mxu0
      %2755 = vmatprep.mubr.f32.mxu0 0.0
      %2756 = vmatmul.mubr.f32.gmra.mrb[0].mxu0 %v2446
      %v2757 = vpop.f32.mrb[0].mxu0
      %v2758 = vadd.f32 0.0, %v2757
      %v2759 = vpop.f32.mrb[0].mxu0
      %2760 = vmatprep.mubr.f32.mxu0 0.0
      %2761 = vmatmul.mubr.f32.gmra.mrb[0].mxu0 %v2449
      %v2762 = vpop.f32.mrb[0].mxu0
      %v2763 = vadd.f32 0.0, %v2762
      %v2764 = vpop.f32.mrb[0].mxu0
      %2765 = vmatprep.mubr.f32.mxu0 0.0
      %2766 = vmatmul.mubr.f32.gmra.mrb[0].mxu0 %v2452
      %v2767 = vpop.f32.mrb[0].mxu0
      %v2768 = vadd.f32 0.0, %v2767
      %v2769 = vpop.f32.mrb[0].mxu0
      %2770 = vmatprep.mubr.f32.mxu0 0.0
      %2771 = vmatmul.mubr.f32.gmra.mrb[0].mxu0 %v2455
      %v2772 = vpop.f32.mrb[0].mxu0
      %v2773 = vadd.f32 0.0, %v2772
      %v2774 = vpop.f32.mrb[0].mxu0
      %2775 = vmatprep.mubr.f32.mxu0 0.0
      %2776 = vmatmul.mubr.f32.gmra.mrb[0].mxu0 %v2458
      %v2777 = vpop.f32.mrb[0].mxu0
      %v2778 = vadd.f32 0.0, %v2777
      %v2779 = vpop.f32.mrb[0].mxu0
      %2780 = vmatprep.mubr.f32.mxu0 0.0
      %2781 = vmatmul.mubr.f32.gmra.mrb[0].mxu0 %v2461
      %v2782 = vpop.f32.mrb[0].mxu0
      %v2783 = vadd.f32 0.0, %v2782
      %v2784 = vpop.f32.mrb[0].mxu0
      %2785 = vmatprep.mubr.f32.mxu0 0.0
      %2786 = vmatmul.mubr.f32.gmra.mrb[0].mxu0 %v2464
      %v2787 = vpop.f32.mrb[0].mxu0
      %v2788 = vadd.f32 0.0, %v2787
      %v2789 = vpop.f32.mrb[0].mxu0
      %2790 = vmatprep.mubr.f32.mxu0 0.0
      %2791 = vmatmul.mubr.f32.gmra.mrb[0].mxu0 %v2467
      %v2792 = vpop.f32.mrb[0].mxu0
      %v2793 = vadd.f32 0.0, %v2792
      %v2794 = vpop.f32.mrb[0].mxu0
      %2795 = vmatprep.mubr.f32.mxu0 0.0
      %2796 = vmatmul.mubr.f32.gmra.mrb[0].mxu0 %v2470
      %v2797 = vpop.f32.mrb[0].mxu0
      %v2798 = vadd.f32 0.0, %v2797
      %v2799 = vpop.f32.mrb[0].mxu0
      %2800 = vmatprep.mubr.f32.mxu0 0.0
      %2801 = vmatmul.mubr.f32.gmra.mrb[0].mxu0 %v2473
      %v2802 = vpop.f32.mrb[0].mxu0
      %v2803 = vadd.f32 0.0, %v2802
      %v2804 = vpop.f32.mrb[0].mxu0
      %2805 = vmatprep.mubr.f32.mxu0 0.0
      %2806 = vmatmul.mubr.f32.gmra.mrb[0].mxu0 %v2476
      %v2807 = vpop.f32.mrb[0].mxu0
      %v2808 = vadd.f32 0.0, %v2807
      %v2809 = vpop.f32.mrb[0].mxu0
      %2810 = vmatprep.mubr.f32.mxu0 0.0
      %2811 = vmatmul.mubr.f32.gmra.mrb[0].mxu0 %v2479
      %v2812 = vpop.f32.mrb[0].mxu0
      %v2813 = vadd.f32 0.0, %v2812
      %v2814 = vpop.f32.mrb[0].mxu0
      %2815 = vmatprep.mubr.f32.mxu0 0.0
      %2816 = vmatmul.mubr.f32.gmra.mrb[0].mxu0 %v2482
      %v2817 = vpop.f32.mrb[0].mxu0
      %v2818 = vadd.f32 0.0, %v2817
      %v2819 = vpop.f32.mrb[0].mxu0
      %2820 = vmatprep.mubr.f32.mxu0 0.0
      %2821 = vmatmul.mubr.f32.gmra.mrb[0].mxu0 %v2485
      %v2822 = vpop.f32.mrb[0].mxu0
      %v2823 = vadd.f32 0.0, %v2822
      %v2824 = vpop.f32.mrb[0].mxu0
      %2825 = vmatprep.mubr.f32.mxu0 0.0
      %2826 = vmatmul.mubr.f32.gmra.mrb[0].mxu0 %v2488
      %v2827 = vpop.f32.mrb[0].mxu0
      %v2828 = vadd.f32 0.0, %v2827
      %v2829 = vpop.f32.mrb[0].mxu0
      %2830 = vmatprep.mubr.f32.mxu0 0.0
      %2831 = vmatmul.mubr.f32.gmra.mrb[0].mxu0 %v2491
      %v2832 = vpop.f32.mrb[0].mxu0
      %v2833 = vadd.f32 0.0, %v2832
      %v2834 = vpop.f32.mrb[0].mxu0
      %2835 = vmatprep.mubr.f32.mxu0 0.0
      %2836 = vmatmul.mubr.f32.gmra.mrb[0].mxu0 %v2494
      %v2837 = vpop.f32.mrb[0].mxu0
      %v2838 = vadd.f32 0.0, %v2837
      %v2839 = vpop.f32.mrb[0].mxu0
      %2840 = vmatprep.mubr.f32.mxu0 0.0
      %2841 = vmatmul.mubr.f32.gmra.mrb[0].mxu0 %v2497
      %v2842 = vpop.f32.mrb[0].mxu0
      %v2843 = vadd.f32 0.0, %v2842
      %v2844 = vpop.f32.mrb[0].mxu0
      %2845 = vmatprep.mubr.f32.mxu0 0.0
      %2846 = vmatmul.mubr.f32.gmra.mrb[0].mxu0 %v2500
      %v2847 = vpop.f32.mrb[0].mxu0
      %v2848 = vadd.f32 0.0, %v2847
      %v2849 = vpop.f32.mrb[0].mxu0
      %2850 = vmatprep.mubr.f32.mxu0 0.0
      %2851 = vmatmul.mubr.f32.gmra.mrb[0].mxu0 %v2503
      %v2852 = vpop.f32.mrb[0].mxu0
      %v2853 = vadd.f32 0.0, %v2852
      %v2854 = vpop.f32.mrb[0].mxu0
      %2855 = vmatprep.mubr.f32.mxu0 0.0
      %2856 = vmatmul.mubr.f32.gmra.mrb[0].mxu0 %v2506
      %v2857 = vpop.f32.mrb[0].mxu0
      %v2858 = vadd.f32 0.0, %v2857
      %v2859 = vpop.f32.mrb[0].mxu0
      %2860 = vmatprep.mubr.f32.mxu0 0.0
      %2861 = vmatmul.mubr.f32.gmra.mrb[0].mxu0 %v2509
      %v2862 = vpop.f32.mrb[0].mxu0
      %v2863 = vadd.f32 0.0, %v2862
      %v2864 = vpop.f32.mrb[0].mxu0
      %2865 = vmatprep.mubr.f32.mxu0 0.0
      %2866 = vmatmul.mubr.f32.gmra.mrb[0].mxu0 %v2512
      %v2867 = vpop.f32.mrb[0].mxu0
      %v2868 = vadd.f32 0.0, %v2867
      %v2869 = vpop.f32.mrb[0].mxu0
      %2870 = vmatprep.mubr.f32.mxu0 0.0
      %2871 = vmatmul.mubr.f32.gmra.mrb[0].mxu0 %v2515
      %v2872 = vpop.f32.mrb[0].mxu0
      %v2873 = vadd.f32 0.0, %v2872
      %v2874 = vpop.f32.mrb[0].mxu0
      %2875 = vmatprep.mubr.f32.mxu0 0.0
      %2876 = vmatmul.mubr.f32.gmra.mrb[0].mxu0 %v2518
      %v2877 = vpop.f32.mrb[0].mxu0
      %v2878 = vadd.f32 0.0, %v2877
      %v2879 = vpop.f32.mrb[0].mxu0
      %2880 = vmatprep.mubr.f32.mxu0 0.0
      %2881 = vmatmul.mubr.f32.gmra.mrb[0].mxu0 %v2521
      %v2882 = vpop.f32.mrb[0].mxu0
      %v2883 = vadd.f32 0.0, %v2882
      %v2884 = vpop.f32.mrb[0].mxu0
      %2885 = vmatprep.mubr.f32.mxu0 0.0
      %2886 = vmatmul.mubr.f32.gmra.mrb[0].mxu0 %v2524
      %v2887 = vpop.f32.mrb[0].mxu0
      %v2888 = vadd.f32 0.0, %v2887
      %v2889 = vpop.f32.mrb[0].mxu0
      %2890 = vmatprep.mubr.f32.mxu0 0.0
      %2891 = vmatmul.mubr.f32.gmra.mrb[0].mxu0 %v2527
      %v2892 = vpop.f32.mrb[0].mxu0
      %v2893 = vadd.f32 0.0, %v2892
      %v2894 = vpop.f32.mrb[0].mxu0
      %2895 = vmatprep.mubr.f32.mxu0 0.0
      %2896 = vmatmul.mubr.f32.gmra.mrb[0].mxu0 %v2530
      %v2897 = vpop.f32.mrb[0].mxu0
      %v2898 = vadd.f32 0.0, %v2897
      %v2899 = vpop.f32.mrb[0].mxu0
      %2900 = vmatprep.mubr.f32.mxu0 0.0
      %2901 = vmatmul.mubr.f32.gmra.mrb[0].mxu0 %v2533
      %v2902 = vpop.f32.mrb[0].mxu0
      %v2903 = vadd.f32 0.0, %v2902
      %v2904 = vpop.f32.mrb[0].mxu0
      %2905 = vmatprep.mubr.f32.mxu0 0.0
      %2906 = vmatmul.mubr.f32.gmra.mrb[0].mxu0 %v2536
      %v2907 = vpop.f32.mrb[0].mxu0
      %v2908 = vadd.f32 0.0, %v2907
      %v2909 = vpop.f32.mrb[0].mxu0
      %2910 = vmatprep.mubr.f32.mxu0 0.0
      %2911 = vmatmul.mubr.f32.gmra.mrb[0].mxu0 %v2539
      %v2912 = vpop.f32.mrb[0].mxu0
      %v2913 = vadd.f32 0.0, %v2912
      %v2914 = vpop.f32.mrb[0].mxu0
      %2915 = vmatprep.mubr.f32.mxu0 0.0
      %2916 = vmatmul.mubr.f32.gmra.mrb[0].mxu0 %v2542
      %v2917 = vpop.f32.mrb[0].mxu0
      %v2918 = vadd.f32 0.0, %v2917
      %v2919 = vpop.f32.mrb[0].mxu0
      %2920 = vmatprep.mubr.f32.mxu0 0.0
      %2921 = vmatmul.mubr.f32.gmra.mrb[0].mxu0 %v2545
      %v2922 = vpop.f32.mrb[0].mxu0
      %v2923 = vadd.f32 0.0, %v2922
      %v2924 = vpop.f32.mrb[0].mxu0
      %2925 = vmatprep.mubr.f32.mxu0 0.0
      %2926 = vmatmul.mubr.f32.gmra.mrb[0].mxu0 %v2548
      %v2927 = vpop.f32.mrb[0].mxu0
      %v2928 = vadd.f32 0.0, %v2927
      %v2929 = vpop.f32.mrb[0].mxu0
      %2930 = vmatprep.mubr.f32.mxu0 0.0
      %2931 = vmatmul.mubr.f32.gmra.mrb[0].mxu0 %v2551
      %v2932 = vpop.f32.mrb[0].mxu0
      %v2933 = vadd.f32 0.0, %v2932
      %v2934 = vpop.f32.mrb[0].mxu0
      %2935 = vmatprep.mubr.f32.mxu0 0.0
      %2936 = vmatmul.mubr.f32.gmra.mrb[0].mxu0 %v2554
      %v2937 = vpop.f32.mrb[0].mxu0
      %v2938 = vadd.f32 0.0, %v2937
      %v2939 = vpop.f32.mrb[0].mxu0
      %2940 = vdwg.mxu0
      %v2941 = vmax.f32 %v2623, 0.0
      %v2942 = vmax.f32 %v2628, 0.0
      %v2943 = vmax.f32 %v2633, 0.0
      %v2944 = vmax.f32 %v2638, 0.0
      %v2945 = vmax.f32 %v2643, 0.0
      %v2946 = vmax.f32 %v2648, 0.0
      %v2947 = vmax.f32 %v2653, 0.0
      %v2948 = vmax.f32 %v2658, 0.0
      %v2949 = vmax.f32 %v2663, 0.0
      %v2950 = vmax.f32 %v2668, 0.0
      %v2951 = vmax.f32 %v2673, 0.0
      %v2952 = vmax.f32 %v2678, 0.0
      %v2953 = vmax.f32 %v2683, 0.0
      %v2954 = vmax.f32 %v2688, 0.0
      %v2955 = vmax.f32 %v2693, 0.0
      %v2956 = vmax.f32 %v2698, 0.0
      %v2957 = vmax.f32 %v2703, 0.0
      %v2958 = vmax.f32 %v2708, 0.0
      %v2959 = vmax.f32 %v2713, 0.0
      %v2960 = vmax.f32 %v2718, 0.0
      %v2961 = vmax.f32 %v2723, 0.0
      %v2962 = vmax.f32 %v2728, 0.0
      %v2963 = vmax.f32 %v2733, 0.0
      %v2964 = vmax.f32 %v2738, 0.0
      %v2965 = vmax.f32 %v2743, 0.0
      %v2966 = vmax.f32 %v2748, 0.0
      %v2967 = vmax.f32 %v2753, 0.0
      %v2968 = vmax.f32 %v2758, 0.0
      %v2969 = vmax.f32 %v2763, 0.0
      %v2970 = vmax.f32 %v2768, 0.0
      %v2971 = vmax.f32 %v2773, 0.0
      %v2972 = vmax.f32 %v2778, 0.0
      %v2973 = vmax.f32 %v2783, 0.0
      %v2974 = vmax.f32 %v2788, 0.0
      %v2975 = vmax.f32 %v2793, 0.0
      %v2976 = vmax.f32 %v2798, 0.0
      %v2977 = vmax.f32 %v2803, 0.0
      %v2978 = vmax.f32 %v2808, 0.0
      %v2979 = vmax.f32 %v2813, 0.0
      %v2980 = vmax.f32 %v2818, 0.0
      %v2981 = vmax.f32 %v2823, 0.0
      %v2982 = vmax.f32 %v2828, 0.0
      %v2983 = vmax.f32 %v2833, 0.0
      %v2984 = vmax.f32 %v2838, 0.0
      %v2985 = vmax.f32 %v2843, 0.0
      %v2986 = vmax.f32 %v2848, 0.0
      %v2987 = vmax.f32 %v2853, 0.0
      %v2988 = vmax.f32 %v2858, 0.0
      %v2989 = vmax.f32 %v2863, 0.0
      %v2990 = vmax.f32 %v2868, 0.0
      %v2991 = vmax.f32 %v2873, 0.0
      %v2992 = vmax.f32 %v2878, 0.0
      %v2993 = vmax.f32 %v2883, 0.0
      %v2994 = vmax.f32 %v2888, 0.0
      %v2995 = vmax.f32 %v2893, 0.0
      %v2996 = vmax.f32 %v2898, 0.0
      %v2997 = vmax.f32 %v2903, 0.0
      %v2998 = vmax.f32 %v2908, 0.0
      %v2999 = vmax.f32 %v2913, 0.0
      %v3000 = vmax.f32 %v2918, 0.0
      %v3001 = vmax.f32 %v2923, 0.0
      %v3002 = vmax.f32 %v2928, 0.0
      %v3003 = vmax.f32 %v2933, 0.0
      %v3004 = vmax.f32 %v2938, 0.0
      %s3005 = scalar_lea.vmem %s3, 256
      %v3006 = vld [vmem:[%s3005] sm:$0xff]
      %v3007 = vld [vmem:[%s3005 + $0x8] sm:$0xff]
      %v3008 = vld [vmem:[%s3005 + $0x10] sm:$0xff]
      %v3009 = vld [vmem:[%s3005 + $0x18] sm:$0xff]
      %v3010 = vld [vmem:[%s3005 + $0x20] sm:$0xff]
      %v3011 = vld [vmem:[%s3005 + $0x28] sm:$0xff]
      %v3012 = vld [vmem:[%s3005 + $0x30] sm:$0xff]
      %v3013 = vld [vmem:[%s3005 + $0x38] sm:$0xff]
      %v3014 = vld [vmem:[%s3005 + $0x40] sm:$0xff]
      %v3015 = vld [vmem:[%s3005 + $0x48] sm:$0xff]
      %v3016 = vld [vmem:[%s3005 + $0x50] sm:$0xff]
      %v3017 = vld [vmem:[%s3005 + $0x58] sm:$0xff]
      %v3018 = vld [vmem:[%s3005 + $0x60] sm:$0xff]
      %v3019 = vld [vmem:[%s3005 + $0x68] sm:$0xff]
      %v3020 = vld [vmem:[%s3005 + $0x70] sm:$0xff]
      %v3021 = vld [vmem:[%s3005 + $0x78] sm:$0xff]
      %3022 = vmatprep.subr.mxu0 0.0
      %3023 = vmatpush1.msra.mxu0 %v2941
      %3024 = vmatprep.subr.mxu0 0.0
      %3025 = vmatpush1.msra.mxu0 %v2942
      %3026 = vmatprep.subr.mxu0 0.0
      %3027 = vmatpush1.msra.mxu0 %v2943
      %3028 = vmatprep.subr.mxu0 0.0
      %3029 = vmatpush1.msra.mxu0 %v2944
      %3030 = vmatprep.subr.mxu0 0.0
      %3031 = vmatpush1.msra.mxu0 %v2945
      %3032 = vmatprep.subr.mxu0 0.0
      %3033 = vmatpush1.msra.mxu0 %v2946
      %3034 = vmatprep.subr.mxu0 0.0
      %3035 = vmatpush1.msra.mxu0 %v2947
      %3036 = vmatprep.subr.mxu0 0.0
      %3037 = vmatpush1.msra.mxu0 %v2948
      %3038 = vmatprep.subr.mxu0 0.0
      %3039 = vmatpush1.msra.mxu0 %v2949
      %3040 = vmatprep.subr.mxu0 0.0
      %3041 = vmatpush1.msra.mxu0 %v2950
      %3042 = vmatprep.subr.mxu0 0.0
      %3043 = vmatpush1.msra.mxu0 %v2951
      %3044 = vmatprep.subr.mxu0 0.0
      %3045 = vmatpush1.msra.mxu0 %v2952
      %3046 = vmatprep.subr.mxu0 0.0
      %3047 = vmatpush1.msra.mxu0 %v2953
      %3048 = vmatprep.subr.mxu0 0.0
      %3049 = vmatpush1.msra.mxu0 %v2954
      %3050 = vmatprep.subr.mxu0 0.0
      %3051 = vmatpush1.msra.mxu0 %v2955
      %3052 = vmatprep.subr.mxu0 0.0
      %3053 = vmatpush1.msra.mxu0 %v2956
      %3054 = vmatprep.subr.mxu0 0.0
      %3055 = vmatpush1.msra.mxu0 %v2957
      %3056 = vmatprep.subr.mxu0 0.0
      %3057 = vmatpush1.msra.mxu0 %v2958
      %3058 = vmatprep.subr.mxu0 0.0
      %3059 = vmatpush1.msra.mxu0 %v2959
      %3060 = vmatprep.subr.mxu0 0.0
      %3061 = vmatpush1.msra.mxu0 %v2960
      %3062 = vmatprep.subr.mxu0 0.0
      %3063 = vmatpush1.msra.mxu0 %v2961
      %3064 = vmatprep.subr.mxu0 0.0
      %3065 = vmatpush1.msra.mxu0 %v2962
      %3066 = vmatprep.subr.mxu0 0.0
      %3067 = vmatpush1.msra.mxu0 %v2963
      %3068 = vmatprep.subr.mxu0 0.0
      %3069 = vmatpush1.msra.mxu0 %v2964
      %3070 = vmatprep.subr.mxu0 0.0
      %3071 = vmatpush1.msra.mxu0 %v2965
      %3072 = vmatprep.subr.mxu0 0.0
      %3073 = vmatpush1.msra.mxu0 %v2966
      %3074 = vmatprep.subr.mxu0 0.0
      %3075 = vmatpush1.msra.mxu0 %v2967
      %3076 = vmatprep.subr.mxu0 0.0
      %3077 = vmatpush1.msra.mxu0 %v2968
      %3078 = vmatprep.subr.mxu0 0.0
      %3079 = vmatpush1.msra.mxu0 %v2969
      %3080 = vmatprep.subr.mxu0 0.0
      %3081 = vmatpush1.msra.mxu0 %v2970
      %3082 = vmatprep.subr.mxu0 0.0
      %3083 = vmatpush1.msra.mxu0 %v2971
      %3084 = vmatprep.subr.mxu0 0.0
      %3085 = vmatpush1.msra.mxu0 %v2972
      %3086 = vmatprep.mubr.f32.mxu0 %v3007
      %3087 = vmatmul.mubr.f32.gmra.mrb[0].mxu0 %v3006
      %v3088 = vpop.f32.mrb[0].mxu0
      %v3089 = vadd.f32 0.0, %v3088
      %v3090 = vpop.f32.mrb[0].mxu0
      %3091 = vmatprep.mubr.f32.mxu0 %v3011
      %3092 = vmatmul.mubr.f32.gmra.mrb[0].mxu0 %v3010
      %v3093 = vpop.f32.mrb[0].mxu0
      %v3094 = vadd.f32 0.0, %v3093
      %v3095 = vpop.f32.mrb[0].mxu0
      %3096 = vmatprep.mubr.f32.mxu0 %v3015
      %3097 = vmatmul.mubr.f32.gmra.mrb[0].mxu0 %v3014
      %v3098 = vpop.f32.mrb[0].mxu0
      %v3099 = vadd.f32 0.0, %v3098
      %v3100 = vpop.f32.mrb[0].mxu0
      %3101 = vmatprep.mubr.f32.mxu0 %v3019
      %3102 = vmatmul.mubr.f32.gmra.mrb[0].mxu0 %v3018
      %v3103 = vpop.f32.mrb[0].mxu0
      %v3104 = vadd.f32 0.0, %v3103
      %v3105 = vpop.f32.mrb[0].mxu0
      %3106 = vdwg.mxu0
      %3107 = vmatprep.subr.mxu0 0.0
      %3108 = vmatpush1.msra.mxu0 %v2973
      %3109 = vmatprep.subr.mxu0 0.0
      %3110 = vmatpush1.msra.mxu0 %v2974
      %3111 = vmatprep.subr.mxu0 0.0
      %3112 = vmatpush1.msra.mxu0 %v2975
      %3113 = vmatprep.subr.mxu0 0.0
      %3114 = vmatpush1.msra.mxu0 %v2976
      %3115 = vmatprep.subr.mxu0 0.0
      %3116 = vmatpush1.msra.mxu0 %v2977
      %3117 = vmatprep.subr.mxu0 0.0
      %3118 = vmatpush1.msra.mxu0 %v2978
      %3119 = vmatprep.subr.mxu0 0.0
      %3120 = vmatpush1.msra.mxu0 %v2979
      %3121 = vmatprep.subr.mxu0 0.0
      %3122 = vmatpush1.msra.mxu0 %v2980
      %3123 = vmatprep.subr.mxu0 0.0
      %3124 = vmatpush1.msra.mxu0 %v2981
      %3125 = vmatprep.subr.mxu0 0.0
      %3126 = vmatpush1.msra.mxu0 %v2982
      %3127 = vmatprep.subr.mxu0 0.0
      %3128 = vmatpush1.msra.mxu0 %v2983
      %3129 = vmatprep.subr.mxu0 0.0
      %3130 = vmatpush1.msra.mxu0 %v2984
      %3131 = vmatprep.subr.mxu0 0.0
      %3132 = vmatpush1.msra.mxu0 %v2985
      %3133 = vmatprep.subr.mxu0 0.0
      %3134 = vmatpush1.msra.mxu0 %v2986
      %3135 = vmatprep.subr.mxu0 0.0
      %3136 = vmatpush1.msra.mxu0 %v2987
      %3137 = vmatprep.subr.mxu0 0.0
      %3138 = vmatpush1.msra.mxu0 %v2988
      %3139 = vmatprep.subr.mxu0 0.0
      %3140 = vmatpush1.msra.mxu0 %v2989
      %3141 = vmatprep.subr.mxu0 0.0
      %3142 = vmatpush1.msra.mxu0 %v2990
      %3143 = vmatprep.subr.mxu0 0.0
      %3144 = vmatpush1.msra.mxu0 %v2991
      %3145 = vmatprep.subr.mxu0 0.0
      %3146 = vmatpush1.msra.mxu0 %v2992
      %3147 = vmatprep.subr.mxu0 0.0
      %3148 = vmatpush1.msra.mxu0 %v2993
      %3149 = vmatprep.subr.mxu0 0.0
      %3150 = vmatpush1.msra.mxu0 %v2994
      %3151 = vmatprep.subr.mxu0 0.0
      %3152 = vmatpush1.msra.mxu0 %v2995
      %3153 = vmatprep.subr.mxu0 0.0
      %3154 = vmatpush1.msra.mxu0 %v2996
      %3155 = vmatprep.subr.mxu0 0.0
      %3156 = vmatpush1.msra.mxu0 %v2997
      %3157 = vmatprep.subr.mxu0 0.0
      %3158 = vmatpush1.msra.mxu0 %v2998
      %3159 = vmatprep.subr.mxu0 0.0
      %3160 = vmatpush1.msra.mxu0 %v2999
      %3161 = vmatprep.subr.mxu0 0.0
      %3162 = vmatpush1.msra.mxu0 %v3000
      %3163 = vmatprep.subr.mxu0 0.0
      %3164 = vmatpush1.msra.mxu0 %v3001
      %3165 = vmatprep.subr.mxu0 0.0
      %3166 = vmatpush1.msra.mxu0 %v3002
      %3167 = vmatprep.subr.mxu0 0.0
      %3168 = vmatpush1.msra.mxu0 %v3003
      %3169 = vmatprep.subr.mxu0 0.0
      %3170 = vmatpush1.msra.mxu0 %v3004
      %3171 = vmatprep.mubr.f32.mxu0 %v3009
      %3172 = vmatmul.mubr.f32.gmra.mrb[0].mxu0 %v3008
      %v3173 = vpop.f32.mrb[0].mxu0
      %v3174 = vadd.f32 %v3089, %v3173
      %v3175 = vpop.f32.mrb[0].mxu0
      %3176 = vmatprep.mubr.f32.mxu0 %v3013
      %3177 = vmatmul.mubr.f32.gmra.mrb[0].mxu0 %v3012
      %v3178 = vpop.f32.mrb[0].mxu0
      %v3179 = vadd.f32 %v3094, %v3178
      %v3180 = vpop.f32.mrb[0].mxu0
      %3181 = vmatprep.mubr.f32.mxu0 %v3017
      %3182 = vmatmul.mubr.f32.gmra.mrb[0].mxu0 %v3016
      %v3183 = vpop.f32.mrb[0].mxu0
      %v3184 = vadd.f32 %v3099, %v3183
      %v3185 = vpop.f32.mrb[0].mxu0
      %3186 = vmatprep.mubr.f32.mxu0 %v3021
      %3187 = vmatmul.mubr.f32.gmra.mrb[0].mxu0 %v3020
      %v3188 = vpop.f32.mrb[0].mxu0
      %v3189 = vadd.f32 %v3104, %v3188
      %v3190 = vpop.f32.mrb[0].mxu0
      %3191 = vdwg.mxu0
      %v3192 = vadd.f32 %v2193, %v3174
      %v3193 = vadd.f32 %v2198, %v3179
      %v3194 = vadd.f32 %v2203, %v3184
      %v3195 = vadd.f32 %v2208, %v3189
      %3196 = vst.msk [vmem:[%s233] sm:$0xff] %vm240, %v3192
      %3197 = vst.msk [vmem:[%s233 + $0x8] sm:$0xff] %vm240, %v3193
      %3198 = vst.msk [vmem:[%s233 + $0x10] sm:$0xff] %vm240, %v3194
      %3199 = vst.msk [vmem:[%s233 + $0x18] sm:$0xff] %vm240, %v3195
      %p3200 = scmp.lt.s32.totalorder %s19, 1
      %s3201 = scalar_select %p3200, %s19, 1
      %p3202 = scmp.lt.s32.totalorder %s20, 0
      %s3203 = scalar_select %p3202, %s20, 0
      %s3204 = smul.addr %s3203, 4
      %s3205 = smul.addr %s3201, 4
      %s3206 = sadd.s32 %s3204, %s3205
      %s3207 = smul.addr %s3206, 8
      %s3208 = scalar_lea.vmem %s4, %s3207
      // Predicated region
      $region37: #{tpu_custom_call.1} parent=35 // pred_check
        %p3209 = pneg %p138
      $region38: #{tpu_custom_call.1} parent=35 // pred_check_branch
        %3211 = sbr.rel (%p3209) target = $region40
      $region39: #{tpu_custom_call.1} parent=35 // pred_region
        _
      $region40: #{tpu_custom_call.1} parent=35 // pred_fallthru
        _
    $region36: #{tpu_custom_call.1} parent=5 // pred_fallthru
      _
    %p3212 = scmp.le.s32.totalorder 2, %s10
    // Predicated region
    $region41: #{tpu_custom_call.1} parent=5 // pred_check
      %p3213 = pneg %p3212
    $region42: #{tpu_custom_call.1} parent=5 // pred_check_branch
      %3215 = sbr.rel (%p3213) target = $region44
    $region43: #{tpu_custom_call.1} parent=5 // pred_region
      %s3216 = ssub.s32 %s10, 2
      // Predicated region
      $region45: #{tpu_custom_call.1} parent=43 // pred_check
        %p3217 = pneg %p144
      $region46: #{tpu_custom_call.1} parent=43 // pred_check_branch
        %3219 = sbr.rel (%p3217) target = $region48
      $region47: #{tpu_custom_call.1} parent=43 // pred_region
        %p3220 = scmp.lt.s32.totalorder %s21, 1
        %s3221 = scalar_select %p3220, %s21, 1
        %p3222 = scmp.lt.s32.totalorder %s22, 0
        %s3223 = scalar_select %p3222, %s22, 0
        %s3224 = smul.addr %s3223, 4
        %s3225 = smul.addr %s3221, 4
        %s3226 = sadd.s32 %s3224, %s3225
        %s3227 = smul.addr %s3226, 8
        %s3228 = scalar_lea.vmem %s4, %s3227
      $region48: #{tpu_custom_call.1} parent=43 // pred_fallthru
        _
    $region44: #{tpu_custom_call.1} parent=5 // pred_fallthru
      _
  $region6: #{tpu_custom_call.1} parent=0 // loop_footer
    %s14 = sadd.s32 1, %s10
  $region7: #{tpu_custom_call.1} parent=0 // loop_footer_branch
    %9 = sbr.rel target = $region3
  $region8: #{tpu_custom_call.1} parent=0 // loop_exit
    _

</llo_original>
